<compile_context>
chip_gen: v7x
topology: tpu7x:2x2x1
jax: 0.10.0
libtpu: 0.0.40
codegen_flags: <defaults>
</compile_context>

<pallas_src>
import functools

import jax
import jax.numpy as jnp
from jax.experimental import pallas as pl
from jax.experimental.pallas import tpu as pltpu


def _round_up(x, m):
    return (x + m - 1) // m * m


def _vmem_limit_bytes():
    # Generation-aware VMEM budget: ~half of physical VMEM
    # (-> ~64 MiB on v5e/v6e with 128 MiB, ~32 MiB on v7x with 64 MiB).
    try:
        cap = int(pltpu.get_tpu_info().vmem_capacity_bytes)
        return int(min(max(cap // 2, 16 * 1024 * 1024), 64 * 1024 * 1024))
    except Exception:
        return 32 * 1024 * 1024


_VMEM_LIMIT = _vmem_limit_bytes()


# ----------------------------------------------------------------------------
# Kernels
# ----------------------------------------------------------------------------
def conv_bn_relu_kernel(x_ref, w_ref, shift_ref, o_ref, *, kh, row_len, m_out):
    # x_ref    : (1, m_in, kdim_p)   bf16  dj-expanded, row-flattened padded image
    # w_ref    : (kh, kdim_p, c_pad) bf16  BN-scale-folded weights, one slab per row tap
    # shift_ref: (1, c_pad)          f32   folded conv bias + BN shift
    # o_ref    : (1, m_out, c_pad)   bf16  pre-pool ReLU activation
    c_pad = o_ref.shape[-1]
    acc = jnp.zeros((m_out, c_pad), jnp.float32)
    for di in range(kh):  # static unroll over the kh row taps (on-chip slices)
        lhs = x_ref[0, pl.ds(di * row_len, m_out), :]
        acc = acc + jnp.dot(lhs, w_ref[di], preferred_element_type=jnp.float32)
    o_ref[0] = jnp.maximum(acc + shift_ref[...], 0.0).astype(o_ref.dtype)


def mlp_head_kernel(x_ref, w1_ref, b1_ref, w2_ref, b2_ref, w3_ref, b3_ref,
                    o_ref, acc_ref):
    k = pl.program_id(0)

    @pl.when(k == 0)
    def _():
        acc_ref[...] = jnp.zeros_like(acc_ref)

    # fc1 partial product for this K-slice (w1 is streamed, never fully resident).
    acc_ref[...] += jnp.dot(x_ref[...], w1_ref[...],
                            preferred_element_type=jnp.float32)

    @pl.when(k == pl.num_programs(0) - 1)
    def _():
        h1 = jnp.maximum(acc_ref[...] + b1_ref[...], 0.0)          # fc1 + ReLU
        h2 = jnp.dot(h1.astype(jnp.bfloat16), w2_ref[...],
                     preferred_element_type=jnp.float32)
        h2 = jnp.maximum(h2 + b2_ref[...], 0.0)                    # fc2 + ReLU
        o = jnp.dot(h2.astype(jnp.bfloat16), w3_ref[...],
                    preferred_element_type=jnp.float32)
        o_ref[...] = o + b3_ref[...]                               # output layer


# ----------------------------------------------------------------------------
# Wrappers
# ----------------------------------------------------------------------------
def conv_bn_relu_pool(x_nhwc, w_oikk, b, gamma, beta, mean, var, eps=1e-5):
    """Conv2d('same') + BatchNorm(eval) + ReLU fused in Pallas, then 2x2 maxpool."""
    n, h, w, cin = x_nhwc.shape
    cout, _, kh, kw = w_oikk.shape
    pad = kh // 2
    row_len = _round_up(w, 8)          # flattened row stride -> 8-aligned tap offsets
    kdim = kw * cin
    kdim_p = _round_up(kdim, 8)
    c_pad = _round_up(cout, 128)       # lane-dense output channels
    m_in = (h + 2 * pad) * row_len
    m_out = h * row_len

    # dj-expansion only (kw-fold), built directly in bf16.  The kh row taps are
    # applied inside the kernel, so no kh*kw im2col patches ever hit HBM.
    xb = x_nhwc.astype(jnp.bfloat16)
    xp = jnp.pad(xb, ((0, 0), (pad, pad), (pad, pad), (0, 0)))
    xd = jnp.concatenate([xp[:, :, dj:dj + w, :] for dj in range(kw)], axis=3)
    xd = jnp.pad(xd, ((0, 0), (0, 0), (0, row_len - w), (0, kdim_p - kdim)))
    xd = xd.reshape(n, m_in, kdim_p)

    # Fold conv bias + BatchNorm (eval mode) into weights / shift.
    scale = gamma / jnp.sqrt(var + eps)
    shift = (b - mean) * scale + beta
    wt = jnp.transpose(w_oikk, (2, 3, 1, 0)) * scale               # (kh,kw,cin,cout)
    wt = wt.reshape(kh, kdim, cout)
    wt = jnp.pad(wt, ((0, 0), (0, kdim_p - kdim), (0, c_pad - cout)))
    wt = wt.astype(jnp.bfloat16)
    shift_p = jnp.pad(shift, (0, c_pad - cout)).reshape(1, c_pad).astype(jnp.float32)

    kernel = functools.partial(conv_bn_relu_kernel,
                               kh=kh, row_len=row_len, m_out=m_out)
    y = pl.pallas_call(
        kernel,
        grid=(n,),
        in_specs=[pl.BlockSpec((1, m_in, kdim_p), lambda i: (i, 0, 0)),
                  pl.BlockSpec((kh, kdim_p, c_pad), lambda i: (0, 0, 0)),
                  pl.BlockSpec((1, c_pad), lambda i: (0, 0))],
        out_specs=pl.BlockSpec((1, m_out, c_pad), lambda i: (i, 0, 0)),
        out_shape=jax.ShapeDtypeStruct((n, m_out, c_pad), jnp.bfloat16),
        compiler_params=pltpu.CompilerParams(
            dimension_semantics=("parallel",),
            vmem_limit_bytes=_VMEM_LIMIT),
        cost_estimate=pl.CostEstimate(
            flops=2 * n * kh * m_out * kdim_p * c_pad,
            transcendentals=0,
            bytes_accessed=(n * m_in * kdim_p * 2        # bf16 input (read once)
                            + kh * kdim_p * c_pad * 2    # bf16 weights
                            + n * m_out * c_pad * 2)),   # bf16 pre-pool output
    )(xd, wt, shift_p)

    # 2x2 max pool on the small bf16 pre-pool activation (XLA side).
    y = y[:, :, :cout].reshape(n, h, row_len, cout)[:, :, :w, :]
    y = y.reshape(n, h // 2, 2, w // 2, 2, cout).max(axis=(2, 4))
    return y


def mlp_head(x, w1, b1, w2, b2, w3, b3):
    bsz, fin = x.shape
    n1 = w1.shape[1]                     # 256
    n2 = w2.shape[1]                     # 128
    nout = w3.shape[1]                   # 2
    b_pad = _round_up(max(bsz, 16), 16)  # bf16 packs 16 rows per sublane group
    o_pad = _round_up(nout, 128)         # lane-dense output, sliced to 2 after
    tk = 256                             # fc1 reduction-axis tile
    f_pad = _round_up(fin, tk)
    grid_k = f_pad // tk

    xp = jnp.pad(x, ((0, b_pad - bsz), (0, f_pad - fin))).astype(jnp.bfloat16)
    w1p = jnp.pad(w1, ((0, f_pad - fin), (0, 0))).astype(jnp.bfloat16)
    w2p = w2.astype(jnp.bfloat16)
    w3p = jnp.pad(w3, ((0, 0), (0, o_pad - nout))).astype(jnp.bfloat16)
    b1p = b1.reshape(1, n1).astype(jnp.float32)
    b2p = b2.reshape(1, n2).astype(jnp.float32)
    b3p = jnp.pad(b3, (0, o_pad - nout)).reshape(1, o_pad).astype(jnp.float32)

    out = pl.pallas_call(
        mlp_head_kernel,
        grid=(grid_k,),
        in_specs=[pl.BlockSpec((b_pad, tk), lambda k: (0, k)),
                  pl.BlockSpec((tk, n1), lambda k: (k, 0)),
                  pl.BlockSpec((1, n1), lambda k: (0, 0)),
                  pl.BlockSpec((n1, n2), lambda k: (0, 0)),
                  pl.BlockSpec((1, n2), lambda k: (0, 0)),
                  pl.BlockSpec((n2, o_pad), lambda k: (0, 0)),
                  pl.BlockSpec((1, o_pad), lambda k: (0, 0))],
        out_specs=pl.BlockSpec((b_pad, o_pad), lambda k: (0, 0)),
        out_shape=jax.ShapeDtypeStruct((b_pad, o_pad), jnp.float32),
        scratch_shapes=[pltpu.VMEM((b_pad, n1), jnp.float32)],
        compiler_params=pltpu.CompilerParams(
            dimension_semantics=("arbitrary",),
            vmem_limit_bytes=_VMEM_LIMIT),
        cost_estimate=pl.CostEstimate(
            flops=2 * b_pad * (f_pad * n1 + n1 * n2 + n2 * o_pad),
            transcendentals=0,
            bytes_accessed=(b_pad * f_pad * 2 + f_pad * n1 * 2
                            + n1 * n2 * 2 + n2 * o_pad * 2
                            + b_pad * o_pad * 4)),
    )(xp, w1p, b1p, w2p, b2p, w3p, b3p)
    return out[:bsz, :nout]


# ----------------------------------------------------------------------------
# Parameters (deterministic synthetic init) and forward pass
# ----------------------------------------------------------------------------
def _bn_params(key, c):
    k1, k2, k3, k4 = jax.random.split(key, 4)
    gamma = 1.0 + 0.1 * jax.random.normal(k1, (c,), jnp.float32)
    beta = 0.1 * jax.random.normal(k2, (c,), jnp.float32)
    mean = 0.1 * jax.random.normal(k3, (c,), jnp.float32)
    var = 1.0 + jnp.abs(0.1 * jax.random.normal(k4, (c,), jnp.float32))
    return gamma, beta, mean, var


def init_params(key, fc1_in):
    keys = jax.random.split(key, 12)
    p = {}
    # conv weights in PyTorch layout (Cout, Cin, kh, kw)
    p["conv1_w"] = 0.05 * jax.random.normal(keys[0], (32, 3, 7, 7), jnp.float32)
    p["conv1_b"] = 0.05 * jax.random.normal(keys[1], (32,), jnp.float32)
    p["bn1"] = _bn_params(keys[2], 32)
    p["conv2_w"] = 0.05 * jax.random.normal(keys[3], (64, 32, 5, 5), jnp.float32)
    p["conv2_b"] = 0.05 * jax.random.normal(keys[4], (64,), jnp.float32)
    p["bn2"] = _bn_params(keys[5], 64)
    p["conv3_w"] = 0.05 * jax.random.normal(keys[6], (128, 64, 3, 3), jnp.float32)
    p["conv3_b"] = 0.05 * jax.random.normal(keys[7], (128,), jnp.float32)
    p["bn3"] = _bn_params(keys[8], 128)
    # linear weights stored as (in, out) for x @ W
    p["fc1_w"] = 0.02 * jax.random.normal(keys[9], (fc1_in, 256), jnp.float32)
    p["fc1_b"] = jnp.zeros((256,), jnp.float32)
    p["fc2_w"] = 0.02 * jax.random.normal(keys[10], (256, 128), jnp.float32)
    p["fc2_b"] = jnp.zeros((128,), jnp.float32)
    p["out_w"] = 0.02 * jax.random.normal(keys[11], (128, 2), jnp.float32)
    p["out_b"] = jnp.zeros((2,), jnp.float32)
    return p


@jax.jit
def net_forward(x_nchw, params):
    x = jnp.transpose(x_nchw, (0, 2, 3, 1)).astype(jnp.float32)  # NCHW -> NHWC
    x = conv_bn_relu_pool(x, params["conv1_w"], params["conv1_b"], *params["bn1"])
    x = conv_bn_relu_pool(x, params["conv2_w"], params["conv2_b"], *params["bn2"])
    x = conv_bn_relu_pool(x, params["conv3_w"], params["conv3_b"], *params["bn3"])
    # flatten in PyTorch NCHW order
    x = jnp.transpose(x, (0, 3, 1, 2)).reshape(x.shape[0], -1)
    # dropout layers are identity at inference
    return mlp_head(x, params["fc1_w"], params["fc1_b"],
                    params["fc2_w"], params["fc2_b"],
                    params["out_w"], params["out_b"])


if __name__ == "__main__":
    key = jax.random.PRNGKey(0)
    k_x, k_p = jax.random.split(key)
    # batch=2, channels=3, spatial=16  (scaled-down version of the 224x224 net)
    x = jax.random.normal(k_x, (2, 3, 16, 16), jnp.float32)
    # after 3 pools: 16 -> 8 -> 4 -> 2  => fc1 input = 2*2*128 = 512
    params = init_params(k_p, fc1_in=2 * 2 * 128)
    out = jax.block_until_ready(net_forward(x, params))
    assert out.shape == (2, 2) and out.dtype == jnp.float32
    print("KERNEL_OK")
</pallas_src>

<mosaic_0001>
module attributes {stable_mosaic.version = 11 : i64} {
  func.func @conv_bn_relu_kernel(%arg0: i32, %arg1: memref<1x352x24xbf16, #tpu.memory_space<vmem>>, %arg2: memref<7x24x128xbf16, #tpu.memory_space<vmem>>, %arg3: memref<1x128xf32, #tpu.memory_space<vmem>>, %arg4: memref<1x256x128xbf16, #tpu.memory_space<vmem>>) attributes {dimension_semantics = [#tpu.dimension_semantics<parallel>], iteration_bounds = array<i64: 2>, scalar_prefetch = 0 : i64, scratch_operands = 0 : i64, tpu.core_type = #tpu.core_type<tc>, window_params = [{transform_indices = @transform_0, window_bounds = array<i64: 1, 352, 24>}, {pipeline_mode = #tpu.pipeline_mode<synchronous>, transform_indices = @transform_1, window_bounds = array<i64: 7, 24, 128>}, {pipeline_mode = #tpu.pipeline_mode<synchronous>, transform_indices = @transform_2, window_bounds = array<i64: 1, 128>}, {transform_indices = @transform_3, window_bounds = array<i64: 1, 256, 128>}]} {
    %cst = arith.constant 0.000000e+00 : f32
    %0 = vector.broadcast %cst : f32 to vector<256x128xf32>
    %c0 = arith.constant 0 : index
    %c0_0 = arith.constant 0 : index
    %c0_1 = arith.constant 0 : index
    %1 = vector.load %arg1[%c0, %c0_0, %c0_1] : memref<1x352x24xbf16, #tpu.memory_space<vmem>>, vector<1x256x24xbf16>
    %2 = vector.shape_cast %1 : vector<1x256x24xbf16> to vector<256x24xbf16>
    %c0_2 = arith.constant 0 : index
    %c0_3 = arith.constant 0 : index
    %c0_4 = arith.constant 0 : index
    %3 = vector.load %arg2[%c0_2, %c0_3, %c0_4] : memref<7x24x128xbf16, #tpu.memory_space<vmem>>, vector<1x24x128xbf16>
    %4 = vector.shape_cast %3 : vector<1x24x128xbf16> to vector<24x128xbf16>
    %cst_5 = arith.constant dense<0.000000e+00> : vector<256x128xf32>
    %5 = tpu.matmul %2, %4, %cst_5 {dimension_numbers = #tpu.dot_dimension_numbers<[1], [0], [0], [1], [0, 0, 1, 1], [], []>} : vector<256x24xbf16>, vector<24x128xbf16>, vector<256x128xf32> -> vector<256x128xf32>
    %6 = arith.addf %0, %5 : vector<256x128xf32>
    %c0_6 = arith.constant 0 : index
    %c16 = arith.constant 16 : index
    %c0_7 = arith.constant 0 : index
    %7 = vector.load %arg1[%c0_6, %c16, %c0_7] : memref<1x352x24xbf16, #tpu.memory_space<vmem>>, vector<1x256x24xbf16>
    %8 = vector.shape_cast %7 : vector<1x256x24xbf16> to vector<256x24xbf16>
    %c1 = arith.constant 1 : index
    %c0_8 = arith.constant 0 : index
    %c0_9 = arith.constant 0 : index
    %9 = vector.load %arg2[%c1, %c0_8, %c0_9] : memref<7x24x128xbf16, #tpu.memory_space<vmem>>, vector<1x24x128xbf16>
    %10 = vector.shape_cast %9 : vector<1x24x128xbf16> to vector<24x128xbf16>
    %cst_10 = arith.constant dense<0.000000e+00> : vector<256x128xf32>
    %11 = tpu.matmul %8, %10, %cst_10 {dimension_numbers = #tpu.dot_dimension_numbers<[1], [0], [0], [1], [0, 0, 1, 1], [], []>} : vector<256x24xbf16>, vector<24x128xbf16>, vector<256x128xf32> -> vector<256x128xf32>
    %12 = arith.addf %6, %11 : vector<256x128xf32>
    %c0_11 = arith.constant 0 : index
    %c32 = arith.constant 32 : index
    %c0_12 = arith.constant 0 : index
    %13 = vector.load %arg1[%c0_11, %c32, %c0_12] : memref<1x352x24xbf16, #tpu.memory_space<vmem>>, vector<1x256x24xbf16>
    %14 = vector.shape_cast %13 : vector<1x256x24xbf16> to vector<256x24xbf16>
    %c2 = arith.constant 2 : index
    %c0_13 = arith.constant 0 : index
    %c0_14 = arith.constant 0 : index
    %15 = vector.load %arg2[%c2, %c0_13, %c0_14] : memref<7x24x128xbf16, #tpu.memory_space<vmem>>, vector<1x24x128xbf16>
    %16 = vector.shape_cast %15 : vector<1x24x128xbf16> to vector<24x128xbf16>
    %cst_15 = arith.constant dense<0.000000e+00> : vector<256x128xf32>
    %17 = tpu.matmul %14, %16, %cst_15 {dimension_numbers = #tpu.dot_dimension_numbers<[1], [0], [0], [1], [0, 0, 1, 1], [], []>} : vector<256x24xbf16>, vector<24x128xbf16>, vector<256x128xf32> -> vector<256x128xf32>
    %18 = arith.addf %12, %17 : vector<256x128xf32>
    %c0_16 = arith.constant 0 : index
    %c48 = arith.constant 48 : index
    %c0_17 = arith.constant 0 : index
    %19 = vector.load %arg1[%c0_16, %c48, %c0_17] : memref<1x352x24xbf16, #tpu.memory_space<vmem>>, vector<1x256x24xbf16>
    %20 = vector.shape_cast %19 : vector<1x256x24xbf16> to vector<256x24xbf16>
    %c3 = arith.constant 3 : index
    %c0_18 = arith.constant 0 : index
    %c0_19 = arith.constant 0 : index
    %21 = vector.load %arg2[%c3, %c0_18, %c0_19] : memref<7x24x128xbf16, #tpu.memory_space<vmem>>, vector<1x24x128xbf16>
    %22 = vector.shape_cast %21 : vector<1x24x128xbf16> to vector<24x128xbf16>
    %cst_20 = arith.constant dense<0.000000e+00> : vector<256x128xf32>
    %23 = tpu.matmul %20, %22, %cst_20 {dimension_numbers = #tpu.dot_dimension_numbers<[1], [0], [0], [1], [0, 0, 1, 1], [], []>} : vector<256x24xbf16>, vector<24x128xbf16>, vector<256x128xf32> -> vector<256x128xf32>
    %24 = arith.addf %18, %23 : vector<256x128xf32>
    %c0_21 = arith.constant 0 : index
    %c64 = arith.constant 64 : index
    %c0_22 = arith.constant 0 : index
    %25 = vector.load %arg1[%c0_21, %c64, %c0_22] : memref<1x352x24xbf16, #tpu.memory_space<vmem>>, vector<1x256x24xbf16>
    %26 = vector.shape_cast %25 : vector<1x256x24xbf16> to vector<256x24xbf16>
    %c4 = arith.constant 4 : index
    %c0_23 = arith.constant 0 : index
    %c0_24 = arith.constant 0 : index
    %27 = vector.load %arg2[%c4, %c0_23, %c0_24] : memref<7x24x128xbf16, #tpu.memory_space<vmem>>, vector<1x24x128xbf16>
    %28 = vector.shape_cast %27 : vector<1x24x128xbf16> to vector<24x128xbf16>
    %cst_25 = arith.constant dense<0.000000e+00> : vector<256x128xf32>
    %29 = tpu.matmul %26, %28, %cst_25 {dimension_numbers = #tpu.dot_dimension_numbers<[1], [0], [0], [1], [0, 0, 1, 1], [], []>} : vector<256x24xbf16>, vector<24x128xbf16>, vector<256x128xf32> -> vector<256x128xf32>
    %30 = arith.addf %24, %29 : vector<256x128xf32>
    %c0_26 = arith.constant 0 : index
    %c80 = arith.constant 80 : index
    %c0_27 = arith.constant 0 : index
    %31 = vector.load %arg1[%c0_26, %c80, %c0_27] : memref<1x352x24xbf16, #tpu.memory_space<vmem>>, vector<1x256x24xbf16>
    %32 = vector.shape_cast %31 : vector<1x256x24xbf16> to vector<256x24xbf16>
    %c5 = arith.constant 5 : index
    %c0_28 = arith.constant 0 : index
    %c0_29 = arith.constant 0 : index
    %33 = vector.load %arg2[%c5, %c0_28, %c0_29] : memref<7x24x128xbf16, #tpu.memory_space<vmem>>, vector<1x24x128xbf16>
    %34 = vector.shape_cast %33 : vector<1x24x128xbf16> to vector<24x128xbf16>
    %cst_30 = arith.constant dense<0.000000e+00> : vector<256x128xf32>
    %35 = tpu.matmul %32, %34, %cst_30 {dimension_numbers = #tpu.dot_dimension_numbers<[1], [0], [0], [1], [0, 0, 1, 1], [], []>} : vector<256x24xbf16>, vector<24x128xbf16>, vector<256x128xf32> -> vector<256x128xf32>
    %36 = arith.addf %30, %35 : vector<256x128xf32>
    %c0_31 = arith.constant 0 : index
    %c96 = arith.constant 96 : index
    %c0_32 = arith.constant 0 : index
    %37 = vector.load %arg1[%c0_31, %c96, %c0_32] : memref<1x352x24xbf16, #tpu.memory_space<vmem>>, vector<1x256x24xbf16>
    %38 = vector.shape_cast %37 : vector<1x256x24xbf16> to vector<256x24xbf16>
    %c6 = arith.constant 6 : index
    %c0_33 = arith.constant 0 : index
    %c0_34 = arith.constant 0 : index
    %39 = vector.load %arg2[%c6, %c0_33, %c0_34] : memref<7x24x128xbf16, #tpu.memory_space<vmem>>, vector<1x24x128xbf16>
    %40 = vector.shape_cast %39 : vector<1x24x128xbf16> to vector<24x128xbf16>
    %cst_35 = arith.constant dense<0.000000e+00> : vector<256x128xf32>
    %41 = tpu.matmul %38, %40, %cst_35 {dimension_numbers = #tpu.dot_dimension_numbers<[1], [0], [0], [1], [0, 0, 1, 1], [], []>} : vector<256x24xbf16>, vector<24x128xbf16>, vector<256x128xf32> -> vector<256x128xf32>
    %42 = arith.addf %36, %41 : vector<256x128xf32>
    %c0_36 = arith.constant 0 : index
    %c0_37 = arith.constant 0 : index
    %43 = vector.load %arg3[%c0_36, %c0_37] : memref<1x128xf32, #tpu.memory_space<vmem>>, vector<1x128xf32>
    %44 = vector.broadcast %43 : vector<1x128xf32> to vector<256x128xf32>
    %45 = arith.addf %42, %44 : vector<256x128xf32>
    %cst_38 = arith.constant 0.000000e+00 : f32
    %46 = vector.broadcast %cst_38 : f32 to vector<256x128xf32>
    %47 = arith.maximumf %45, %46 : vector<256x128xf32>
    %48 = arith.truncf %47 : vector<256x128xf32> to vector<256x128xbf16>
    %c0_39 = arith.constant 0 : index
    %c0_40 = arith.constant 0 : index
    %c0_41 = arith.constant 0 : index
    %49 = vector.load %arg4[%c0_39, %c0_40, %c0_41] : memref<1x256x128xbf16, #tpu.memory_space<vmem>>, vector<1x256x128xbf16>
    %50 = vector.shape_cast %49 : vector<1x256x128xbf16> to vector<256x128xbf16>
    %51 = vector.shape_cast %48 : vector<256x128xbf16> to vector<1x256x128xbf16>
    tpu.vector_store %arg4[%c0_39, %c0_40, %c0_41], %51 {strides = array<i32>} : memref<1x256x128xbf16, #tpu.memory_space<vmem>>, vector<1x256x128xbf16>,
    return
  }
  func.func @transform_0(%arg0: i32) -> (i32, i32, i32) {
    %c0_i32 = arith.constant 0 : i32
    %c0_i32_0 = arith.constant 0 : i32
    %c0_i32_1 = arith.constant 0 : i32
    return %arg0, %c0_i32, %c0_i32_0 : i32, i32, i32
  }
  func.func @transform_1(%arg0: i32) -> (i32, i32, i32) {
    %c0_i32 = arith.constant 0 : i32
    %c0_i32_0 = arith.constant 0 : i32
    %c0_i32_1 = arith.constant 0 : i32
    %c0_i32_2 = arith.constant 0 : i32
    return %c0_i32, %c0_i32_0, %c0_i32_1 : i32, i32, i32
  }
  func.func @transform_2(%arg0: i32) -> (i32, i32) {
    %c0_i32 = arith.constant 0 : i32
    %c0_i32_0 = arith.constant 0 : i32
    %c0_i32_1 = arith.constant 0 : i32
    return %c0_i32, %c0_i32_0 : i32, i32
  }
  func.func @transform_3(%arg0: i32) -> (i32, i32, i32) {
    %c0_i32 = arith.constant 0 : i32
    %c0_i32_0 = arith.constant 0 : i32
    %c0_i32_1 = arith.constant 0 : i32
    return %arg0, %c0_i32, %c0_i32_0 : i32, i32, i32
  }
}

module attributes {stable_mosaic.version = 11 : i64} {
  func.func @conv_bn_relu_kernel(%arg0: i32, %arg1: memref<1x96x160xbf16, #tpu.memory_space<vmem>>, %arg2: memref<5x160x128xbf16, #tpu.memory_space<vmem>>, %arg3: memref<1x128xf32, #tpu.memory_space<vmem>>, %arg4: memref<1x64x128xbf16, #tpu.memory_space<vmem>>) attributes {dimension_semantics = [#tpu.dimension_semantics<parallel>], iteration_bounds = array<i64: 2>, scalar_prefetch = 0 : i64, scratch_operands = 0 : i64, tpu.core_type = #tpu.core_type<tc>, window_params = [{transform_indices = @transform_0, window_bounds = array<i64: 1, 96, 160>}, {pipeline_mode = #tpu.pipeline_mode<synchronous>, transform_indices = @transform_1, window_bounds = array<i64: 5, 160, 128>}, {pipeline_mode = #tpu.pipeline_mode<synchronous>, transform_indices = @transform_2, window_bounds = array<i64: 1, 128>}, {transform_indices = @transform_3, window_bounds = array<i64: 1, 64, 128>}]} {
    %cst = arith.constant 0.000000e+00 : f32
    %0 = vector.broadcast %cst : f32 to vector<64x128xf32>
    %c0 = arith.constant 0 : index
    %c0_0 = arith.constant 0 : index
    %c0_1 = arith.constant 0 : index
    %1 = vector.load %arg1[%c0, %c0_0, %c0_1] : memref<1x96x160xbf16, #tpu.memory_space<vmem>>, vector<1x64x160xbf16>
    %2 = vector.shape_cast %1 : vector<1x64x160xbf16> to vector<64x160xbf16>
    %c0_2 = arith.constant 0 : index
    %c0_3 = arith.constant 0 : index
    %c0_4 = arith.constant 0 : index
    %3 = vector.load %arg2[%c0_2, %c0_3, %c0_4] : memref<5x160x128xbf16, #tpu.memory_space<vmem>>, vector<1x160x128xbf16>
    %4 = vector.shape_cast %3 : vector<1x160x128xbf16> to vector<160x128xbf16>
    %cst_5 = arith.constant dense<0.000000e+00> : vector<64x128xf32>
    %5 = tpu.matmul %2, %4, %cst_5 {dimension_numbers = #tpu.dot_dimension_numbers<[1], [0], [0], [1], [0, 0, 1, 1], [], []>} : vector<64x160xbf16>, vector<160x128xbf16>, vector<64x128xf32> -> vector<64x128xf32>
    %6 = arith.addf %0, %5 : vector<64x128xf32>
    %c0_6 = arith.constant 0 : index
    %c8 = arith.constant 8 : index
    %c0_7 = arith.constant 0 : index
    %7 = vector.load %arg1[%c0_6, %c8, %c0_7] : memref<1x96x160xbf16, #tpu.memory_space<vmem>>, vector<1x64x160xbf16>
    %8 = vector.shape_cast %7 : vector<1x64x160xbf16> to vector<64x160xbf16>
    %c1 = arith.constant 1 : index
    %c0_8 = arith.constant 0 : index
    %c0_9 = arith.constant 0 : index
    %9 = vector.load %arg2[%c1, %c0_8, %c0_9] : memref<5x160x128xbf16, #tpu.memory_space<vmem>>, vector<1x160x128xbf16>
    %10 = vector.shape_cast %9 : vector<1x160x128xbf16> to vector<160x128xbf16>
    %cst_10 = arith.constant dense<0.000000e+00> : vector<64x128xf32>
    %11 = tpu.matmul %8, %10, %cst_10 {dimension_numbers = #tpu.dot_dimension_numbers<[1], [0], [0], [1], [0, 0, 1, 1], [], []>} : vector<64x160xbf16>, vector<160x128xbf16>, vector<64x128xf32> -> vector<64x128xf32>
    %12 = arith.addf %6, %11 : vector<64x128xf32>
    %c0_11 = arith.constant 0 : index
    %c16 = arith.constant 16 : index
    %c0_12 = arith.constant 0 : index
    %13 = vector.load %arg1[%c0_11, %c16, %c0_12] : memref<1x96x160xbf16, #tpu.memory_space<vmem>>, vector<1x64x160xbf16>
    %14 = vector.shape_cast %13 : vector<1x64x160xbf16> to vector<64x160xbf16>
    %c2 = arith.constant 2 : index
    %c0_13 = arith.constant 0 : index
    %c0_14 = arith.constant 0 : index
    %15 = vector.load %arg2[%c2, %c0_13, %c0_14] : memref<5x160x128xbf16, #tpu.memory_space<vmem>>, vector<1x160x128xbf16>
    %16 = vector.shape_cast %15 : vector<1x160x128xbf16> to vector<160x128xbf16>
    %cst_15 = arith.constant dense<0.000000e+00> : vector<64x128xf32>
    %17 = tpu.matmul %14, %16, %cst_15 {dimension_numbers = #tpu.dot_dimension_numbers<[1], [0], [0], [1], [0, 0, 1, 1], [], []>} : vector<64x160xbf16>, vector<160x128xbf16>, vector<64x128xf32> -> vector<64x128xf32>
    %18 = arith.addf %12, %17 : vector<64x128xf32>
    %c0_16 = arith.constant 0 : index
    %c24 = arith.constant 24 : index
    %c0_17 = arith.constant 0 : index
    %19 = vector.load %arg1[%c0_16, %c24, %c0_17] : memref<1x96x160xbf16, #tpu.memory_space<vmem>>, vector<1x64x160xbf16>
    %20 = vector.shape_cast %19 : vector<1x64x160xbf16> to vector<64x160xbf16>
    %c3 = arith.constant 3 : index
    %c0_18 = arith.constant 0 : index
    %c0_19 = arith.constant 0 : index
    %21 = vector.load %arg2[%c3, %c0_18, %c0_19] : memref<5x160x128xbf16, #tpu.memory_space<vmem>>, vector<1x160x128xbf16>
    %22 = vector.shape_cast %21 : vector<1x160x128xbf16> to vector<160x128xbf16>
    %cst_20 = arith.constant dense<0.000000e+00> : vector<64x128xf32>
    %23 = tpu.matmul %20, %22, %cst_20 {dimension_numbers = #tpu.dot_dimension_numbers<[1], [0], [0], [1], [0, 0, 1, 1], [], []>} : vector<64x160xbf16>, vector<160x128xbf16>, vector<64x128xf32> -> vector<64x128xf32>
    %24 = arith.addf %18, %23 : vector<64x128xf32>
    %c0_21 = arith.constant 0 : index
    %c32 = arith.constant 32 : index
    %c0_22 = arith.constant 0 : index
    %25 = vector.load %arg1[%c0_21, %c32, %c0_22] : memref<1x96x160xbf16, #tpu.memory_space<vmem>>, vector<1x64x160xbf16>
    %26 = vector.shape_cast %25 : vector<1x64x160xbf16> to vector<64x160xbf16>
    %c4 = arith.constant 4 : index
    %c0_23 = arith.constant 0 : index
    %c0_24 = arith.constant 0 : index
    %27 = vector.load %arg2[%c4, %c0_23, %c0_24] : memref<5x160x128xbf16, #tpu.memory_space<vmem>>, vector<1x160x128xbf16>
    %28 = vector.shape_cast %27 : vector<1x160x128xbf16> to vector<160x128xbf16>
    %cst_25 = arith.constant dense<0.000000e+00> : vector<64x128xf32>
    %29 = tpu.matmul %26, %28, %cst_25 {dimension_numbers = #tpu.dot_dimension_numbers<[1], [0], [0], [1], [0, 0, 1, 1], [], []>} : vector<64x160xbf16>, vector<160x128xbf16>, vector<64x128xf32> -> vector<64x128xf32>
    %30 = arith.addf %24, %29 : vector<64x128xf32>
    %c0_26 = arith.constant 0 : index
    %c0_27 = arith.constant 0 : index
    %31 = vector.load %arg3[%c0_26, %c0_27] : memref<1x128xf32, #tpu.memory_space<vmem>>, vector<1x128xf32>
    %32 = vector.broadcast %31 : vector<1x128xf32> to vector<64x128xf32>
    %33 = arith.addf %30, %32 : vector<64x128xf32>
    %cst_28 = arith.constant 0.000000e+00 : f32
    %34 = vector.broadcast %cst_28 : f32 to vector<64x128xf32>
    %35 = arith.maximumf %33, %34 : vector<64x128xf32>
    %36 = arith.truncf %35 : vector<64x128xf32> to vector<64x128xbf16>
    %c0_29 = arith.constant 0 : index
    %c0_30 = arith.constant 0 : index
    %c0_31 = arith.constant 0 : index
    %37 = vector.load %arg4[%c0_29, %c0_30, %c0_31] : memref<1x64x128xbf16, #tpu.memory_space<vmem>>, vector<1x64x128xbf16>
    %38 = vector.shape_cast %37 : vector<1x64x128xbf16> to vector<64x128xbf16>
    %39 = vector.shape_cast %36 : vector<64x128xbf16> to vector<1x64x128xbf16>
    tpu.vector_store %arg4[%c0_29, %c0_30, %c0_31], %39 {strides = array<i32>} : memref<1x64x128xbf16, #tpu.memory_space<vmem>>, vector<1x64x128xbf16>,
    return
  }
  func.func @transform_0(%arg0: i32) -> (i32, i32, i32) {
    %c0_i32 = arith.constant 0 : i32
    %c0_i32_0 = arith.constant 0 : i32
    %c0_i32_1 = arith.constant 0 : i32
    return %arg0, %c0_i32, %c0_i32_0 : i32, i32, i32
  }
  func.func @transform_1(%arg0: i32) -> (i32, i32, i32) {
    %c0_i32 = arith.constant 0 : i32
    %c0_i32_0 = arith.constant 0 : i32
    %c0_i32_1 = arith.constant 0 : i32
    %c0_i32_2 = arith.constant 0 : i32
    return %c0_i32, %c0_i32_0, %c0_i32_1 : i32, i32, i32
  }
  func.func @transform_2(%arg0: i32) -> (i32, i32) {
    %c0_i32 = arith.constant 0 : i32
    %c0_i32_0 = arith.constant 0 : i32
    %c0_i32_1 = arith.constant 0 : i32
    return %c0_i32, %c0_i32_0 : i32, i32
  }
  func.func @transform_3(%arg0: i32) -> (i32, i32, i32) {
    %c0_i32 = arith.constant 0 : i32
    %c0_i32_0 = arith.constant 0 : i32
    %c0_i32_1 = arith.constant 0 : i32
    return %arg0, %c0_i32, %c0_i32_0 : i32, i32, i32
  }
}

module attributes {stable_mosaic.version = 11 : i64} {
  func.func @conv_bn_relu_kernel(%arg0: i32, %arg1: memref<1x48x192xbf16, #tpu.memory_space<vmem>>, %arg2: memref<3x192x128xbf16, #tpu.memory_space<vmem>>, %arg3: memref<1x128xf32, #tpu.memory_space<vmem>>, %arg4: memref<1x32x128xbf16, #tpu.memory_space<vmem>>) attributes {dimension_semantics = [#tpu.dimension_semantics<parallel>], iteration_bounds = array<i64: 2>, scalar_prefetch = 0 : i64, scratch_operands = 0 : i64, tpu.core_type = #tpu.core_type<tc>, window_params = [{transform_indices = @transform_0, window_bounds = array<i64: 1, 48, 192>}, {pipeline_mode = #tpu.pipeline_mode<synchronous>, transform_indices = @transform_1, window_bounds = array<i64: 3, 192, 128>}, {pipeline_mode = #tpu.pipeline_mode<synchronous>, transform_indices = @transform_2, window_bounds = array<i64: 1, 128>}, {transform_indices = @transform_3, window_bounds = array<i64: 1, 32, 128>}]} {
    %cst = arith.constant 0.000000e+00 : f32
    %0 = vector.broadcast %cst : f32 to vector<32x128xf32>
    %c0 = arith.constant 0 : index
    %c0_0 = arith.constant 0 : index
    %c0_1 = arith.constant 0 : index
    %1 = vector.load %arg1[%c0, %c0_0, %c0_1] : memref<1x48x192xbf16, #tpu.memory_space<vmem>>, vector<1x32x192xbf16>
    %2 = vector.shape_cast %1 : vector<1x32x192xbf16> to vector<32x192xbf16>
    %c0_2 = arith.constant 0 : index
    %c0_3 = arith.constant 0 : index
    %c0_4 = arith.constant 0 : index
    %3 = vector.load %arg2[%c0_2, %c0_3, %c0_4] : memref<3x192x128xbf16, #tpu.memory_space<vmem>>, vector<1x192x128xbf16>
    %4 = vector.shape_cast %3 : vector<1x192x128xbf16> to vector<192x128xbf16>
    %cst_5 = arith.constant dense<0.000000e+00> : vector<32x128xf32>
    %5 = tpu.matmul %2, %4, %cst_5 {dimension_numbers = #tpu.dot_dimension_numbers<[1], [0], [0], [1], [0, 0, 1, 1], [], []>} : vector<32x192xbf16>, vector<192x128xbf16>, vector<32x128xf32> -> vector<32x128xf32>
    %6 = arith.addf %0, %5 : vector<32x128xf32>
    %c0_6 = arith.constant 0 : index
    %c8 = arith.constant 8 : index
    %c0_7 = arith.constant 0 : index
    %7 = vector.load %arg1[%c0_6, %c8, %c0_7] : memref<1x48x192xbf16, #tpu.memory_space<vmem>>, vector<1x32x192xbf16>
    %8 = vector.shape_cast %7 : vector<1x32x192xbf16> to vector<32x192xbf16>
    %c1 = arith.constant 1 : index
    %c0_8 = arith.constant 0 : index
    %c0_9 = arith.constant 0 : index
    %9 = vector.load %arg2[%c1, %c0_8, %c0_9] : memref<3x192x128xbf16, #tpu.memory_space<vmem>>, vector<1x192x128xbf16>
    %10 = vector.shape_cast %9 : vector<1x192x128xbf16> to vector<192x128xbf16>
    %cst_10 = arith.constant dense<0.000000e+00> : vector<32x128xf32>
    %11 = tpu.matmul %8, %10, %cst_10 {dimension_numbers = #tpu.dot_dimension_numbers<[1], [0], [0], [1], [0, 0, 1, 1], [], []>} : vector<32x192xbf16>, vector<192x128xbf16>, vector<32x128xf32> -> vector<32x128xf32>
    %12 = arith.addf %6, %11 : vector<32x128xf32>
    %c0_11 = arith.constant 0 : index
    %c16 = arith.constant 16 : index
    %c0_12 = arith.constant 0 : index
    %13 = vector.load %arg1[%c0_11, %c16, %c0_12] : memref<1x48x192xbf16, #tpu.memory_space<vmem>>, vector<1x32x192xbf16>
    %14 = vector.shape_cast %13 : vector<1x32x192xbf16> to vector<32x192xbf16>
    %c2 = arith.constant 2 : index
    %c0_13 = arith.constant 0 : index
    %c0_14 = arith.constant 0 : index
    %15 = vector.load %arg2[%c2, %c0_13, %c0_14] : memref<3x192x128xbf16, #tpu.memory_space<vmem>>, vector<1x192x128xbf16>
    %16 = vector.shape_cast %15 : vector<1x192x128xbf16> to vector<192x128xbf16>
    %cst_15 = arith.constant dense<0.000000e+00> : vector<32x128xf32>
    %17 = tpu.matmul %14, %16, %cst_15 {dimension_numbers = #tpu.dot_dimension_numbers<[1], [0], [0], [1], [0, 0, 1, 1], [], []>} : vector<32x192xbf16>, vector<192x128xbf16>, vector<32x128xf32> -> vector<32x128xf32>
    %18 = arith.addf %12, %17 : vector<32x128xf32>
    %c0_16 = arith.constant 0 : index
    %c0_17 = arith.constant 0 : index
    %19 = vector.load %arg3[%c0_16, %c0_17] : memref<1x128xf32, #tpu.memory_space<vmem>>, vector<1x128xf32>
    %20 = vector.broadcast %19 : vector<1x128xf32> to vector<32x128xf32>
    %21 = arith.addf %18, %20 : vector<32x128xf32>
    %cst_18 = arith.constant 0.000000e+00 : f32
    %22 = vector.broadcast %cst_18 : f32 to vector<32x128xf32>
    %23 = arith.maximumf %21, %22 : vector<32x128xf32>
    %24 = arith.truncf %23 : vector<32x128xf32> to vector<32x128xbf16>
    %c0_19 = arith.constant 0 : index
    %c0_20 = arith.constant 0 : index
    %c0_21 = arith.constant 0 : index
    %25 = vector.load %arg4[%c0_19, %c0_20, %c0_21] : memref<1x32x128xbf16, #tpu.memory_space<vmem>>, vector<1x32x128xbf16>
    %26 = vector.shape_cast %25 : vector<1x32x128xbf16> to vector<32x128xbf16>
    %27 = vector.shape_cast %24 : vector<32x128xbf16> to vector<1x32x128xbf16>
    tpu.vector_store %arg4[%c0_19, %c0_20, %c0_21], %27 {strides = array<i32>} : memref<1x32x128xbf16, #tpu.memory_space<vmem>>, vector<1x32x128xbf16>,
    return
  }
  func.func @transform_0(%arg0: i32) -> (i32, i32, i32) {
    %c0_i32 = arith.constant 0 : i32
    %c0_i32_0 = arith.constant 0 : i32
    %c0_i32_1 = arith.constant 0 : i32
    return %arg0, %c0_i32, %c0_i32_0 : i32, i32, i32
  }
  func.func @transform_1(%arg0: i32) -> (i32, i32, i32) {
    %c0_i32 = arith.constant 0 : i32
    %c0_i32_0 = arith.constant 0 : i32
    %c0_i32_1 = arith.constant 0 : i32
    %c0_i32_2 = arith.constant 0 : i32
    return %c0_i32, %c0_i32_0, %c0_i32_1 : i32, i32, i32
  }
  func.func @transform_2(%arg0: i32) -> (i32, i32) {
    %c0_i32 = arith.constant 0 : i32
    %c0_i32_0 = arith.constant 0 : i32
    %c0_i32_1 = arith.constant 0 : i32
    return %c0_i32, %c0_i32_0 : i32, i32
  }
  func.func @transform_3(%arg0: i32) -> (i32, i32, i32) {
    %c0_i32 = arith.constant 0 : i32
    %c0_i32_0 = arith.constant 0 : i32
    %c0_i32_1 = arith.constant 0 : i32
    return %arg0, %c0_i32, %c0_i32_0 : i32, i32, i32
  }
}

module attributes {stable_mosaic.version = 11 : i64} {
  func.func @mlp_head_kernel(%arg0: i32, %arg1: memref<16x256xbf16, #tpu.memory_space<vmem>>, %arg2: memref<256x256xbf16, #tpu.memory_space<vmem>>, %arg3: memref<1x256xf32, #tpu.memory_space<vmem>>, %arg4: memref<256x128xbf16, #tpu.memory_space<vmem>>, %arg5: memref<1x128xf32, #tpu.memory_space<vmem>>, %arg6: memref<128x128xbf16, #tpu.memory_space<vmem>>, %arg7: memref<1x128xf32, #tpu.memory_space<vmem>>, %arg8: memref<16x128xf32, #tpu.memory_space<vmem>>, %arg9: memref<16x256xf32, #tpu.memory_space<vmem>>) attributes {dimension_semantics = [#tpu.dimension_semantics<arbitrary>], iteration_bounds = array<i64: 2>, scalar_prefetch = 0 : i64, scratch_operands = 1 : i64, tpu.core_type = #tpu.core_type<tc>, window_params = [{transform_indices = @transform_0, window_bounds = array<i64: 16, 256>}, {transform_indices = @transform_1, window_bounds = array<i64: 256, 256>}, {pipeline_mode = #tpu.pipeline_mode<synchronous>, transform_indices = @transform_2, window_bounds = array<i64: 1, 256>}, {pipeline_mode = #tpu.pipeline_mode<synchronous>, transform_indices = @transform_3, window_bounds = array<i64: 256, 128>}, {pipeline_mode = #tpu.pipeline_mode<synchronous>, transform_indices = @transform_4, window_bounds = array<i64: 1, 128>}, {pipeline_mode = #tpu.pipeline_mode<synchronous>, transform_indices = @transform_5, window_bounds = array<i64: 128, 128>}, {pipeline_mode = #tpu.pipeline_mode<synchronous>, transform_indices = @transform_6, window_bounds = array<i64: 1, 128>}, {pipeline_mode = #tpu.pipeline_mode<synchronous>, transform_indices = @transform_7, window_bounds = array<i64: 16, 128>}]} {
    %c0_i32 = arith.constant 0 : i32
    %0 = arith.cmpi eq, %arg0, %c0_i32 : i32
    %1 = arith.extui %0 : i1 to i32
    %c0_i32_0 = arith.constant 0 : i32
    %2 = arith.cmpi ne, %1, %c0_i32_0 : i32
    scf.if %2 {
      %cst_9 = arith.constant 0.000000e+00 : f32
      %12 = vector.broadcast %cst_9 : f32 to vector<16x256xf32>
      %c0_10 = arith.constant 0 : index
      %c0_11 = arith.constant 0 : index
      %13 = vector.load %arg9[%c0_10, %c0_11] : memref<16x256xf32, #tpu.memory_space<vmem>>, vector<16x256xf32>
      tpu.vector_store %arg9[%c0_10, %c0_11], %12 {strides = array<i32>} : memref<16x256xf32, #tpu.memory_space<vmem>>, vector<16x256xf32>,
    } else {
    }
    %c0 = arith.constant 0 : index
    %c0_1 = arith.constant 0 : index
    %3 = vector.load %arg9[%c0, %c0_1] : memref<16x256xf32, #tpu.memory_space<vmem>>, vector<16x256xf32>
    %c0_2 = arith.constant 0 : index
    %c0_3 = arith.constant 0 : index
    %4 = vector.load %arg1[%c0_2, %c0_3] : memref<16x256xbf16, #tpu.memory_space<vmem>>, vector<16x256xbf16>
    %c0_4 = arith.constant 0 : index
    %c0_5 = arith.constant 0 : index
    %5 = vector.load %arg2[%c0_4, %c0_5] : memref<256x256xbf16, #tpu.memory_space<vmem>>, vector<256x256xbf16>
    %cst = arith.constant dense<0.000000e+00> : vector<16x256xf32>
    %6 = tpu.matmul %4, %5, %cst {dimension_numbers = #tpu.dot_dimension_numbers<[1], [0], [0], [1], [0, 0, 1, 1], [], []>} : vector<16x256xbf16>, vector<256x256xbf16>, vector<16x256xf32> -> vector<16x256xf32>
    %7 = arith.addf %3, %6 : vector<16x256xf32>
    %c0_6 = arith.constant 0 : index
    %c0_7 = arith.constant 0 : index
    %8 = vector.load %arg9[%c0_6, %c0_7] : memref<16x256xf32, #tpu.memory_space<vmem>>, vector<16x256xf32>
    tpu.vector_store %arg9[%c0_6, %c0_7], %7 {strides = array<i32>} : memref<16x256xf32, #tpu.memory_space<vmem>>, vector<16x256xf32>,
    %c1_i32 = arith.constant 1 : i32
    %9 = arith.cmpi eq, %arg0, %c1_i32 : i32
    %10 = arith.extui %9 : i1 to i32
    %c0_i32_8 = arith.constant 0 : i32
    %11 = arith.cmpi ne, %10, %c0_i32_8 : i32
    scf.if %11 {
      %c0_9 = arith.constant 0 : index
      %c0_10 = arith.constant 0 : index
      %12 = vector.load %arg9[%c0_9, %c0_10] : memref<16x256xf32, #tpu.memory_space<vmem>>, vector<16x256xf32>
      %c0_11 = arith.constant 0 : index
      %c0_12 = arith.constant 0 : index
      %13 = vector.load %arg3[%c0_11, %c0_12] : memref<1x256xf32, #tpu.memory_space<vmem>>, vector<1x256xf32>
      %14 = vector.broadcast %13 : vector<1x256xf32> to vector<16x256xf32>
      %15 = arith.addf %12, %14 : vector<16x256xf32>
      %cst_13 = arith.constant 0.000000e+00 : f32
      %16 = vector.broadcast %cst_13 : f32 to vector<16x256xf32>
      %17 = arith.maximumf %15, %16 : vector<16x256xf32>
      %18 = arith.truncf %17 : vector<16x256xf32> to vector<16x256xbf16>
      %c0_14 = arith.constant 0 : index
      %c0_15 = arith.constant 0 : index
      %19 = vector.load %arg4[%c0_14, %c0_15] : memref<256x128xbf16, #tpu.memory_space<vmem>>, vector<256x128xbf16>
      %cst_16 = arith.constant dense<0.000000e+00> : vector<16x128xf32>
      %20 = tpu.matmul %18, %19, %cst_16 {dimension_numbers = #tpu.dot_dimension_numbers<[1], [0], [0], [1], [0, 0, 1, 1], [], []>} : vector<16x256xbf16>, vector<256x128xbf16>, vector<16x128xf32> -> vector<16x128xf32>
      %c0_17 = arith.constant 0 : index
      %c0_18 = arith.constant 0 : index
      %21 = vector.load %arg5[%c0_17, %c0_18] : memref<1x128xf32, #tpu.memory_space<vmem>>, vector<1x128xf32>
      %22 = vector.broadcast %21 : vector<1x128xf32> to vector<16x128xf32>
      %23 = arith.addf %20, %22 : vector<16x128xf32>
      %cst_19 = arith.constant 0.000000e+00 : f32
      %24 = vector.broadcast %cst_19 : f32 to vector<16x128xf32>
      %25 = arith.maximumf %23, %24 : vector<16x128xf32>
      %26 = arith.truncf %25 : vector<16x128xf32> to vector<16x128xbf16>
      %c0_20 = arith.constant 0 : index
      %c0_21 = arith.constant 0 : index
      %27 = vector.load %arg6[%c0_20, %c0_21] : memref<128x128xbf16, #tpu.memory_space<vmem>>, vector<128x128xbf16>
      %cst_22 = arith.constant dense<0.000000e+00> : vector<16x128xf32>
      %28 = tpu.matmul %26, %27, %cst_22 {dimension_numbers = #tpu.dot_dimension_numbers<[1], [0], [0], [1], [0, 0, 1, 1], [], []>} : vector<16x128xbf16>, vector<128x128xbf16>, vector<16x128xf32> -> vector<16x128xf32>
      %c0_23 = arith.constant 0 : index
      %c0_24 = arith.constant 0 : index
      %29 = vector.load %arg7[%c0_23, %c0_24] : memref<1x128xf32, #tpu.memory_space<vmem>>, vector<1x128xf32>
      %30 = vector.broadcast %29 : vector<1x128xf32> to vector<16x128xf32>
      %31 = arith.addf %28, %30 : vector<16x128xf32>
      %c0_25 = arith.constant 0 : index
      %c0_26 = arith.constant 0 : index
      %32 = vector.load %arg8[%c0_25, %c0_26] : memref<16x128xf32, #tpu.memory_space<vmem>>, vector<16x128xf32>
      tpu.vector_store %arg8[%c0_25, %c0_26], %31 {strides = array<i32>} : memref<16x128xf32, #tpu.memory_space<vmem>>, vector<16x128xf32>,
    } else {
    }
    return
  }
  func.func @transform_0(%arg0: i32) -> (i32, i32) {
    %c0_i32 = arith.constant 0 : i32
    %c0_i32_0 = arith.constant 0 : i32
    return %c0_i32, %arg0 : i32, i32
  }
  func.func @transform_1(%arg0: i32) -> (i32, i32) {
    %c0_i32 = arith.constant 0 : i32
    %c0_i32_0 = arith.constant 0 : i32
    return %arg0, %c0_i32 : i32, i32
  }
  func.func @transform_2(%arg0: i32) -> (i32, i32) {
    %c0_i32 = arith.constant 0 : i32
    %c0_i32_0 = arith.constant 0 : i32
    %c0_i32_1 = arith.constant 0 : i32
    return %c0_i32, %c0_i32_0 : i32, i32
  }
  func.func @transform_3(%arg0: i32) -> (i32, i32) {
    %c0_i32 = arith.constant 0 : i32
    %c0_i32_0 = arith.constant 0 : i32
    %c0_i32_1 = arith.constant 0 : i32
    return %c0_i32, %c0_i32_0 : i32, i32
  }
  func.func @transform_4(%arg0: i32) -> (i32, i32) {
    %c0_i32 = arith.constant 0 : i32
    %c0_i32_0 = arith.constant 0 : i32
    %c0_i32_1 = arith.constant 0 : i32
    return %c0_i32, %c0_i32_0 : i32, i32
  }
  func.func @transform_5(%arg0: i32) -> (i32, i32) {
    %c0_i32 = arith.constant 0 : i32
    %c0_i32_0 = arith.constant 0 : i32
    %c0_i32_1 = arith.constant 0 : i32
    return %c0_i32, %c0_i32_0 : i32, i32
  }
  func.func @transform_6(%arg0: i32) -> (i32, i32) {
    %c0_i32 = arith.constant 0 : i32
    %c0_i32_0 = arith.constant 0 : i32
    %c0_i32_1 = arith.constant 0 : i32
    return %c0_i32, %c0_i32_0 : i32, i32
  }
  func.func @transform_7(%arg0: i32) -> (i32, i32) {
    %c0_i32 = arith.constant 0 : i32
    %c0_i32_0 = arith.constant 0 : i32
    %c0_i32_1 = arith.constant 0 : i32
    return %c0_i32, %c0_i32_0 : i32, i32
  }
}

</mosaic_0001>

<llo_original>
// kernel: net_forward.6
$region0: #{net_forward.6}
  #allocation0 [shape = 'u32[]', space=smem, size = 0x4, offset = 0x4, fixed_abs, tag = 'smem constant byte address 0x4 - core index']
  #allocation1 [shape = 'u32[144,128]{1,0:T(1,128)}', space=vmem, size = 0x12000, scoped, tag = 'internal scratch']
  %s0 = inlined_call_operand.vmem [shape: bf16[2,48,192], index: 0, kind: input, shape index: {}]
  %s1 = inlined_call_operand.vmem [shape: bf16[3,192,128], index: 1, kind: input, shape index: {}]
  %s2 = inlined_call_operand.vmem [shape: f32[1,128], index: 2, kind: input, shape index: {}]
  %s3 = inlined_call_operand.vmem [shape: bf16[2,32,128], index: 3, kind: output, shape index: {}]
  %s4 = sld [smem:[#allocation0]]
  $region45: #{net_forward.6} parent=0
    _
  %s6 = ssub.s32 1, %s4
  %s7 = scalar_select 0, %s6, %s4
  loop: start=0, step=1, limit=4
  $region2: #{net_forward.6} parent=0 // loop_pre_header
    _
  $region3: #{net_forward.6} parent=0 // loop_header
    %s9 = sphi 0, %s13
    %p10 = scmp.ge.s32.totalorder %s9, 4
    %s19 = sphi 0, %s21
    %s22 = sphi 0, %s19
    %s23 = sphi 0, %s22
    %s39 = sphi 0, %s23
    %s43 = sphi 0, %s43
    %s45 = sphi 0, %s43
    %s46 = sphi 0, %s45
    %s60 = sphi 0, %s46
    %s64 = sphi 0, %s64
    %s66 = sphi 0, %s64
    %s67 = sphi 0, %s66
    %s81 = sphi 0, %s67
    %s87 = sphi 0, %s89
    %s90 = sphi 0, %s87
    %s91 = sphi 0, %s90
    %s107 = sphi 0, %s91
  $region4: #{net_forward.6} parent=0 // loop_header_branch
    %12 = sbr.rel (%p10) target = $region8
  $region5: #{net_forward.6} parent=0 // loop_body
    %s14 = ssub.s32 %s9, 1
    %s15 = ssub.s32 %s9, 2
    %s16 = sadd.s32 %s9, 1
    %s17 = ssub.s32 %s9, %s16
    %p18 = scmp.eq.s32.totalorder %s17, 0
    %s20 = sadd.s32 %s19, 1
    %s21 = scalar_select %p18, %s19, %s20
    %p24 = pneg %p18
    %p25 = scmp.eq.s32.totalorder %s9, 1
    %p26 = por %p24, %p25
    %p27 = scmp.ne.s32.totalorder %s19, %s22
    %p28 = scmp.eq.s32.totalorder %s9, 0
    %p29 = por %p27, %p28
    %p30 = scmp.ne.s32.totalorder %s19, %s22
    %p31 = scmp.eq.s32.totalorder %s14, 1
    %p32 = por %p30, %p31
    %p33 = scmp.ne.s32.totalorder %s22, %s23
    %p34 = scmp.eq.s32.totalorder %s14, 0
    %p35 = por %p33, %p34
    %p36 = scmp.ne.s32.totalorder %s22, %s23
    %p37 = scmp.eq.s32.totalorder %s15, 1
    %p38 = por %p36, %p37
    %p40 = scmp.ne.s32.totalorder %s23, %s39
    %p41 = scmp.eq.s32.totalorder %s15, 0
    %p42 = por %p40, %p41
    %s44 = sadd.s32 %s43, 1
    %p47 = scmp.eq.s32.totalorder %s9, 1
    %p48 = scmp.ne.s32.totalorder %s43, %s45
    %p49 = scmp.eq.s32.totalorder %s9, 0
    %p50 = por %p48, %p49
    %p51 = scmp.ne.s32.totalorder %s43, %s45
    %p52 = scmp.eq.s32.totalorder %s14, 1
    %p53 = por %p51, %p52
    %p54 = scmp.ne.s32.totalorder %s45, %s46
    %p55 = scmp.eq.s32.totalorder %s14, 0
    %p56 = por %p54, %p55
    %p57 = scmp.ne.s32.totalorder %s45, %s46
    %p58 = scmp.eq.s32.totalorder %s15, 1
    %p59 = por %p57, %p58
    %p61 = scmp.ne.s32.totalorder %s46, %s60
    %p62 = scmp.eq.s32.totalorder %s15, 0
    %p63 = por %p61, %p62
    %s65 = sadd.s32 %s64, 1
    %p68 = scmp.eq.s32.totalorder %s9, 1
    %p69 = scmp.ne.s32.totalorder %s64, %s66
    %p70 = scmp.eq.s32.totalorder %s9, 0
    %p71 = por %p69, %p70
    %p72 = scmp.ne.s32.totalorder %s64, %s66
    %p73 = scmp.eq.s32.totalorder %s14, 1
    %p74 = por %p72, %p73
    %p75 = scmp.ne.s32.totalorder %s66, %s67
    %p76 = scmp.eq.s32.totalorder %s14, 0
    %p77 = por %p75, %p76
    %p78 = scmp.ne.s32.totalorder %s66, %s67
    %p79 = scmp.eq.s32.totalorder %s15, 1
    %p80 = por %p78, %p79
    %p82 = scmp.ne.s32.totalorder %s67, %s81
    %p83 = scmp.eq.s32.totalorder %s15, 0
    %p84 = por %p82, %p83
    %s85 = ssub.s32 %s9, %s16
    %p86 = scmp.eq.s32.totalorder %s85, 0
    %s88 = sadd.s32 %s87, 1
    %s89 = scalar_select %p86, %s87, %s88
    %p92 = pneg %p86
    %p93 = scmp.eq.s32.totalorder %s9, 1
    %p94 = por %p92, %p93
    %p95 = scmp.ne.s32.totalorder %s87, %s90
    %p96 = scmp.eq.s32.totalorder %s9, 0
    %p97 = por %p95, %p96
    %p98 = scmp.ne.s32.totalorder %s87, %s90
    %p99 = scmp.eq.s32.totalorder %s14, 1
    %p100 = por %p98, %p99
    %p101 = scmp.ne.s32.totalorder %s90, %s91
    %p102 = scmp.eq.s32.totalorder %s14, 0
    %p103 = por %p101, %p102
    %p104 = scmp.ne.s32.totalorder %s90, %s91
    %p105 = scmp.eq.s32.totalorder %s15, 1
    %p106 = por %p104, %p105
    %p108 = scmp.ne.s32.totalorder %s91, %s107
    %p109 = scmp.eq.s32.totalorder %s15, 0
    %p110 = por %p108, %p109
    %p111 = scmp.le.s32.totalorder 1, %s9
    %p112 = scmp.lt.s32.totalorder %s9, 3
    %p113 = pnand %p111, %p112
    %p114 = pneg %p113
    // Predicated region
    $region9: #{net_forward.6} parent=5 // pred_check
      _
    $region10: #{net_forward.6} parent=5 // pred_check_branch
      %116 = sbr.rel (%p113) target = $region12
    $region11: #{net_forward.6} parent=5 // pred_region
      %s117 = ssub.s32 %s9, 1
      // Predicated region
      $region13: #{net_forward.6} parent=11 // pred_check
        %p118 = pneg %p56
      $region14: #{net_forward.6} parent=11 // pred_check_branch
        %120 = sbr.rel (%p118) target = $region16
      $region15: #{net_forward.6} parent=11 // pred_region
        _
      $region16: #{net_forward.6} parent=11 // pred_fallthru
        _
      // Predicated region
      $region17: #{net_forward.6} parent=11 // pred_check
        %p121 = pneg %p77
      $region18: #{net_forward.6} parent=11 // pred_check_branch
        %123 = sbr.rel (%p121) target = $region20
      $region19: #{net_forward.6} parent=11 // pred_region
        _
      $region20: #{net_forward.6} parent=11 // pred_fallthru
        _
    $region12: #{net_forward.6} parent=5 // pred_fallthru
      _
    %p124 = scmp.lt.s32.totalorder %s9, 2
    // Predicated region
    $region21: #{net_forward.6} parent=5 // pred_check
      %p125 = pneg %p124
    $region22: #{net_forward.6} parent=5 // pred_check_branch
      %127 = sbr.rel (%p125) target = $region24
    $region23: #{net_forward.6} parent=5 // pred_region
      // Predicated region
      $region25: #{net_forward.6} parent=23 // pred_check
        %p128 = pneg %p29
      $region26: #{net_forward.6} parent=23 // pred_check_branch
        %130 = sbr.rel (%p128) target = $region28
      $region27: #{net_forward.6} parent=23 // pred_region
        %p131 = scmp.lt.s32.totalorder %s9, 1
        %s132 = scalar_select %p131, %s9, 1
        %s133 = smul.addr %s132, 12
        %s134 = smul.addr %s133, 4
        %s135 = scalar_lea.vmem %s0, %s134
      $region28: #{net_forward.6} parent=23 // pred_fallthru
        _
    $region24: #{net_forward.6} parent=5 // pred_fallthru
      _
    %p136 = scmp.le.s32.totalorder 1, %s9
    %p137 = scmp.lt.s32.totalorder %s9, 3
    %p138 = pnand %p136, %p137
    %p139 = pneg %p138
    // Predicated region
    $region29: #{net_forward.6} parent=5 // pred_check
      _
    $region30: #{net_forward.6} parent=5 // pred_check_branch
      %141 = sbr.rel (%p138) target = $region32
    $region31: #{net_forward.6} parent=5 // pred_region
      %s142 = ssub.s32 %s9, 1
      %p143 = scmp.lt.s32.totalorder %s14, 1
      %s144 = scalar_select %p143, %s14, 1
      %s145 = smul.addr %s144, 12
      %s146 = smul.addr %s145, 4
      %s147 = scalar_lea.vmem %s0, %s146
      %p148 = pneg %p35
      %p149 = pneg %p32
      %p150 = pneg %p56
      %p151 = pneg %p53
      %p152 = pneg %p77
      %p153 = pneg %p74
      %p154 = pneg %p103
      %p155 = pneg %p100
      %p156 = scmp.lt.s32.totalorder %s14, 1
      %s157 = scalar_select %p156, %s14, 1
      %s158 = smul.addr %s157, 4
      %s159 = smul.addr %s158, 4
      %s160 = scalar_lea.vmem %s3, %s159
      %p161 = scmp.lt.s32.totalorder %s14, 1
      %s162 = scalar_select %p161, %s14, 1
      %s163 = smul.addr %s162, 12
      %s164 = smul.addr %s163, 4
      %s165 = scalar_lea.vmem %s0, %s164
      %p166 = scmp.lt.s32.totalorder %s14, 1
      %s167 = scalar_select %p166, %s14, 1
      %s168 = smul.addr %s167, 4
      %s169 = smul.addr %s168, 4
      %s170 = scalar_lea.vmem %s3, %s169
      %v172 = vld [vmem:[%s165] sm:$0xff]
      %v173 = vld [vmem:[%s165 + $0x8] sm:$0xff]
      %v174 = vld [vmem:[%s165 + $0x10] sm:$0xff]
      %v175 = vld [vmem:[%s165 + $0x18] sm:$0xff]
      %v176 = vld [vmem:[%s1] sm:$0xf]
      %v177 = vld [vmem:[%s1 + $0x4] sm:$0xf]
      %v178 = vld [vmem:[%s1 + $0x8] sm:$0xf]
      %v179 = vld [vmem:[%s1 + $0xc] sm:$0xf]
      %v180 = vld [vmem:[%s1 + $0x10] sm:$0xf]
      %v181 = vld [vmem:[%s1 + $0x14] sm:$0xf]
      %v182 = vld [vmem:[%s1 + $0x18] sm:$0xf]
      %v183 = vld [vmem:[%s1 + $0x1c] sm:$0xf]
      %v184 = vld [vmem:[%s1 + $0x20] sm:$0xf]
      %v185 = vld [vmem:[%s1 + $0x24] sm:$0xf]
      %v186 = vld [vmem:[%s1 + $0x28] sm:$0xf]
      %v187 = vld [vmem:[%s1 + $0x2c] sm:$0xf]
      %v188 = vld [vmem:[%s1 + $0x30] sm:$0xf]
      %v189 = vld [vmem:[%s1 + $0x34] sm:$0xf]
      %v190 = vld [vmem:[%s1 + $0x38] sm:$0xf]
      %v191 = vld [vmem:[%s1 + $0x3c] sm:$0xf]
      %v192 = vld [vmem:[%s1 + $0x40] sm:$0xf]
      %v193 = vld [vmem:[%s1 + $0x44] sm:$0xf]
      %v194 = vld [vmem:[%s1 + $0x48] sm:$0xf]
      %v195 = vld [vmem:[%s1 + $0x4c] sm:$0xf]
      %v196 = vld [vmem:[%s1 + $0x50] sm:$0xf]
      %v197 = vld [vmem:[%s1 + $0x54] sm:$0xf]
      %v198 = vld [vmem:[%s1 + $0x58] sm:$0xf]
      %v199 = vld [vmem:[%s1 + $0x5c] sm:$0xf]
      %v200 = vld [vmem:[%s165 + $0x20] sm:$0xff]
      %s201 = scalar_lea.vmem %s1, 96
      %v202 = vld [vmem:[%s201] sm:$0xf]
      %v203 = vld [vmem:[%s201 + $0x4] sm:$0xf]
      %v204 = vld [vmem:[%s201 + $0x8] sm:$0xf]
      %v205 = vld [vmem:[%s201 + $0xc] sm:$0xf]
      %v206 = vld [vmem:[%s201 + $0x10] sm:$0xf]
      %v207 = vld [vmem:[%s201 + $0x14] sm:$0xf]
      %v208 = vld [vmem:[%s201 + $0x18] sm:$0xf]
      %v209 = vld [vmem:[%s201 + $0x1c] sm:$0xf]
      %v210 = vld [vmem:[%s201 + $0x20] sm:$0xf]
      %v211 = vld [vmem:[%s201 + $0x24] sm:$0xf]
      %v212 = vld [vmem:[%s201 + $0x28] sm:$0xf]
      %v213 = vld [vmem:[%s201 + $0x2c] sm:$0xf]
      %v214 = vld [vmem:[%s201 + $0x30] sm:$0xf]
      %v215 = vld [vmem:[%s201 + $0x34] sm:$0xf]
      %v216 = vld [vmem:[%s201 + $0x38] sm:$0xf]
      %v217 = vld [vmem:[%s201 + $0x3c] sm:$0xf]
      %v218 = vld [vmem:[%s201 + $0x40] sm:$0xf]
      %v219 = vld [vmem:[%s201 + $0x44] sm:$0xf]
      %v220 = vld [vmem:[%s201 + $0x48] sm:$0xf]
      %v221 = vld [vmem:[%s201 + $0x4c] sm:$0xf]
      %v222 = vld [vmem:[%s201 + $0x50] sm:$0xf]
      %v223 = vld [vmem:[%s201 + $0x54] sm:$0xf]
      %v224 = vld [vmem:[%s201 + $0x58] sm:$0xf]
      %v225 = vld [vmem:[%s201 + $0x5c] sm:$0xf]
      %v230 = vunpack.c.l.b16 %v173
      %v231 = vunpack.c.h.b16 %v173
      %v232 = vunpack.c.l.b16 %v174
      %v233 = vunpack.c.h.b16 %v174
      %v234 = vunpack.c.l.b16 %v175
      %v235 = vunpack.c.h.b16 %v175
      %v236 = vunpack.c.l.b16 %v200
      %v237 = vunpack.c.h.b16 %v200
      %v238 = vpack.c.b16 %v232, %v230
      %v239 = vpack.c.b16 %v233, %v231
      %v240 = vpack.c.b16 %v236, %v234
      %v241 = vpack.c.b16 %v237, %v235
      %v268 = vunpack.c.l.b16 %v202
      %v269 = vunpack.c.l.b16 %v203
      %v270 = vunpack.c.l.b16 %v204
      %v271 = vunpack.c.l.b16 %v205
      %v272 = vunpack.c.l.b16 %v206
      %v273 = vunpack.c.l.b16 %v207
      %v274 = vunpack.c.l.b16 %v208
      %v275 = vunpack.c.l.b16 %v209
      %v276 = vunpack.c.l.b16 %v210
      %v277 = vunpack.c.l.b16 %v211
      %v278 = vunpack.c.l.b16 %v212
      %v279 = vunpack.c.l.b16 %v213
      %v280 = vunpack.c.l.b16 %v214
      %v281 = vunpack.c.l.b16 %v215
      %v282 = vunpack.c.l.b16 %v216
      %v283 = vunpack.c.l.b16 %v217
      %v284 = vunpack.c.l.b16 %v218
      %v285 = vunpack.c.l.b16 %v219
      %v286 = vunpack.c.l.b16 %v220
      %v287 = vunpack.c.l.b16 %v221
      %v288 = vunpack.c.l.b16 %v222
      %v289 = vunpack.c.l.b16 %v223
      %v290 = vunpack.c.l.b16 %v224
      %v291 = vunpack.c.l.b16 %v225
      %v292 = vpack.c.b16 %v269, %v268
      %v293 = vpack.c.b16 %v271, %v270
      %v294 = vpack.c.b16 %v273, %v272
      %v295 = vpack.c.b16 %v275, %v274
      %v296 = vpack.c.b16 %v277, %v276
      %v297 = vpack.c.b16 %v279, %v278
      %v298 = vpack.c.b16 %v281, %v280
      %v299 = vpack.c.b16 %v283, %v282
      %v300 = vpack.c.b16 %v285, %v284
      %v301 = vpack.c.b16 %v287, %v286
      %v302 = vpack.c.b16 %v289, %v288
      %v303 = vpack.c.b16 %v291, %v290
      %vm316 = vcmask 523264
      %v318 = vsel %vm316, %v239, 0
      %v321 = vsel %vm316, %v241, 0
      %323 = vmatprep.subr.bf16.mxu0 0
      %324 = vmatpush1.bf16.msra.mxu0 %v292
      %325 = vmatprep.subr.bf16.mxu0 0
      %326 = vmatpush1.bf16.msra.mxu0 %v293
      %327 = vmatprep.subr.bf16.mxu0 0
      %328 = vmatpush1.bf16.msra.mxu0 %v294
      %329 = vmatprep.subr.bf16.mxu0 0
      %330 = vmatpush1.bf16.msra.mxu0 %v295
      %331 = vmatprep.subr.bf16.mxu0 0
      %332 = vmatpush1.bf16.msra.mxu0 %v296
      %333 = vmatprep.subr.bf16.mxu0 0
      %334 = vmatpush1.bf16.msra.mxu0 %v297
      %335 = vmatprep.subr.bf16.mxu0 0
      %336 = vmatpush1.bf16.msra.mxu0 %v298
      %337 = vmatprep.subr.bf16.mxu0 0
      %338 = vmatpush1.bf16.msra.mxu0 %v299
      %339 = vmatprep.subr.bf16.mxu0 0
      %340 = vmatpush1.bf16.msra.mxu0 %v300
      %341 = vmatprep.subr.bf16.mxu0 0
      %342 = vmatpush1.bf16.msra.mxu0 %v301
      %343 = vmatprep.subr.bf16.mxu0 0
      %344 = vmatpush1.bf16.msra.mxu0 %v302
      %345 = vmatprep.subr.bf16.mxu0 0
      %346 = vmatpush1.bf16.msra.mxu0 %v303
      %347 = vmatprep.subr.bf16.mxu0 0
      %348 = vmatpush1.bf16.msra.mxu0 0
      %349 = vmatprep.subr.bf16.mxu0 0
      %350 = vmatpush1.bf16.msra.mxu0 0
      %351 = vmatprep.subr.bf16.mxu0 0
      %352 = vmatpush1.bf16.msra.mxu0 0
      %353 = vmatprep.subr.bf16.mxu0 0
      %354 = vmatpush1.bf16.msra.mxu0 0
      %355 = vmatprep.mubr.bf16.mxu0 %v318
      %356 = vmatmul.mubr.bf16.gmra.mrb[0].mxu0 %v238
      %v357 = vpop.f32.mrb[0].mxu0
      %v358 = vadd.f32 0.0, %v357
      %v359 = vpop.f32.mrb[0].mxu0
      %v360 = vpop.f32.mrb[0].mxu0
      %v361 = vadd.f32 0.0, %v360
      %v362 = vpop.f32.mrb[0].mxu0
      %363 = vmatprep.mubr.bf16.mxu0 %v321
      %364 = vmatmul.mubr.bf16.gmra.mrb[0].mxu0 %v240
      %v365 = vpop.f32.mrb[0].mxu0
      %v366 = vadd.f32 0.0, %v365
      %v367 = vpop.f32.mrb[0].mxu0
      %v368 = vpop.f32.mrb[0].mxu0
      %v369 = vadd.f32 0.0, %v368
      %v370 = vpop.f32.mrb[0].mxu0
      %371 = vdwg.mxu0
      %v373 = vunpack.c.l.b16 %v172
      %v374 = vunpack.c.h.b16 %v172
      %v375 = vpack.c.b16 %v230, %v373
      %v376 = vpack.c.b16 %v231, %v374
      %v377 = vpack.c.b16 %v234, %v232
      %v378 = vpack.c.b16 %v235, %v233
      %v405 = vunpack.c.l.b16 %v176
      %v406 = vunpack.c.l.b16 %v177
      %v407 = vunpack.c.l.b16 %v178
      %v408 = vunpack.c.l.b16 %v179
      %v409 = vunpack.c.l.b16 %v180
      %v410 = vunpack.c.l.b16 %v181
      %v411 = vunpack.c.l.b16 %v182
      %v412 = vunpack.c.l.b16 %v183
      %v413 = vunpack.c.l.b16 %v184
      %v414 = vunpack.c.l.b16 %v185
      %v415 = vunpack.c.l.b16 %v186
      %v416 = vunpack.c.l.b16 %v187
      %v417 = vunpack.c.l.b16 %v188
      %v418 = vunpack.c.l.b16 %v189
      %v419 = vunpack.c.l.b16 %v190
      %v420 = vunpack.c.l.b16 %v191
      %v421 = vunpack.c.l.b16 %v192
      %v422 = vunpack.c.l.b16 %v193
      %v423 = vunpack.c.l.b16 %v194
      %v424 = vunpack.c.l.b16 %v195
      %v425 = vunpack.c.l.b16 %v196
      %v426 = vunpack.c.l.b16 %v197
      %v427 = vunpack.c.l.b16 %v198
      %v428 = vunpack.c.l.b16 %v199
      %v429 = vpack.c.b16 %v406, %v405
      %v430 = vpack.c.b16 %v408, %v407
      %v431 = vpack.c.b16 %v410, %v409
      %v432 = vpack.c.b16 %v412, %v411
      %v433 = vpack.c.b16 %v414, %v413
      %v434 = vpack.c.b16 %v416, %v415
      %v435 = vpack.c.b16 %v418, %v417
      %v436 = vpack.c.b16 %v420, %v419
      %v437 = vpack.c.b16 %v422, %v421
      %v438 = vpack.c.b16 %v424, %v423
      %v439 = vpack.c.b16 %v426, %v425
      %v440 = vpack.c.b16 %v428, %v427
      %v454 = vsel %vm316, %v376, 0
      %v457 = vsel %vm316, %v378, 0
      %459 = vmatprep.subr.bf16.mxu0 0
      %460 = vmatpush1.bf16.msra.mxu0 %v429
      %461 = vmatprep.subr.bf16.mxu0 0
      %462 = vmatpush1.bf16.msra.mxu0 %v430
      %463 = vmatprep.subr.bf16.mxu0 0
      %464 = vmatpush1.bf16.msra.mxu0 %v431
      %465 = vmatprep.subr.bf16.mxu0 0
      %466 = vmatpush1.bf16.msra.mxu0 %v432
      %467 = vmatprep.subr.bf16.mxu0 0
      %468 = vmatpush1.bf16.msra.mxu0 %v433
      %469 = vmatprep.subr.bf16.mxu0 0
      %470 = vmatpush1.bf16.msra.mxu0 %v434
      %471 = vmatprep.subr.bf16.mxu0 0
      %472 = vmatpush1.bf16.msra.mxu0 %v435
      %473 = vmatprep.subr.bf16.mxu0 0
      %474 = vmatpush1.bf16.msra.mxu0 %v436
      %475 = vmatprep.subr.bf16.mxu0 0
      %476 = vmatpush1.bf16.msra.mxu0 %v437
      %477 = vmatprep.subr.bf16.mxu0 0
      %478 = vmatpush1.bf16.msra.mxu0 %v438
      %479 = vmatprep.subr.bf16.mxu0 0
      %480 = vmatpush1.bf16.msra.mxu0 %v439
      %481 = vmatprep.subr.bf16.mxu0 0
      %482 = vmatpush1.bf16.msra.mxu0 %v440
      %483 = vmatprep.subr.bf16.mxu0 0
      %484 = vmatpush1.bf16.msra.mxu0 0
      %485 = vmatprep.subr.bf16.mxu0 0
      %486 = vmatpush1.bf16.msra.mxu0 0
      %487 = vmatprep.subr.bf16.mxu0 0
      %488 = vmatpush1.bf16.msra.mxu0 0
      %489 = vmatprep.subr.bf16.mxu0 0
      %490 = vmatpush1.bf16.msra.mxu0 0
      %491 = vmatprep.mubr.bf16.mxu0 %v454
      %492 = vmatmul.mubr.bf16.gmra.mrb[0].mxu0 %v375
      %v493 = vpop.f32.mrb[0].mxu0
      %v494 = vadd.f32 %v358, %v493
      %v495 = vpop.f32.mrb[0].mxu0
      %v496 = vpop.f32.mrb[0].mxu0
      %v497 = vadd.f32 %v361, %v496
      %v498 = vpop.f32.mrb[0].mxu0
      %499 = vmatprep.mubr.bf16.mxu0 %v457
      %500 = vmatmul.mubr.bf16.gmra.mrb[0].mxu0 %v377
      %v501 = vpop.f32.mrb[0].mxu0
      %v502 = vadd.f32 %v366, %v501
      %v503 = vpop.f32.mrb[0].mxu0
      %v504 = vpop.f32.mrb[0].mxu0
      %v505 = vadd.f32 %v369, %v504
      %v506 = vpop.f32.mrb[0].mxu0
      %507 = vdwg.mxu0
      %v508 = vld [vmem:[%s165 + $0x10] sm:$0xff]
      %v509 = vld [vmem:[%s165 + $0x18] sm:$0xff]
      %v510 = vld [vmem:[%s165 + $0x20] sm:$0xff]
      %v511 = vld [vmem:[%s165 + $0x28] sm:$0xff]
      %s512 = scalar_lea.vmem %s1, 192
      %v513 = vld [vmem:[%s512] sm:$0xf]
      %v514 = vld [vmem:[%s512 + $0x4] sm:$0xf]
      %v515 = vld [vmem:[%s512 + $0x8] sm:$0xf]
      %v516 = vld [vmem:[%s512 + $0xc] sm:$0xf]
      %v517 = vld [vmem:[%s512 + $0x10] sm:$0xf]
      %v518 = vld [vmem:[%s512 + $0x14] sm:$0xf]
      %v519 = vld [vmem:[%s512 + $0x18] sm:$0xf]
      %v520 = vld [vmem:[%s512 + $0x1c] sm:$0xf]
      %v521 = vld [vmem:[%s512 + $0x20] sm:$0xf]
      %v522 = vld [vmem:[%s512 + $0x24] sm:$0xf]
      %v523 = vld [vmem:[%s512 + $0x28] sm:$0xf]
      %v524 = vld [vmem:[%s512 + $0x2c] sm:$0xf]
      %v525 = vld [vmem:[%s512 + $0x30] sm:$0xf]
      %v526 = vld [vmem:[%s512 + $0x34] sm:$0xf]
      %v527 = vld [vmem:[%s512 + $0x38] sm:$0xf]
      %v528 = vld [vmem:[%s512 + $0x3c] sm:$0xf]
      %v529 = vld [vmem:[%s512 + $0x40] sm:$0xf]
      %v530 = vld [vmem:[%s512 + $0x44] sm:$0xf]
      %v531 = vld [vmem:[%s512 + $0x48] sm:$0xf]
      %v532 = vld [vmem:[%s512 + $0x4c] sm:$0xf]
      %v533 = vld [vmem:[%s512 + $0x50] sm:$0xf]
      %v534 = vld [vmem:[%s512 + $0x54] sm:$0xf]
      %v535 = vld [vmem:[%s512 + $0x58] sm:$0xf]
      %v536 = vld [vmem:[%s512 + $0x5c] sm:$0xf]
      %v541 = vunpack.c.l.b16 %v508
      %v542 = vunpack.c.h.b16 %v508
      %v543 = vunpack.c.l.b16 %v509
      %v544 = vunpack.c.h.b16 %v509
      %v545 = vunpack.c.l.b16 %v510
      %v546 = vunpack.c.h.b16 %v510
      %v547 = vunpack.c.l.b16 %v511
      %v548 = vunpack.c.h.b16 %v511
      %v549 = vpack.c.b16 %v543, %v541
      %v550 = vpack.c.b16 %v544, %v542
      %v551 = vpack.c.b16 %v547, %v545
      %v552 = vpack.c.b16 %v548, %v546
      %v579 = vunpack.c.l.b16 %v513
      %v580 = vunpack.c.l.b16 %v514
      %v581 = vunpack.c.l.b16 %v515
      %v582 = vunpack.c.l.b16 %v516
      %v583 = vunpack.c.l.b16 %v517
      %v584 = vunpack.c.l.b16 %v518
      %v585 = vunpack.c.l.b16 %v519
      %v586 = vunpack.c.l.b16 %v520
      %v587 = vunpack.c.l.b16 %v521
      %v588 = vunpack.c.l.b16 %v522
      %v589 = vunpack.c.l.b16 %v523
      %v590 = vunpack.c.l.b16 %v524
      %v591 = vunpack.c.l.b16 %v525
      %v592 = vunpack.c.l.b16 %v526
      %v593 = vunpack.c.l.b16 %v527
      %v594 = vunpack.c.l.b16 %v528
      %v595 = vunpack.c.l.b16 %v529
      %v596 = vunpack.c.l.b16 %v530
      %v597 = vunpack.c.l.b16 %v531
      %v598 = vunpack.c.l.b16 %v532
      %v599 = vunpack.c.l.b16 %v533
      %v600 = vunpack.c.l.b16 %v534
      %v601 = vunpack.c.l.b16 %v535
      %v602 = vunpack.c.l.b16 %v536
      %v603 = vpack.c.b16 %v580, %v579
      %v604 = vpack.c.b16 %v582, %v581
      %v605 = vpack.c.b16 %v584, %v583
      %v606 = vpack.c.b16 %v586, %v585
      %v607 = vpack.c.b16 %v588, %v587
      %v608 = vpack.c.b16 %v590, %v589
      %v609 = vpack.c.b16 %v592, %v591
      %v610 = vpack.c.b16 %v594, %v593
      %v611 = vpack.c.b16 %v596, %v595
      %v612 = vpack.c.b16 %v598, %v597
      %v613 = vpack.c.b16 %v600, %v599
      %v614 = vpack.c.b16 %v602, %v601
      %v628 = vsel %vm316, %v550, 0
      %v631 = vsel %vm316, %v552, 0
      %633 = vmatprep.subr.bf16.mxu0 0
      %634 = vmatpush1.bf16.msra.mxu0 %v603
      %635 = vmatprep.subr.bf16.mxu0 0
      %636 = vmatpush1.bf16.msra.mxu0 %v604
      %637 = vmatprep.subr.bf16.mxu0 0
      %638 = vmatpush1.bf16.msra.mxu0 %v605
      %639 = vmatprep.subr.bf16.mxu0 0
      %640 = vmatpush1.bf16.msra.mxu0 %v606
      %641 = vmatprep.subr.bf16.mxu0 0
      %642 = vmatpush1.bf16.msra.mxu0 %v607
      %643 = vmatprep.subr.bf16.mxu0 0
      %644 = vmatpush1.bf16.msra.mxu0 %v608
      %645 = vmatprep.subr.bf16.mxu0 0
      %646 = vmatpush1.bf16.msra.mxu0 %v609
      %647 = vmatprep.subr.bf16.mxu0 0
      %648 = vmatpush1.bf16.msra.mxu0 %v610
      %649 = vmatprep.subr.bf16.mxu0 0
      %650 = vmatpush1.bf16.msra.mxu0 %v611
      %651 = vmatprep.subr.bf16.mxu0 0
      %652 = vmatpush1.bf16.msra.mxu0 %v612
      %653 = vmatprep.subr.bf16.mxu0 0
      %654 = vmatpush1.bf16.msra.mxu0 %v613
      %655 = vmatprep.subr.bf16.mxu0 0
      %656 = vmatpush1.bf16.msra.mxu0 %v614
      %657 = vmatprep.subr.bf16.mxu0 0
      %658 = vmatpush1.bf16.msra.mxu0 0
      %659 = vmatprep.subr.bf16.mxu0 0
      %660 = vmatpush1.bf16.msra.mxu0 0
      %661 = vmatprep.subr.bf16.mxu0 0
      %662 = vmatpush1.bf16.msra.mxu0 0
      %663 = vmatprep.subr.bf16.mxu0 0
      %664 = vmatpush1.bf16.msra.mxu0 0
      %665 = vmatprep.mubr.bf16.mxu0 %v628
      %666 = vmatmul.mubr.bf16.gmra.mrb[0].mxu0 %v549
      %v667 = vpop.f32.mrb[0].mxu0
      %v668 = vadd.f32 0.0, %v667
      %v669 = vpop.f32.mrb[0].mxu0
      %v670 = vpop.f32.mrb[0].mxu0
      %v671 = vadd.f32 0.0, %v670
      %v672 = vpop.f32.mrb[0].mxu0
      %673 = vmatprep.mubr.bf16.mxu0 %v631
      %674 = vmatmul.mubr.bf16.gmra.mrb[0].mxu0 %v551
      %v675 = vpop.f32.mrb[0].mxu0
      %v676 = vadd.f32 0.0, %v675
      %v677 = vpop.f32.mrb[0].mxu0
      %v678 = vpop.f32.mrb[0].mxu0
      %v679 = vadd.f32 0.0, %v678
      %v680 = vpop.f32.mrb[0].mxu0
      %681 = vdwg.mxu0
      %v682 = vadd.f32 %v494, %v668
      %v683 = vadd.f32 %v497, %v671
      %v684 = vadd.f32 %v502, %v676
      %v685 = vadd.f32 %v505, %v679
      %v686 = vld [vmem:[%s2] sm:$0x1]
      %v688 = vlaneseq
      %v689 = vshrl.u32 %v688, 7
      %v690 = vsub.s32 0, %v689
      %v691 = vrot.slane %v686, %v690
      %v693 = vadd.f32 %v682, %v691
      %v694 = vadd.f32 %v683, %v691
      %v695 = vadd.f32 %v684, %v691
      %v696 = vadd.f32 %v685, %v691
      %v697 = vmax.f32 %v693, 0.0
      %v698 = vmax.f32 %v694, 0.0
      %v699 = vmax.f32 %v695, 0.0
      %v700 = vmax.f32 %v696, 0.0
      %v701 = vpack.c.bf16 %v698, %v697
      %v702 = vpack.c.bf16 %v700, %v699
      %v705 = vunpack.c.l.b16 %v701
      %v706 = vunpack.c.h.b16 %v701
      %v707 = vunpack.c.l.b16 %v702
      %v708 = vunpack.c.h.b16 %v702
      %v709 = vpack.c.b16 %v705, %v705
      %v710 = vpack.c.b16 %v706, %v706
      %v711 = vpack.c.b16 %v707, %v707
      %v712 = vpack.c.b16 %v708, %v708
      %717 = vst [vmem:[%s170] sm:$0xf] %v709
      %718 = vst [vmem:[%s170 + $0x4] sm:$0xf] %v710
      %719 = vst [vmem:[%s170 + $0x8] sm:$0xf] %v711
      %720 = vst [vmem:[%s170 + $0xc] sm:$0xf] %v712
      %p721 = scmp.lt.s32.totalorder %s14, 1
      %s722 = scalar_select %p721, %s14, 1
      %s723 = smul.addr %s722, 4
      %s724 = smul.addr %s723, 4
      %s725 = scalar_lea.vmem %s3, %s724
      // Predicated region
      $region33: #{net_forward.6} parent=31 // pred_check
        %p726 = pneg %p100
      $region34: #{net_forward.6} parent=31 // pred_check_branch
        %728 = sbr.rel (%p726) target = $region36
      $region35: #{net_forward.6} parent=31 // pred_region
        _
      $region36: #{net_forward.6} parent=31 // pred_fallthru
        _
    $region32: #{net_forward.6} parent=5 // pred_fallthru
      _
    %p729 = scmp.le.s32.totalorder 2, %s9
    // Predicated region
    $region37: #{net_forward.6} parent=5 // pred_check
      %p730 = pneg %p729
    $region38: #{net_forward.6} parent=5 // pred_check_branch
      %732 = sbr.rel (%p730) target = $region40
    $region39: #{net_forward.6} parent=5 // pred_region
      %s733 = ssub.s32 %s9, 2
      // Predicated region
      $region41: #{net_forward.6} parent=39 // pred_check
        %p734 = pneg %p106
      $region42: #{net_forward.6} parent=39 // pred_check_branch
        %736 = sbr.rel (%p734) target = $region44
      $region43: #{net_forward.6} parent=39 // pred_region
        %p737 = scmp.lt.s32.totalorder %s15, 1
        %s738 = scalar_select %p737, %s15, 1
        %s739 = smul.addr %s738, 4
        %s740 = smul.addr %s739, 4
        %s741 = scalar_lea.vmem %s3, %s740
      $region44: #{net_forward.6} parent=39 // pred_fallthru
        _
    $region40: #{net_forward.6} parent=5 // pred_fallthru
      _
  $region6: #{net_forward.6} parent=0 // loop_footer
    %s13 = sadd.s32 1, %s9
  $region7: #{net_forward.6} parent=0 // loop_footer_branch
    %8 = sbr.rel target = $region3
  $region8: #{net_forward.6} parent=0 // loop_exit
    _

// kernel: net_forward.5
$region0: #{net_forward.5}
  #allocation0 [shape = 'u32[]', space=smem, size = 0x4, offset = 0x4, fixed_abs, tag = 'smem constant byte address 0x4 - core index']
  #allocation1 [shape = 'u32[144,128]{1,0:T(1,128)}', space=vmem, size = 0x12000, scoped, tag = 'internal scratch']
  %s0 = inlined_call_operand.vmem [shape: bf16[2,96,160], index: 0, kind: input, shape index: {}]
  %s1 = inlined_call_operand.vmem [shape: bf16[5,160,128], index: 1, kind: input, shape index: {}]
  %s2 = inlined_call_operand.vmem [shape: f32[1,128], index: 2, kind: input, shape index: {}]
  %s3 = inlined_call_operand.vmem [shape: bf16[2,64,128], index: 3, kind: output, shape index: {}]
  %s4 = sld [smem:[#allocation0]]
  $region45: #{net_forward.5} parent=0
    _
  %s6 = ssub.s32 1, %s4
  %s7 = scalar_select 0, %s6, %s4
  loop: start=0, step=1, limit=4
  $region2: #{net_forward.5} parent=0 // loop_pre_header
    _
  $region3: #{net_forward.5} parent=0 // loop_header
    %s9 = sphi 0, %s13
    %p10 = scmp.ge.s32.totalorder %s9, 4
    %s19 = sphi 0, %s21
    %s22 = sphi 0, %s19
    %s23 = sphi 0, %s22
    %s39 = sphi 0, %s23
    %s43 = sphi 0, %s43
    %s45 = sphi 0, %s43
    %s46 = sphi 0, %s45
    %s60 = sphi 0, %s46
    %s64 = sphi 0, %s64
    %s66 = sphi 0, %s64
    %s67 = sphi 0, %s66
    %s81 = sphi 0, %s67
    %s87 = sphi 0, %s89
    %s90 = sphi 0, %s87
    %s91 = sphi 0, %s90
    %s107 = sphi 0, %s91
  $region4: #{net_forward.5} parent=0 // loop_header_branch
    %12 = sbr.rel (%p10) target = $region8
  $region5: #{net_forward.5} parent=0 // loop_body
    %s14 = ssub.s32 %s9, 1
    %s15 = ssub.s32 %s9, 2
    %s16 = sadd.s32 %s9, 1
    %s17 = ssub.s32 %s9, %s16
    %p18 = scmp.eq.s32.totalorder %s17, 0
    %s20 = sadd.s32 %s19, 1
    %s21 = scalar_select %p18, %s19, %s20
    %p24 = pneg %p18
    %p25 = scmp.eq.s32.totalorder %s9, 1
    %p26 = por %p24, %p25
    %p27 = scmp.ne.s32.totalorder %s19, %s22
    %p28 = scmp.eq.s32.totalorder %s9, 0
    %p29 = por %p27, %p28
    %p30 = scmp.ne.s32.totalorder %s19, %s22
    %p31 = scmp.eq.s32.totalorder %s14, 1
    %p32 = por %p30, %p31
    %p33 = scmp.ne.s32.totalorder %s22, %s23
    %p34 = scmp.eq.s32.totalorder %s14, 0
    %p35 = por %p33, %p34
    %p36 = scmp.ne.s32.totalorder %s22, %s23
    %p37 = scmp.eq.s32.totalorder %s15, 1
    %p38 = por %p36, %p37
    %p40 = scmp.ne.s32.totalorder %s23, %s39
    %p41 = scmp.eq.s32.totalorder %s15, 0
    %p42 = por %p40, %p41
    %s44 = sadd.s32 %s43, 1
    %p47 = scmp.eq.s32.totalorder %s9, 1
    %p48 = scmp.ne.s32.totalorder %s43, %s45
    %p49 = scmp.eq.s32.totalorder %s9, 0
    %p50 = por %p48, %p49
    %p51 = scmp.ne.s32.totalorder %s43, %s45
    %p52 = scmp.eq.s32.totalorder %s14, 1
    %p53 = por %p51, %p52
    %p54 = scmp.ne.s32.totalorder %s45, %s46
    %p55 = scmp.eq.s32.totalorder %s14, 0
    %p56 = por %p54, %p55
    %p57 = scmp.ne.s32.totalorder %s45, %s46
    %p58 = scmp.eq.s32.totalorder %s15, 1
    %p59 = por %p57, %p58
    %p61 = scmp.ne.s32.totalorder %s46, %s60
    %p62 = scmp.eq.s32.totalorder %s15, 0
    %p63 = por %p61, %p62
    %s65 = sadd.s32 %s64, 1
    %p68 = scmp.eq.s32.totalorder %s9, 1
    %p69 = scmp.ne.s32.totalorder %s64, %s66
    %p70 = scmp.eq.s32.totalorder %s9, 0
    %p71 = por %p69, %p70
    %p72 = scmp.ne.s32.totalorder %s64, %s66
    %p73 = scmp.eq.s32.totalorder %s14, 1
    %p74 = por %p72, %p73
    %p75 = scmp.ne.s32.totalorder %s66, %s67
    %p76 = scmp.eq.s32.totalorder %s14, 0
    %p77 = por %p75, %p76
    %p78 = scmp.ne.s32.totalorder %s66, %s67
    %p79 = scmp.eq.s32.totalorder %s15, 1
    %p80 = por %p78, %p79
    %p82 = scmp.ne.s32.totalorder %s67, %s81
    %p83 = scmp.eq.s32.totalorder %s15, 0
    %p84 = por %p82, %p83
    %s85 = ssub.s32 %s9, %s16
    %p86 = scmp.eq.s32.totalorder %s85, 0
    %s88 = sadd.s32 %s87, 1
    %s89 = scalar_select %p86, %s87, %s88
    %p92 = pneg %p86
    %p93 = scmp.eq.s32.totalorder %s9, 1
    %p94 = por %p92, %p93
    %p95 = scmp.ne.s32.totalorder %s87, %s90
    %p96 = scmp.eq.s32.totalorder %s9, 0
    %p97 = por %p95, %p96
    %p98 = scmp.ne.s32.totalorder %s87, %s90
    %p99 = scmp.eq.s32.totalorder %s14, 1
    %p100 = por %p98, %p99
    %p101 = scmp.ne.s32.totalorder %s90, %s91
    %p102 = scmp.eq.s32.totalorder %s14, 0
    %p103 = por %p101, %p102
    %p104 = scmp.ne.s32.totalorder %s90, %s91
    %p105 = scmp.eq.s32.totalorder %s15, 1
    %p106 = por %p104, %p105
    %p108 = scmp.ne.s32.totalorder %s91, %s107
    %p109 = scmp.eq.s32.totalorder %s15, 0
    %p110 = por %p108, %p109
    %p111 = scmp.le.s32.totalorder 1, %s9
    %p112 = scmp.lt.s32.totalorder %s9, 3
    %p113 = pnand %p111, %p112
    %p114 = pneg %p113
    // Predicated region
    $region9: #{net_forward.5} parent=5 // pred_check
      _
    $region10: #{net_forward.5} parent=5 // pred_check_branch
      %116 = sbr.rel (%p113) target = $region12
    $region11: #{net_forward.5} parent=5 // pred_region
      %s117 = ssub.s32 %s9, 1
      // Predicated region
      $region13: #{net_forward.5} parent=11 // pred_check
        %p118 = pneg %p56
      $region14: #{net_forward.5} parent=11 // pred_check_branch
        %120 = sbr.rel (%p118) target = $region16
      $region15: #{net_forward.5} parent=11 // pred_region
        _
      $region16: #{net_forward.5} parent=11 // pred_fallthru
        _
      // Predicated region
      $region17: #{net_forward.5} parent=11 // pred_check
        %p121 = pneg %p77
      $region18: #{net_forward.5} parent=11 // pred_check_branch
        %123 = sbr.rel (%p121) target = $region20
      $region19: #{net_forward.5} parent=11 // pred_region
        _
      $region20: #{net_forward.5} parent=11 // pred_fallthru
        _
    $region12: #{net_forward.5} parent=5 // pred_fallthru
      _
    %p124 = scmp.lt.s32.totalorder %s9, 2
    // Predicated region
    $region21: #{net_forward.5} parent=5 // pred_check
      %p125 = pneg %p124
    $region22: #{net_forward.5} parent=5 // pred_check_branch
      %127 = sbr.rel (%p125) target = $region24
    $region23: #{net_forward.5} parent=5 // pred_region
      // Predicated region
      $region25: #{net_forward.5} parent=23 // pred_check
        %p128 = pneg %p29
      $region26: #{net_forward.5} parent=23 // pred_check_branch
        %130 = sbr.rel (%p128) target = $region28
      $region27: #{net_forward.5} parent=23 // pred_region
        %p131 = scmp.lt.s32.totalorder %s9, 1
        %s132 = scalar_select %p131, %s9, 1
        %s133 = smul.addr %s132, 24
        %s134 = smul.addr %s133, 4
        %s135 = scalar_lea.vmem %s0, %s134
      $region28: #{net_forward.5} parent=23 // pred_fallthru
        _
    $region24: #{net_forward.5} parent=5 // pred_fallthru
      _
    %p136 = scmp.le.s32.totalorder 1, %s9
    %p137 = scmp.lt.s32.totalorder %s9, 3
    %p138 = pnand %p136, %p137
    %p139 = pneg %p138
    // Predicated region
    $region29: #{net_forward.5} parent=5 // pred_check
      _
    $region30: #{net_forward.5} parent=5 // pred_check_branch
      %141 = sbr.rel (%p138) target = $region32
    $region31: #{net_forward.5} parent=5 // pred_region
      %s142 = ssub.s32 %s9, 1
      %p143 = scmp.lt.s32.totalorder %s14, 1
      %s144 = scalar_select %p143, %s14, 1
      %s145 = smul.addr %s144, 24
      %s146 = smul.addr %s145, 4
      %s147 = scalar_lea.vmem %s0, %s146
      %p148 = pneg %p35
      %p149 = pneg %p32
      %p150 = pneg %p56
      %p151 = pneg %p53
      %p152 = pneg %p77
      %p153 = pneg %p74
      %p154 = pneg %p103
      %p155 = pneg %p100
      %p156 = scmp.lt.s32.totalorder %s14, 1
      %s157 = scalar_select %p156, %s14, 1
      %s158 = smul.addr %s157, 8
      %s159 = smul.addr %s158, 4
      %s160 = scalar_lea.vmem %s3, %s159
      %p161 = scmp.lt.s32.totalorder %s14, 1
      %s162 = scalar_select %p161, %s14, 1
      %s163 = smul.addr %s162, 24
      %s164 = smul.addr %s163, 4
      %s165 = scalar_lea.vmem %s0, %s164
      %p166 = scmp.lt.s32.totalorder %s14, 1
      %s167 = scalar_select %p166, %s14, 1
      %s168 = smul.addr %s167, 8
      %s169 = smul.addr %s168, 4
      %s170 = scalar_lea.vmem %s3, %s169
      %v172 = vld [vmem:[%s165] sm:$0xff]
      %v173 = vld [vmem:[%s165 + $0x8] sm:$0xff]
      %v174 = vld [vmem:[%s165 + $0x10] sm:$0xff]
      %v175 = vld [vmem:[%s165 + $0x18] sm:$0xff]
      %v176 = vld [vmem:[%s165 + $0x20] sm:$0xff]
      %v177 = vld [vmem:[%s165 + $0x28] sm:$0xff]
      %v178 = vld [vmem:[%s165 + $0x30] sm:$0xff]
      %v179 = vld [vmem:[%s165 + $0x38] sm:$0xff]
      %v180 = vld [vmem:[%s1] sm:$0xf]
      %v181 = vld [vmem:[%s1 + $0x4] sm:$0xf]
      %v182 = vld [vmem:[%s1 + $0x8] sm:$0xf]
      %v183 = vld [vmem:[%s1 + $0xc] sm:$0xf]
      %v184 = vld [vmem:[%s1 + $0x10] sm:$0xf]
      %v185 = vld [vmem:[%s1 + $0x14] sm:$0xf]
      %v186 = vld [vmem:[%s1 + $0x18] sm:$0xf]
      %v187 = vld [vmem:[%s1 + $0x1c] sm:$0xf]
      %v188 = vld [vmem:[%s1 + $0x20] sm:$0xf]
      %v189 = vld [vmem:[%s1 + $0x24] sm:$0xf]
      %v190 = vld [vmem:[%s1 + $0x28] sm:$0xf]
      %v191 = vld [vmem:[%s1 + $0x2c] sm:$0xf]
      %v192 = vld [vmem:[%s1 + $0x30] sm:$0xf]
      %v193 = vld [vmem:[%s1 + $0x34] sm:$0xf]
      %v194 = vld [vmem:[%s1 + $0x38] sm:$0xf]
      %v195 = vld [vmem:[%s1 + $0x3c] sm:$0xf]
      %v196 = vld [vmem:[%s1 + $0x40] sm:$0xf]
      %v197 = vld [vmem:[%s1 + $0x44] sm:$0xf]
      %v198 = vld [vmem:[%s1 + $0x48] sm:$0xf]
      %v199 = vld [vmem:[%s1 + $0x4c] sm:$0xf]
      %v200 = vld [vmem:[%s165 + $0x40] sm:$0xff]
      %s201 = scalar_lea.vmem %s1, 80
      %v202 = vld [vmem:[%s201] sm:$0xf]
      %v203 = vld [vmem:[%s201 + $0x4] sm:$0xf]
      %v204 = vld [vmem:[%s201 + $0x8] sm:$0xf]
      %v205 = vld [vmem:[%s201 + $0xc] sm:$0xf]
      %v206 = vld [vmem:[%s201 + $0x10] sm:$0xf]
      %v207 = vld [vmem:[%s201 + $0x14] sm:$0xf]
      %v208 = vld [vmem:[%s201 + $0x18] sm:$0xf]
      %v209 = vld [vmem:[%s201 + $0x1c] sm:$0xf]
      %v210 = vld [vmem:[%s201 + $0x20] sm:$0xf]
      %v211 = vld [vmem:[%s201 + $0x24] sm:$0xf]
      %v212 = vld [vmem:[%s201 + $0x28] sm:$0xf]
      %v213 = vld [vmem:[%s201 + $0x2c] sm:$0xf]
      %v214 = vld [vmem:[%s201 + $0x30] sm:$0xf]
      %v215 = vld [vmem:[%s201 + $0x34] sm:$0xf]
      %v216 = vld [vmem:[%s201 + $0x38] sm:$0xf]
      %v217 = vld [vmem:[%s201 + $0x3c] sm:$0xf]
      %v218 = vld [vmem:[%s201 + $0x40] sm:$0xf]
      %v219 = vld [vmem:[%s201 + $0x44] sm:$0xf]
      %v220 = vld [vmem:[%s201 + $0x48] sm:$0xf]
      %v221 = vld [vmem:[%s201 + $0x4c] sm:$0xf]
      %v230 = vunpack.c.l.b16 %v173
      %v231 = vunpack.c.h.b16 %v173
      %v232 = vunpack.c.l.b16 %v174
      %v233 = vunpack.c.h.b16 %v174
      %v234 = vunpack.c.l.b16 %v175
      %v235 = vunpack.c.h.b16 %v175
      %v236 = vunpack.c.l.b16 %v176
      %v237 = vunpack.c.h.b16 %v176
      %v238 = vunpack.c.l.b16 %v177
      %v239 = vunpack.c.h.b16 %v177
      %v240 = vunpack.c.l.b16 %v178
      %v241 = vunpack.c.h.b16 %v178
      %v242 = vunpack.c.l.b16 %v179
      %v243 = vunpack.c.h.b16 %v179
      %v244 = vunpack.c.l.b16 %v200
      %v245 = vunpack.c.h.b16 %v200
      %v246 = vpack.c.b16 %v232, %v230
      %v247 = vpack.c.b16 %v233, %v231
      %v248 = vpack.c.b16 %v236, %v234
      %v249 = vpack.c.b16 %v237, %v235
      %v250 = vpack.c.b16 %v240, %v238
      %v251 = vpack.c.b16 %v241, %v239
      %v252 = vpack.c.b16 %v244, %v242
      %v253 = vpack.c.b16 %v245, %v243
      %v278 = vunpack.c.l.b16 %v202
      %v279 = vunpack.c.l.b16 %v203
      %v280 = vunpack.c.l.b16 %v204
      %v281 = vunpack.c.l.b16 %v205
      %v282 = vunpack.c.l.b16 %v206
      %v283 = vunpack.c.l.b16 %v207
      %v284 = vunpack.c.l.b16 %v208
      %v285 = vunpack.c.l.b16 %v209
      %v286 = vunpack.c.l.b16 %v210
      %v287 = vunpack.c.l.b16 %v211
      %v288 = vunpack.c.l.b16 %v212
      %v289 = vunpack.c.l.b16 %v213
      %v290 = vunpack.c.l.b16 %v214
      %v291 = vunpack.c.l.b16 %v215
      %v292 = vunpack.c.l.b16 %v216
      %v293 = vunpack.c.l.b16 %v217
      %v294 = vunpack.c.l.b16 %v218
      %v295 = vunpack.c.l.b16 %v219
      %v296 = vunpack.c.l.b16 %v220
      %v297 = vunpack.c.l.b16 %v221
      %v298 = vpack.c.b16 %v279, %v278
      %v299 = vpack.c.b16 %v281, %v280
      %v300 = vpack.c.b16 %v283, %v282
      %v301 = vpack.c.b16 %v285, %v284
      %v302 = vpack.c.b16 %v287, %v286
      %v303 = vpack.c.b16 %v289, %v288
      %v304 = vpack.c.b16 %v291, %v290
      %v305 = vpack.c.b16 %v293, %v292
      %v306 = vpack.c.b16 %v295, %v294
      %v307 = vpack.c.b16 %v297, %v296
      %vm318 = vcmask 261120
      %v320 = vsel %vm318, %v247, 0
      %v323 = vsel %vm318, %v249, 0
      %v326 = vsel %vm318, %v251, 0
      %v329 = vsel %vm318, %v253, 0
      %331 = vmatprep.subr.bf16.mxu0 0
      %332 = vmatpush1.bf16.msra.mxu0 %v298
      %333 = vmatprep.subr.bf16.mxu0 0
      %334 = vmatpush1.bf16.msra.mxu0 %v299
      %335 = vmatprep.subr.bf16.mxu0 0
      %336 = vmatpush1.bf16.msra.mxu0 %v300
      %337 = vmatprep.subr.bf16.mxu0 0
      %338 = vmatpush1.bf16.msra.mxu0 %v301
      %339 = vmatprep.subr.bf16.mxu0 0
      %340 = vmatpush1.bf16.msra.mxu0 %v302
      %341 = vmatprep.subr.bf16.mxu0 0
      %342 = vmatpush1.bf16.msra.mxu0 %v303
      %343 = vmatprep.subr.bf16.mxu0 0
      %344 = vmatpush1.bf16.msra.mxu0 %v304
      %345 = vmatprep.subr.bf16.mxu0 0
      %346 = vmatpush1.bf16.msra.mxu0 %v305
      %347 = vmatprep.subr.bf16.mxu0 0
      %348 = vmatpush1.bf16.msra.mxu0 %v306
      %349 = vmatprep.subr.bf16.mxu0 0
      %350 = vmatpush1.bf16.msra.mxu0 %v307
      %351 = vmatprep.subr.bf16.mxu0 0
      %352 = vmatpush1.bf16.msra.mxu0 0
      %353 = vmatprep.subr.bf16.mxu0 0
      %354 = vmatpush1.bf16.msra.mxu0 0
      %355 = vmatprep.subr.bf16.mxu0 0
      %356 = vmatpush1.bf16.msra.mxu0 0
      %357 = vmatprep.subr.bf16.mxu0 0
      %358 = vmatpush1.bf16.msra.mxu0 0
      %359 = vmatprep.subr.bf16.mxu0 0
      %360 = vmatpush1.bf16.msra.mxu0 0
      %361 = vmatprep.subr.bf16.mxu0 0
      %362 = vmatpush1.bf16.msra.mxu0 0
      %363 = vmatprep.mubr.bf16.mxu0 %v320
      %364 = vmatmul.mubr.bf16.gmra.mrb[0].mxu0 %v246
      %v365 = vpop.f32.mrb[0].mxu0
      %v366 = vadd.f32 0.0, %v365
      %v367 = vpop.f32.mrb[0].mxu0
      %v368 = vpop.f32.mrb[0].mxu0
      %v369 = vadd.f32 0.0, %v368
      %v370 = vpop.f32.mrb[0].mxu0
      %371 = vmatprep.mubr.bf16.mxu0 %v323
      %372 = vmatmul.mubr.bf16.gmra.mrb[0].mxu0 %v248
      %v373 = vpop.f32.mrb[0].mxu0
      %v374 = vadd.f32 0.0, %v373
      %v375 = vpop.f32.mrb[0].mxu0
      %v376 = vpop.f32.mrb[0].mxu0
      %v377 = vadd.f32 0.0, %v376
      %v378 = vpop.f32.mrb[0].mxu0
      %379 = vmatprep.mubr.bf16.mxu0 %v326
      %380 = vmatmul.mubr.bf16.gmra.mrb[0].mxu0 %v250
      %v381 = vpop.f32.mrb[0].mxu0
      %v382 = vadd.f32 0.0, %v381
      %v383 = vpop.f32.mrb[0].mxu0
      %v384 = vpop.f32.mrb[0].mxu0
      %v385 = vadd.f32 0.0, %v384
      %v386 = vpop.f32.mrb[0].mxu0
      %387 = vmatprep.mubr.bf16.mxu0 %v329
      %388 = vmatmul.mubr.bf16.gmra.mrb[0].mxu0 %v252
      %v389 = vpop.f32.mrb[0].mxu0
      %v390 = vadd.f32 0.0, %v389
      %v391 = vpop.f32.mrb[0].mxu0
      %v392 = vpop.f32.mrb[0].mxu0
      %v393 = vadd.f32 0.0, %v392
      %v394 = vpop.f32.mrb[0].mxu0
      %395 = vdwg.mxu0
      %v397 = vunpack.c.l.b16 %v172
      %v398 = vunpack.c.h.b16 %v172
      %v399 = vpack.c.b16 %v230, %v397
      %v400 = vpack.c.b16 %v231, %v398
      %v401 = vpack.c.b16 %v234, %v232
      %v402 = vpack.c.b16 %v235, %v233
      %v403 = vpack.c.b16 %v238, %v236
      %v404 = vpack.c.b16 %v239, %v237
      %v405 = vpack.c.b16 %v242, %v240
      %v406 = vpack.c.b16 %v243, %v241
      %v431 = vunpack.c.l.b16 %v180
      %v432 = vunpack.c.l.b16 %v181
      %v433 = vunpack.c.l.b16 %v182
      %v434 = vunpack.c.l.b16 %v183
      %v435 = vunpack.c.l.b16 %v184
      %v436 = vunpack.c.l.b16 %v185
      %v437 = vunpack.c.l.b16 %v186
      %v438 = vunpack.c.l.b16 %v187
      %v439 = vunpack.c.l.b16 %v188
      %v440 = vunpack.c.l.b16 %v189
      %v441 = vunpack.c.l.b16 %v190
      %v442 = vunpack.c.l.b16 %v191
      %v443 = vunpack.c.l.b16 %v192
      %v444 = vunpack.c.l.b16 %v193
      %v445 = vunpack.c.l.b16 %v194
      %v446 = vunpack.c.l.b16 %v195
      %v447 = vunpack.c.l.b16 %v196
      %v448 = vunpack.c.l.b16 %v197
      %v449 = vunpack.c.l.b16 %v198
      %v450 = vunpack.c.l.b16 %v199
      %v451 = vpack.c.b16 %v432, %v431
      %v452 = vpack.c.b16 %v434, %v433
      %v453 = vpack.c.b16 %v436, %v435
      %v454 = vpack.c.b16 %v438, %v437
      %v455 = vpack.c.b16 %v440, %v439
      %v456 = vpack.c.b16 %v442, %v441
      %v457 = vpack.c.b16 %v444, %v443
      %v458 = vpack.c.b16 %v446, %v445
      %v459 = vpack.c.b16 %v448, %v447
      %v460 = vpack.c.b16 %v450, %v449
      %v472 = vsel %vm318, %v400, 0
      %v475 = vsel %vm318, %v402, 0
      %v478 = vsel %vm318, %v404, 0
      %v481 = vsel %vm318, %v406, 0
      %483 = vmatprep.subr.bf16.mxu0 0
      %484 = vmatpush1.bf16.msra.mxu0 %v451
      %485 = vmatprep.subr.bf16.mxu0 0
      %486 = vmatpush1.bf16.msra.mxu0 %v452
      %487 = vmatprep.subr.bf16.mxu0 0
      %488 = vmatpush1.bf16.msra.mxu0 %v453
      %489 = vmatprep.subr.bf16.mxu0 0
      %490 = vmatpush1.bf16.msra.mxu0 %v454
      %491 = vmatprep.subr.bf16.mxu0 0
      %492 = vmatpush1.bf16.msra.mxu0 %v455
      %493 = vmatprep.subr.bf16.mxu0 0
      %494 = vmatpush1.bf16.msra.mxu0 %v456
      %495 = vmatprep.subr.bf16.mxu0 0
      %496 = vmatpush1.bf16.msra.mxu0 %v457
      %497 = vmatprep.subr.bf16.mxu0 0
      %498 = vmatpush1.bf16.msra.mxu0 %v458
      %499 = vmatprep.subr.bf16.mxu0 0
      %500 = vmatpush1.bf16.msra.mxu0 %v459
      %501 = vmatprep.subr.bf16.mxu0 0
      %502 = vmatpush1.bf16.msra.mxu0 %v460
      %503 = vmatprep.subr.bf16.mxu0 0
      %504 = vmatpush1.bf16.msra.mxu0 0
      %505 = vmatprep.subr.bf16.mxu0 0
      %506 = vmatpush1.bf16.msra.mxu0 0
      %507 = vmatprep.subr.bf16.mxu0 0
      %508 = vmatpush1.bf16.msra.mxu0 0
      %509 = vmatprep.subr.bf16.mxu0 0
      %510 = vmatpush1.bf16.msra.mxu0 0
      %511 = vmatprep.subr.bf16.mxu0 0
      %512 = vmatpush1.bf16.msra.mxu0 0
      %513 = vmatprep.subr.bf16.mxu0 0
      %514 = vmatpush1.bf16.msra.mxu0 0
      %515 = vmatprep.mubr.bf16.mxu0 %v472
      %516 = vmatmul.mubr.bf16.gmra.mrb[0].mxu0 %v399
      %v517 = vpop.f32.mrb[0].mxu0
      %v518 = vadd.f32 %v366, %v517
      %v519 = vpop.f32.mrb[0].mxu0
      %v520 = vpop.f32.mrb[0].mxu0
      %v521 = vadd.f32 %v369, %v520
      %v522 = vpop.f32.mrb[0].mxu0
      %523 = vmatprep.mubr.bf16.mxu0 %v475
      %524 = vmatmul.mubr.bf16.gmra.mrb[0].mxu0 %v401
      %v525 = vpop.f32.mrb[0].mxu0
      %v526 = vadd.f32 %v374, %v525
      %v527 = vpop.f32.mrb[0].mxu0
      %v528 = vpop.f32.mrb[0].mxu0
      %v529 = vadd.f32 %v377, %v528
      %v530 = vpop.f32.mrb[0].mxu0
      %531 = vmatprep.mubr.bf16.mxu0 %v478
      %532 = vmatmul.mubr.bf16.gmra.mrb[0].mxu0 %v403
      %v533 = vpop.f32.mrb[0].mxu0
      %v534 = vadd.f32 %v382, %v533
      %v535 = vpop.f32.mrb[0].mxu0
      %v536 = vpop.f32.mrb[0].mxu0
      %v537 = vadd.f32 %v385, %v536
      %v538 = vpop.f32.mrb[0].mxu0
      %539 = vmatprep.mubr.bf16.mxu0 %v481
      %540 = vmatmul.mubr.bf16.gmra.mrb[0].mxu0 %v405
      %v541 = vpop.f32.mrb[0].mxu0
      %v542 = vadd.f32 %v390, %v541
      %v543 = vpop.f32.mrb[0].mxu0
      %v544 = vpop.f32.mrb[0].mxu0
      %v545 = vadd.f32 %v393, %v544
      %v546 = vpop.f32.mrb[0].mxu0
      %547 = vdwg.mxu0
      %v548 = vld [vmem:[%s165 + $0x10] sm:$0xff]
      %v549 = vld [vmem:[%s165 + $0x18] sm:$0xff]
      %v550 = vld [vmem:[%s165 + $0x20] sm:$0xff]
      %v551 = vld [vmem:[%s165 + $0x28] sm:$0xff]
      %v552 = vld [vmem:[%s165 + $0x30] sm:$0xff]
      %v553 = vld [vmem:[%s165 + $0x38] sm:$0xff]
      %v554 = vld [vmem:[%s165 + $0x40] sm:$0xff]
      %v555 = vld [vmem:[%s165 + $0x48] sm:$0xff]
      %s556 = scalar_lea.vmem %s1, 160
      %v557 = vld [vmem:[%s556] sm:$0xf]
      %v558 = vld [vmem:[%s556 + $0x4] sm:$0xf]
      %v559 = vld [vmem:[%s556 + $0x8] sm:$0xf]
      %v560 = vld [vmem:[%s556 + $0xc] sm:$0xf]
      %v561 = vld [vmem:[%s556 + $0x10] sm:$0xf]
      %v562 = vld [vmem:[%s556 + $0x14] sm:$0xf]
      %v563 = vld [vmem:[%s556 + $0x18] sm:$0xf]
      %v564 = vld [vmem:[%s556 + $0x1c] sm:$0xf]
      %v565 = vld [vmem:[%s556 + $0x20] sm:$0xf]
      %v566 = vld [vmem:[%s556 + $0x24] sm:$0xf]
      %v567 = vld [vmem:[%s556 + $0x28] sm:$0xf]
      %v568 = vld [vmem:[%s556 + $0x2c] sm:$0xf]
      %v569 = vld [vmem:[%s556 + $0x30] sm:$0xf]
      %v570 = vld [vmem:[%s556 + $0x34] sm:$0xf]
      %v571 = vld [vmem:[%s556 + $0x38] sm:$0xf]
      %v572 = vld [vmem:[%s556 + $0x3c] sm:$0xf]
      %v573 = vld [vmem:[%s556 + $0x40] sm:$0xf]
      %v574 = vld [vmem:[%s556 + $0x44] sm:$0xf]
      %v575 = vld [vmem:[%s556 + $0x48] sm:$0xf]
      %v576 = vld [vmem:[%s556 + $0x4c] sm:$0xf]
      %v585 = vunpack.c.l.b16 %v548
      %v586 = vunpack.c.h.b16 %v548
      %v587 = vunpack.c.l.b16 %v549
      %v588 = vunpack.c.h.b16 %v549
      %v589 = vunpack.c.l.b16 %v550
      %v590 = vunpack.c.h.b16 %v550
      %v591 = vunpack.c.l.b16 %v551
      %v592 = vunpack.c.h.b16 %v551
      %v593 = vunpack.c.l.b16 %v552
      %v594 = vunpack.c.h.b16 %v552
      %v595 = vunpack.c.l.b16 %v553
      %v596 = vunpack.c.h.b16 %v553
      %v597 = vunpack.c.l.b16 %v554
      %v598 = vunpack.c.h.b16 %v554
      %v599 = vunpack.c.l.b16 %v555
      %v600 = vunpack.c.h.b16 %v555
      %v601 = vpack.c.b16 %v587, %v585
      %v602 = vpack.c.b16 %v588, %v586
      %v603 = vpack.c.b16 %v591, %v589
      %v604 = vpack.c.b16 %v592, %v590
      %v605 = vpack.c.b16 %v595, %v593
      %v606 = vpack.c.b16 %v596, %v594
      %v607 = vpack.c.b16 %v599, %v597
      %v608 = vpack.c.b16 %v600, %v598
      %v633 = vunpack.c.l.b16 %v557
      %v634 = vunpack.c.l.b16 %v558
      %v635 = vunpack.c.l.b16 %v559
      %v636 = vunpack.c.l.b16 %v560
      %v637 = vunpack.c.l.b16 %v561
      %v638 = vunpack.c.l.b16 %v562
      %v639 = vunpack.c.l.b16 %v563
      %v640 = vunpack.c.l.b16 %v564
      %v641 = vunpack.c.l.b16 %v565
      %v642 = vunpack.c.l.b16 %v566
      %v643 = vunpack.c.l.b16 %v567
      %v644 = vunpack.c.l.b16 %v568
      %v645 = vunpack.c.l.b16 %v569
      %v646 = vunpack.c.l.b16 %v570
      %v647 = vunpack.c.l.b16 %v571
      %v648 = vunpack.c.l.b16 %v572
      %v649 = vunpack.c.l.b16 %v573
      %v650 = vunpack.c.l.b16 %v574
      %v651 = vunpack.c.l.b16 %v575
      %v652 = vunpack.c.l.b16 %v576
      %v653 = vpack.c.b16 %v634, %v633
      %v654 = vpack.c.b16 %v636, %v635
      %v655 = vpack.c.b16 %v638, %v637
      %v656 = vpack.c.b16 %v640, %v639
      %v657 = vpack.c.b16 %v642, %v641
      %v658 = vpack.c.b16 %v644, %v643
      %v659 = vpack.c.b16 %v646, %v645
      %v660 = vpack.c.b16 %v648, %v647
      %v661 = vpack.c.b16 %v650, %v649
      %v662 = vpack.c.b16 %v652, %v651
      %v674 = vsel %vm318, %v602, 0
      %v677 = vsel %vm318, %v604, 0
      %v680 = vsel %vm318, %v606, 0
      %v683 = vsel %vm318, %v608, 0
      %685 = vmatprep.subr.bf16.mxu0 0
      %686 = vmatpush1.bf16.msra.mxu0 %v653
      %687 = vmatprep.subr.bf16.mxu0 0
      %688 = vmatpush1.bf16.msra.mxu0 %v654
      %689 = vmatprep.subr.bf16.mxu0 0
      %690 = vmatpush1.bf16.msra.mxu0 %v655
      %691 = vmatprep.subr.bf16.mxu0 0
      %692 = vmatpush1.bf16.msra.mxu0 %v656
      %693 = vmatprep.subr.bf16.mxu0 0
      %694 = vmatpush1.bf16.msra.mxu0 %v657
      %695 = vmatprep.subr.bf16.mxu0 0
      %696 = vmatpush1.bf16.msra.mxu0 %v658
      %697 = vmatprep.subr.bf16.mxu0 0
      %698 = vmatpush1.bf16.msra.mxu0 %v659
      %699 = vmatprep.subr.bf16.mxu0 0
      %700 = vmatpush1.bf16.msra.mxu0 %v660
      %701 = vmatprep.subr.bf16.mxu0 0
      %702 = vmatpush1.bf16.msra.mxu0 %v661
      %703 = vmatprep.subr.bf16.mxu0 0
      %704 = vmatpush1.bf16.msra.mxu0 %v662
      %705 = vmatprep.subr.bf16.mxu0 0
      %706 = vmatpush1.bf16.msra.mxu0 0
      %707 = vmatprep.subr.bf16.mxu0 0
      %708 = vmatpush1.bf16.msra.mxu0 0
      %709 = vmatprep.subr.bf16.mxu0 0
      %710 = vmatpush1.bf16.msra.mxu0 0
      %711 = vmatprep.subr.bf16.mxu0 0
      %712 = vmatpush1.bf16.msra.mxu0 0
      %713 = vmatprep.subr.bf16.mxu0 0
      %714 = vmatpush1.bf16.msra.mxu0 0
      %715 = vmatprep.subr.bf16.mxu0 0
      %716 = vmatpush1.bf16.msra.mxu0 0
      %717 = vmatprep.mubr.bf16.mxu0 %v674
      %718 = vmatmul.mubr.bf16.gmra.mrb[0].mxu0 %v601
      %v719 = vpop.f32.mrb[0].mxu0
      %v720 = vadd.f32 0.0, %v719
      %v721 = vpop.f32.mrb[0].mxu0
      %v722 = vpop.f32.mrb[0].mxu0
      %v723 = vadd.f32 0.0, %v722
      %v724 = vpop.f32.mrb[0].mxu0
      %725 = vmatprep.mubr.bf16.mxu0 %v677
      %726 = vmatmul.mubr.bf16.gmra.mrb[0].mxu0 %v603
      %v727 = vpop.f32.mrb[0].mxu0
      %v728 = vadd.f32 0.0, %v727
      %v729 = vpop.f32.mrb[0].mxu0
      %v730 = vpop.f32.mrb[0].mxu0
      %v731 = vadd.f32 0.0, %v730
      %v732 = vpop.f32.mrb[0].mxu0
      %733 = vmatprep.mubr.bf16.mxu0 %v680
      %734 = vmatmul.mubr.bf16.gmra.mrb[0].mxu0 %v605
      %v735 = vpop.f32.mrb[0].mxu0
      %v736 = vadd.f32 0.0, %v735
      %v737 = vpop.f32.mrb[0].mxu0
      %v738 = vpop.f32.mrb[0].mxu0
      %v739 = vadd.f32 0.0, %v738
      %v740 = vpop.f32.mrb[0].mxu0
      %741 = vmatprep.mubr.bf16.mxu0 %v683
      %742 = vmatmul.mubr.bf16.gmra.mrb[0].mxu0 %v607
      %v743 = vpop.f32.mrb[0].mxu0
      %v744 = vadd.f32 0.0, %v743
      %v745 = vpop.f32.mrb[0].mxu0
      %v746 = vpop.f32.mrb[0].mxu0
      %v747 = vadd.f32 0.0, %v746
      %v748 = vpop.f32.mrb[0].mxu0
      %749 = vdwg.mxu0
      %v750 = vadd.f32 %v518, %v720
      %v751 = vadd.f32 %v521, %v723
      %v752 = vadd.f32 %v526, %v728
      %v753 = vadd.f32 %v529, %v731
      %v754 = vadd.f32 %v534, %v736
      %v755 = vadd.f32 %v537, %v739
      %v756 = vadd.f32 %v542, %v744
      %v757 = vadd.f32 %v545, %v747
      %v758 = vld [vmem:[%s165 + $0x18] sm:$0xff]
      %v759 = vld [vmem:[%s165 + $0x20] sm:$0xff]
      %v760 = vld [vmem:[%s165 + $0x28] sm:$0xff]
      %v761 = vld [vmem:[%s165 + $0x30] sm:$0xff]
      %v762 = vld [vmem:[%s165 + $0x38] sm:$0xff]
      %v763 = vld [vmem:[%s165 + $0x40] sm:$0xff]
      %v764 = vld [vmem:[%s165 + $0x48] sm:$0xff]
      %v765 = vld [vmem:[%s165 + $0x50] sm:$0xff]
      %s766 = scalar_lea.vmem %s1, 240
      %v767 = vld [vmem:[%s766] sm:$0xf]
      %v768 = vld [vmem:[%s766 + $0x4] sm:$0xf]
      %v769 = vld [vmem:[%s766 + $0x8] sm:$0xf]
      %v770 = vld [vmem:[%s766 + $0xc] sm:$0xf]
      %v771 = vld [vmem:[%s766 + $0x10] sm:$0xf]
      %v772 = vld [vmem:[%s766 + $0x14] sm:$0xf]
      %v773 = vld [vmem:[%s766 + $0x18] sm:$0xf]
      %v774 = vld [vmem:[%s766 + $0x1c] sm:$0xf]
      %v775 = vld [vmem:[%s766 + $0x20] sm:$0xf]
      %v776 = vld [vmem:[%s766 + $0x24] sm:$0xf]
      %v777 = vld [vmem:[%s766 + $0x28] sm:$0xf]
      %v778 = vld [vmem:[%s766 + $0x2c] sm:$0xf]
      %v779 = vld [vmem:[%s766 + $0x30] sm:$0xf]
      %v780 = vld [vmem:[%s766 + $0x34] sm:$0xf]
      %v781 = vld [vmem:[%s766 + $0x38] sm:$0xf]
      %v782 = vld [vmem:[%s766 + $0x3c] sm:$0xf]
      %v783 = vld [vmem:[%s766 + $0x40] sm:$0xf]
      %v784 = vld [vmem:[%s766 + $0x44] sm:$0xf]
      %v785 = vld [vmem:[%s766 + $0x48] sm:$0xf]
      %v786 = vld [vmem:[%s766 + $0x4c] sm:$0xf]
      %v795 = vunpack.c.l.b16 %v758
      %v796 = vunpack.c.h.b16 %v758
      %v797 = vunpack.c.l.b16 %v759
      %v798 = vunpack.c.h.b16 %v759
      %v799 = vunpack.c.l.b16 %v760
      %v800 = vunpack.c.h.b16 %v760
      %v801 = vunpack.c.l.b16 %v761
      %v802 = vunpack.c.h.b16 %v761
      %v803 = vunpack.c.l.b16 %v762
      %v804 = vunpack.c.h.b16 %v762
      %v805 = vunpack.c.l.b16 %v763
      %v806 = vunpack.c.h.b16 %v763
      %v807 = vunpack.c.l.b16 %v764
      %v808 = vunpack.c.h.b16 %v764
      %v809 = vunpack.c.l.b16 %v765
      %v810 = vunpack.c.h.b16 %v765
      %v811 = vpack.c.b16 %v797, %v795
      %v812 = vpack.c.b16 %v798, %v796
      %v813 = vpack.c.b16 %v801, %v799
      %v814 = vpack.c.b16 %v802, %v800
      %v815 = vpack.c.b16 %v805, %v803
      %v816 = vpack.c.b16 %v806, %v804
      %v817 = vpack.c.b16 %v809, %v807
      %v818 = vpack.c.b16 %v810, %v808
      %v843 = vunpack.c.l.b16 %v767
      %v844 = vunpack.c.l.b16 %v768
      %v845 = vunpack.c.l.b16 %v769
      %v846 = vunpack.c.l.b16 %v770
      %v847 = vunpack.c.l.b16 %v771
      %v848 = vunpack.c.l.b16 %v772
      %v849 = vunpack.c.l.b16 %v773
      %v850 = vunpack.c.l.b16 %v774
      %v851 = vunpack.c.l.b16 %v775
      %v852 = vunpack.c.l.b16 %v776
      %v853 = vunpack.c.l.b16 %v777
      %v854 = vunpack.c.l.b16 %v778
      %v855 = vunpack.c.l.b16 %v779
      %v856 = vunpack.c.l.b16 %v780
      %v857 = vunpack.c.l.b16 %v781
      %v858 = vunpack.c.l.b16 %v782
      %v859 = vunpack.c.l.b16 %v783
      %v860 = vunpack.c.l.b16 %v784
      %v861 = vunpack.c.l.b16 %v785
      %v862 = vunpack.c.l.b16 %v786
      %v863 = vpack.c.b16 %v844, %v843
      %v864 = vpack.c.b16 %v846, %v845
      %v865 = vpack.c.b16 %v848, %v847
      %v866 = vpack.c.b16 %v850, %v849
      %v867 = vpack.c.b16 %v852, %v851
      %v868 = vpack.c.b16 %v854, %v853
      %v869 = vpack.c.b16 %v856, %v855
      %v870 = vpack.c.b16 %v858, %v857
      %v871 = vpack.c.b16 %v860, %v859
      %v872 = vpack.c.b16 %v862, %v861
      %v884 = vsel %vm318, %v812, 0
      %v887 = vsel %vm318, %v814, 0
      %v890 = vsel %vm318, %v816, 0
      %v893 = vsel %vm318, %v818, 0
      %895 = vmatprep.subr.bf16.mxu0 0
      %896 = vmatpush1.bf16.msra.mxu0 %v863
      %897 = vmatprep.subr.bf16.mxu0 0
      %898 = vmatpush1.bf16.msra.mxu0 %v864
      %899 = vmatprep.subr.bf16.mxu0 0
      %900 = vmatpush1.bf16.msra.mxu0 %v865
      %901 = vmatprep.subr.bf16.mxu0 0
      %902 = vmatpush1.bf16.msra.mxu0 %v866
      %903 = vmatprep.subr.bf16.mxu0 0
      %904 = vmatpush1.bf16.msra.mxu0 %v867
      %905 = vmatprep.subr.bf16.mxu0 0
      %906 = vmatpush1.bf16.msra.mxu0 %v868
      %907 = vmatprep.subr.bf16.mxu0 0
      %908 = vmatpush1.bf16.msra.mxu0 %v869
      %909 = vmatprep.subr.bf16.mxu0 0
      %910 = vmatpush1.bf16.msra.mxu0 %v870
      %911 = vmatprep.subr.bf16.mxu0 0
      %912 = vmatpush1.bf16.msra.mxu0 %v871
      %913 = vmatprep.subr.bf16.mxu0 0
      %914 = vmatpush1.bf16.msra.mxu0 %v872
      %915 = vmatprep.subr.bf16.mxu0 0
      %916 = vmatpush1.bf16.msra.mxu0 0
      %917 = vmatprep.subr.bf16.mxu0 0
      %918 = vmatpush1.bf16.msra.mxu0 0
      %919 = vmatprep.subr.bf16.mxu0 0
      %920 = vmatpush1.bf16.msra.mxu0 0
      %921 = vmatprep.subr.bf16.mxu0 0
      %922 = vmatpush1.bf16.msra.mxu0 0
      %923 = vmatprep.subr.bf16.mxu0 0
      %924 = vmatpush1.bf16.msra.mxu0 0
      %925 = vmatprep.subr.bf16.mxu0 0
      %926 = vmatpush1.bf16.msra.mxu0 0
      %927 = vmatprep.mubr.bf16.mxu0 %v884
      %928 = vmatmul.mubr.bf16.gmra.mrb[0].mxu0 %v811
      %v929 = vpop.f32.mrb[0].mxu0
      %v930 = vadd.f32 0.0, %v929
      %v931 = vpop.f32.mrb[0].mxu0
      %v932 = vpop.f32.mrb[0].mxu0
      %v933 = vadd.f32 0.0, %v932
      %v934 = vpop.f32.mrb[0].mxu0
      %935 = vmatprep.mubr.bf16.mxu0 %v887
      %936 = vmatmul.mubr.bf16.gmra.mrb[0].mxu0 %v813
      %v937 = vpop.f32.mrb[0].mxu0
      %v938 = vadd.f32 0.0, %v937
      %v939 = vpop.f32.mrb[0].mxu0
      %v940 = vpop.f32.mrb[0].mxu0
      %v941 = vadd.f32 0.0, %v940
      %v942 = vpop.f32.mrb[0].mxu0
      %943 = vmatprep.mubr.bf16.mxu0 %v890
      %944 = vmatmul.mubr.bf16.gmra.mrb[0].mxu0 %v815
      %v945 = vpop.f32.mrb[0].mxu0
      %v946 = vadd.f32 0.0, %v945
      %v947 = vpop.f32.mrb[0].mxu0
      %v948 = vpop.f32.mrb[0].mxu0
      %v949 = vadd.f32 0.0, %v948
      %v950 = vpop.f32.mrb[0].mxu0
      %951 = vmatprep.mubr.bf16.mxu0 %v893
      %952 = vmatmul.mubr.bf16.gmra.mrb[0].mxu0 %v817
      %v953 = vpop.f32.mrb[0].mxu0
      %v954 = vadd.f32 0.0, %v953
      %v955 = vpop.f32.mrb[0].mxu0
      %v956 = vpop.f32.mrb[0].mxu0
      %v957 = vadd.f32 0.0, %v956
      %v958 = vpop.f32.mrb[0].mxu0
      %959 = vdwg.mxu0
      %v960 = vadd.f32 %v750, %v930
      %v961 = vadd.f32 %v751, %v933
      %v962 = vadd.f32 %v752, %v938
      %v963 = vadd.f32 %v753, %v941
      %v964 = vadd.f32 %v754, %v946
      %v965 = vadd.f32 %v755, %v949
      %v966 = vadd.f32 %v756, %v954
      %v967 = vadd.f32 %v757, %v957
      %v968 = vld [vmem:[%s165 + $0x20] sm:$0xff]
      %v969 = vld [vmem:[%s165 + $0x28] sm:$0xff]
      %v970 = vld [vmem:[%s165 + $0x30] sm:$0xff]
      %v971 = vld [vmem:[%s165 + $0x38] sm:$0xff]
      %v972 = vld [vmem:[%s165 + $0x40] sm:$0xff]
      %v973 = vld [vmem:[%s165 + $0x48] sm:$0xff]
      %v974 = vld [vmem:[%s165 + $0x50] sm:$0xff]
      %v975 = vld [vmem:[%s165 + $0x58] sm:$0xff]
      %s976 = scalar_lea.vmem %s1, 320
      %v977 = vld [vmem:[%s976] sm:$0xf]
      %v978 = vld [vmem:[%s976 + $0x4] sm:$0xf]
      %v979 = vld [vmem:[%s976 + $0x8] sm:$0xf]
      %v980 = vld [vmem:[%s976 + $0xc] sm:$0xf]
      %v981 = vld [vmem:[%s976 + $0x10] sm:$0xf]
      %v982 = vld [vmem:[%s976 + $0x14] sm:$0xf]
      %v983 = vld [vmem:[%s976 + $0x18] sm:$0xf]
      %v984 = vld [vmem:[%s976 + $0x1c] sm:$0xf]
      %v985 = vld [vmem:[%s976 + $0x20] sm:$0xf]
      %v986 = vld [vmem:[%s976 + $0x24] sm:$0xf]
      %v987 = vld [vmem:[%s976 + $0x28] sm:$0xf]
      %v988 = vld [vmem:[%s976 + $0x2c] sm:$0xf]
      %v989 = vld [vmem:[%s976 + $0x30] sm:$0xf]
      %v990 = vld [vmem:[%s976 + $0x34] sm:$0xf]
      %v991 = vld [vmem:[%s976 + $0x38] sm:$0xf]
      %v992 = vld [vmem:[%s976 + $0x3c] sm:$0xf]
      %v993 = vld [vmem:[%s976 + $0x40] sm:$0xf]
      %v994 = vld [vmem:[%s976 + $0x44] sm:$0xf]
      %v995 = vld [vmem:[%s976 + $0x48] sm:$0xf]
      %v996 = vld [vmem:[%s976 + $0x4c] sm:$0xf]
      %v1005 = vunpack.c.l.b16 %v968
      %v1006 = vunpack.c.h.b16 %v968
      %v1007 = vunpack.c.l.b16 %v969
      %v1008 = vunpack.c.h.b16 %v969
      %v1009 = vunpack.c.l.b16 %v970
      %v1010 = vunpack.c.h.b16 %v970
      %v1011 = vunpack.c.l.b16 %v971
      %v1012 = vunpack.c.h.b16 %v971
      %v1013 = vunpack.c.l.b16 %v972
      %v1014 = vunpack.c.h.b16 %v972
      %v1015 = vunpack.c.l.b16 %v973
      %v1016 = vunpack.c.h.b16 %v973
      %v1017 = vunpack.c.l.b16 %v974
      %v1018 = vunpack.c.h.b16 %v974
      %v1019 = vunpack.c.l.b16 %v975
      %v1020 = vunpack.c.h.b16 %v975
      %v1021 = vpack.c.b16 %v1007, %v1005
      %v1022 = vpack.c.b16 %v1008, %v1006
      %v1023 = vpack.c.b16 %v1011, %v1009
      %v1024 = vpack.c.b16 %v1012, %v1010
      %v1025 = vpack.c.b16 %v1015, %v1013
      %v1026 = vpack.c.b16 %v1016, %v1014
      %v1027 = vpack.c.b16 %v1019, %v1017
      %v1028 = vpack.c.b16 %v1020, %v1018
      %v1053 = vunpack.c.l.b16 %v977
      %v1054 = vunpack.c.l.b16 %v978
      %v1055 = vunpack.c.l.b16 %v979
      %v1056 = vunpack.c.l.b16 %v980
      %v1057 = vunpack.c.l.b16 %v981
      %v1058 = vunpack.c.l.b16 %v982
      %v1059 = vunpack.c.l.b16 %v983
      %v1060 = vunpack.c.l.b16 %v984
      %v1061 = vunpack.c.l.b16 %v985
      %v1062 = vunpack.c.l.b16 %v986
      %v1063 = vunpack.c.l.b16 %v987
      %v1064 = vunpack.c.l.b16 %v988
      %v1065 = vunpack.c.l.b16 %v989
      %v1066 = vunpack.c.l.b16 %v990
      %v1067 = vunpack.c.l.b16 %v991
      %v1068 = vunpack.c.l.b16 %v992
      %v1069 = vunpack.c.l.b16 %v993
      %v1070 = vunpack.c.l.b16 %v994
      %v1071 = vunpack.c.l.b16 %v995
      %v1072 = vunpack.c.l.b16 %v996
      %v1073 = vpack.c.b16 %v1054, %v1053
      %v1074 = vpack.c.b16 %v1056, %v1055
      %v1075 = vpack.c.b16 %v1058, %v1057
      %v1076 = vpack.c.b16 %v1060, %v1059
      %v1077 = vpack.c.b16 %v1062, %v1061
      %v1078 = vpack.c.b16 %v1064, %v1063
      %v1079 = vpack.c.b16 %v1066, %v1065
      %v1080 = vpack.c.b16 %v1068, %v1067
      %v1081 = vpack.c.b16 %v1070, %v1069
      %v1082 = vpack.c.b16 %v1072, %v1071
      %v1094 = vsel %vm318, %v1022, 0
      %v1097 = vsel %vm318, %v1024, 0
      %v1100 = vsel %vm318, %v1026, 0
      %v1103 = vsel %vm318, %v1028, 0
      %1105 = vmatprep.subr.bf16.mxu0 0
      %1106 = vmatpush1.bf16.msra.mxu0 %v1073
      %1107 = vmatprep.subr.bf16.mxu0 0
      %1108 = vmatpush1.bf16.msra.mxu0 %v1074
      %1109 = vmatprep.subr.bf16.mxu0 0
      %1110 = vmatpush1.bf16.msra.mxu0 %v1075
      %1111 = vmatprep.subr.bf16.mxu0 0
      %1112 = vmatpush1.bf16.msra.mxu0 %v1076
      %1113 = vmatprep.subr.bf16.mxu0 0
      %1114 = vmatpush1.bf16.msra.mxu0 %v1077
      %1115 = vmatprep.subr.bf16.mxu0 0
      %1116 = vmatpush1.bf16.msra.mxu0 %v1078
      %1117 = vmatprep.subr.bf16.mxu0 0
      %1118 = vmatpush1.bf16.msra.mxu0 %v1079
      %1119 = vmatprep.subr.bf16.mxu0 0
      %1120 = vmatpush1.bf16.msra.mxu0 %v1080
      %1121 = vmatprep.subr.bf16.mxu0 0
      %1122 = vmatpush1.bf16.msra.mxu0 %v1081
      %1123 = vmatprep.subr.bf16.mxu0 0
      %1124 = vmatpush1.bf16.msra.mxu0 %v1082
      %1125 = vmatprep.subr.bf16.mxu0 0
      %1126 = vmatpush1.bf16.msra.mxu0 0
      %1127 = vmatprep.subr.bf16.mxu0 0
      %1128 = vmatpush1.bf16.msra.mxu0 0
      %1129 = vmatprep.subr.bf16.mxu0 0
      %1130 = vmatpush1.bf16.msra.mxu0 0
      %1131 = vmatprep.subr.bf16.mxu0 0
      %1132 = vmatpush1.bf16.msra.mxu0 0
      %1133 = vmatprep.subr.bf16.mxu0 0
      %1134 = vmatpush1.bf16.msra.mxu0 0
      %1135 = vmatprep.subr.bf16.mxu0 0
      %1136 = vmatpush1.bf16.msra.mxu0 0
      %1137 = vmatprep.mubr.bf16.mxu0 %v1094
      %1138 = vmatmul.mubr.bf16.gmra.mrb[0].mxu0 %v1021
      %v1139 = vpop.f32.mrb[0].mxu0
      %v1140 = vadd.f32 0.0, %v1139
      %v1141 = vpop.f32.mrb[0].mxu0
      %v1142 = vpop.f32.mrb[0].mxu0
      %v1143 = vadd.f32 0.0, %v1142
      %v1144 = vpop.f32.mrb[0].mxu0
      %1145 = vmatprep.mubr.bf16.mxu0 %v1097
      %1146 = vmatmul.mubr.bf16.gmra.mrb[0].mxu0 %v1023
      %v1147 = vpop.f32.mrb[0].mxu0
      %v1148 = vadd.f32 0.0, %v1147
      %v1149 = vpop.f32.mrb[0].mxu0
      %v1150 = vpop.f32.mrb[0].mxu0
      %v1151 = vadd.f32 0.0, %v1150
      %v1152 = vpop.f32.mrb[0].mxu0
      %1153 = vmatprep.mubr.bf16.mxu0 %v1100
      %1154 = vmatmul.mubr.bf16.gmra.mrb[0].mxu0 %v1025
      %v1155 = vpop.f32.mrb[0].mxu0
      %v1156 = vadd.f32 0.0, %v1155
      %v1157 = vpop.f32.mrb[0].mxu0
      %v1158 = vpop.f32.mrb[0].mxu0
      %v1159 = vadd.f32 0.0, %v1158
      %v1160 = vpop.f32.mrb[0].mxu0
      %1161 = vmatprep.mubr.bf16.mxu0 %v1103
      %1162 = vmatmul.mubr.bf16.gmra.mrb[0].mxu0 %v1027
      %v1163 = vpop.f32.mrb[0].mxu0
      %v1164 = vadd.f32 0.0, %v1163
      %v1165 = vpop.f32.mrb[0].mxu0
      %v1166 = vpop.f32.mrb[0].mxu0
      %v1167 = vadd.f32 0.0, %v1166
      %v1168 = vpop.f32.mrb[0].mxu0
      %1169 = vdwg.mxu0
      %v1170 = vadd.f32 %v960, %v1140
      %v1171 = vadd.f32 %v961, %v1143
      %v1172 = vadd.f32 %v962, %v1148
      %v1173 = vadd.f32 %v963, %v1151
      %v1174 = vadd.f32 %v964, %v1156
      %v1175 = vadd.f32 %v965, %v1159
      %v1176 = vadd.f32 %v966, %v1164
      %v1177 = vadd.f32 %v967, %v1167
      %v1178 = vld [vmem:[%s2] sm:$0x1]
      %v1180 = vlaneseq
      %v1181 = vshrl.u32 %v1180, 7
      %v1182 = vsub.s32 0, %v1181
      %v1183 = vrot.slane %v1178, %v1182
      %v1185 = vadd.f32 %v1170, %v1183
      %v1186 = vadd.f32 %v1171, %v1183
      %v1187 = vadd.f32 %v1172, %v1183
      %v1188 = vadd.f32 %v1173, %v1183
      %v1189 = vadd.f32 %v1174, %v1183
      %v1190 = vadd.f32 %v1175, %v1183
      %v1191 = vadd.f32 %v1176, %v1183
      %v1192 = vadd.f32 %v1177, %v1183
      %v1193 = vmax.f32 %v1185, 0.0
      %v1194 = vmax.f32 %v1186, 0.0
      %v1195 = vmax.f32 %v1187, 0.0
      %v1196 = vmax.f32 %v1188, 0.0
      %v1197 = vmax.f32 %v1189, 0.0
      %v1198 = vmax.f32 %v1190, 0.0
      %v1199 = vmax.f32 %v1191, 0.0
      %v1200 = vmax.f32 %v1192, 0.0
      %v1201 = vpack.c.bf16 %v1194, %v1193
      %v1202 = vpack.c.bf16 %v1196, %v1195
      %v1203 = vpack.c.bf16 %v1198, %v1197
      %v1204 = vpack.c.bf16 %v1200, %v1199
      %v1209 = vunpack.c.l.b16 %v1201
      %v1210 = vunpack.c.h.b16 %v1201
      %v1211 = vunpack.c.l.b16 %v1202
      %v1212 = vunpack.c.h.b16 %v1202
      %v1213 = vunpack.c.l.b16 %v1203
      %v1214 = vunpack.c.h.b16 %v1203
      %v1215 = vunpack.c.l.b16 %v1204
      %v1216 = vunpack.c.h.b16 %v1204
      %v1217 = vpack.c.b16 %v1209, %v1209
      %v1218 = vpack.c.b16 %v1210, %v1210
      %v1219 = vpack.c.b16 %v1211, %v1211
      %v1220 = vpack.c.b16 %v1212, %v1212
      %v1221 = vpack.c.b16 %v1213, %v1213
      %v1222 = vpack.c.b16 %v1214, %v1214
      %v1223 = vpack.c.b16 %v1215, %v1215
      %v1224 = vpack.c.b16 %v1216, %v1216
      %1233 = vst [vmem:[%s170] sm:$0xf] %v1217
      %1234 = vst [vmem:[%s170 + $0x4] sm:$0xf] %v1218
      %1235 = vst [vmem:[%s170 + $0x8] sm:$0xf] %v1219
      %1236 = vst [vmem:[%s170 + $0xc] sm:$0xf] %v1220
      %1237 = vst [vmem:[%s170 + $0x10] sm:$0xf] %v1221
      %1238 = vst [vmem:[%s170 + $0x14] sm:$0xf] %v1222
      %1239 = vst [vmem:[%s170 + $0x18] sm:$0xf] %v1223
      %1240 = vst [vmem:[%s170 + $0x1c] sm:$0xf] %v1224
      %p1241 = scmp.lt.s32.totalorder %s14, 1
      %s1242 = scalar_select %p1241, %s14, 1
      %s1243 = smul.addr %s1242, 8
      %s1244 = smul.addr %s1243, 4
      %s1245 = scalar_lea.vmem %s3, %s1244
      // Predicated region
      $region33: #{net_forward.5} parent=31 // pred_check
        %p1246 = pneg %p100
      $region34: #{net_forward.5} parent=31 // pred_check_branch
        %1248 = sbr.rel (%p1246) target = $region36
      $region35: #{net_forward.5} parent=31 // pred_region
        _
      $region36: #{net_forward.5} parent=31 // pred_fallthru
        _
    $region32: #{net_forward.5} parent=5 // pred_fallthru
      _
    %p1249 = scmp.le.s32.totalorder 2, %s9
    // Predicated region
    $region37: #{net_forward.5} parent=5 // pred_check
      %p1250 = pneg %p1249
    $region38: #{net_forward.5} parent=5 // pred_check_branch
      %1252 = sbr.rel (%p1250) target = $region40
    $region39: #{net_forward.5} parent=5 // pred_region
      %s1253 = ssub.s32 %s9, 2
      // Predicated region
      $region41: #{net_forward.5} parent=39 // pred_check
        %p1254 = pneg %p106
      $region42: #{net_forward.5} parent=39 // pred_check_branch
        %1256 = sbr.rel (%p1254) target = $region44
      $region43: #{net_forward.5} parent=39 // pred_region
        %p1257 = scmp.lt.s32.totalorder %s15, 1
        %s1258 = scalar_select %p1257, %s15, 1
        %s1259 = smul.addr %s1258, 8
        %s1260 = smul.addr %s1259, 4
        %s1261 = scalar_lea.vmem %s3, %s1260
      $region44: #{net_forward.5} parent=39 // pred_fallthru
        _
    $region40: #{net_forward.5} parent=5 // pred_fallthru
      _
  $region6: #{net_forward.5} parent=0 // loop_footer
    %s13 = sadd.s32 1, %s9
  $region7: #{net_forward.5} parent=0 // loop_footer_branch
    %8 = sbr.rel target = $region3
  $region8: #{net_forward.5} parent=0 // loop_exit
    _

// kernel: net_forward.4
$region0: #{net_forward.4}
  #allocation0 [shape = 'u32[]', space=smem, size = 0x4, offset = 0x4, fixed_abs, tag = 'smem constant byte address 0x4 - core index']
  #allocation1 [shape = 'u32[144,128]{1,0:T(1,128)}', space=vmem, size = 0x12000, scoped, tag = 'internal scratch']
  %s0 = inlined_call_operand.vmem [shape: bf16[2,352,24], index: 0, kind: input, shape index: {}]
  %s1 = inlined_call_operand.vmem [shape: bf16[7,24,128], index: 1, kind: input, shape index: {}]
  %s2 = inlined_call_operand.vmem [shape: f32[1,128], index: 2, kind: input, shape index: {}]
  %s3 = inlined_call_operand.vmem [shape: bf16[2,256,128], index: 3, kind: output, shape index: {}]
  %s4 = sld [smem:[#allocation0]]
  $region45: #{net_forward.4} parent=0
    _
  %s6 = ssub.s32 1, %s4
  %s7 = scalar_select 0, %s6, %s4
  loop: start=0, step=1, limit=4
  $region2: #{net_forward.4} parent=0 // loop_pre_header
    _
  $region3: #{net_forward.4} parent=0 // loop_header
    %s9 = sphi 0, %s13
    %p10 = scmp.ge.s32.totalorder %s9, 4
    %s19 = sphi 0, %s21
    %s22 = sphi 0, %s19
    %s23 = sphi 0, %s22
    %s39 = sphi 0, %s23
    %s43 = sphi 0, %s43
    %s45 = sphi 0, %s43
    %s46 = sphi 0, %s45
    %s60 = sphi 0, %s46
    %s64 = sphi 0, %s64
    %s66 = sphi 0, %s64
    %s67 = sphi 0, %s66
    %s81 = sphi 0, %s67
    %s87 = sphi 0, %s89
    %s90 = sphi 0, %s87
    %s91 = sphi 0, %s90
    %s107 = sphi 0, %s91
  $region4: #{net_forward.4} parent=0 // loop_header_branch
    %12 = sbr.rel (%p10) target = $region8
  $region5: #{net_forward.4} parent=0 // loop_body
    %s14 = ssub.s32 %s9, 1
    %s15 = ssub.s32 %s9, 2
    %s16 = sadd.s32 %s9, 1
    %s17 = ssub.s32 %s9, %s16
    %p18 = scmp.eq.s32.totalorder %s17, 0
    %s20 = sadd.s32 %s19, 1
    %s21 = scalar_select %p18, %s19, %s20
    %p24 = pneg %p18
    %p25 = scmp.eq.s32.totalorder %s9, 1
    %p26 = por %p24, %p25
    %p27 = scmp.ne.s32.totalorder %s19, %s22
    %p28 = scmp.eq.s32.totalorder %s9, 0
    %p29 = por %p27, %p28
    %p30 = scmp.ne.s32.totalorder %s19, %s22
    %p31 = scmp.eq.s32.totalorder %s14, 1
    %p32 = por %p30, %p31
    %p33 = scmp.ne.s32.totalorder %s22, %s23
    %p34 = scmp.eq.s32.totalorder %s14, 0
    %p35 = por %p33, %p34
    %p36 = scmp.ne.s32.totalorder %s22, %s23
    %p37 = scmp.eq.s32.totalorder %s15, 1
    %p38 = por %p36, %p37
    %p40 = scmp.ne.s32.totalorder %s23, %s39
    %p41 = scmp.eq.s32.totalorder %s15, 0
    %p42 = por %p40, %p41
    %s44 = sadd.s32 %s43, 1
    %p47 = scmp.eq.s32.totalorder %s9, 1
    %p48 = scmp.ne.s32.totalorder %s43, %s45
    %p49 = scmp.eq.s32.totalorder %s9, 0
    %p50 = por %p48, %p49
    %p51 = scmp.ne.s32.totalorder %s43, %s45
    %p52 = scmp.eq.s32.totalorder %s14, 1
    %p53 = por %p51, %p52
    %p54 = scmp.ne.s32.totalorder %s45, %s46
    %p55 = scmp.eq.s32.totalorder %s14, 0
    %p56 = por %p54, %p55
    %p57 = scmp.ne.s32.totalorder %s45, %s46
    %p58 = scmp.eq.s32.totalorder %s15, 1
    %p59 = por %p57, %p58
    %p61 = scmp.ne.s32.totalorder %s46, %s60
    %p62 = scmp.eq.s32.totalorder %s15, 0
    %p63 = por %p61, %p62
    %s65 = sadd.s32 %s64, 1
    %p68 = scmp.eq.s32.totalorder %s9, 1
    %p69 = scmp.ne.s32.totalorder %s64, %s66
    %p70 = scmp.eq.s32.totalorder %s9, 0
    %p71 = por %p69, %p70
    %p72 = scmp.ne.s32.totalorder %s64, %s66
    %p73 = scmp.eq.s32.totalorder %s14, 1
    %p74 = por %p72, %p73
    %p75 = scmp.ne.s32.totalorder %s66, %s67
    %p76 = scmp.eq.s32.totalorder %s14, 0
    %p77 = por %p75, %p76
    %p78 = scmp.ne.s32.totalorder %s66, %s67
    %p79 = scmp.eq.s32.totalorder %s15, 1
    %p80 = por %p78, %p79
    %p82 = scmp.ne.s32.totalorder %s67, %s81
    %p83 = scmp.eq.s32.totalorder %s15, 0
    %p84 = por %p82, %p83
    %s85 = ssub.s32 %s9, %s16
    %p86 = scmp.eq.s32.totalorder %s85, 0
    %s88 = sadd.s32 %s87, 1
    %s89 = scalar_select %p86, %s87, %s88
    %p92 = pneg %p86
    %p93 = scmp.eq.s32.totalorder %s9, 1
    %p94 = por %p92, %p93
    %p95 = scmp.ne.s32.totalorder %s87, %s90
    %p96 = scmp.eq.s32.totalorder %s9, 0
    %p97 = por %p95, %p96
    %p98 = scmp.ne.s32.totalorder %s87, %s90
    %p99 = scmp.eq.s32.totalorder %s14, 1
    %p100 = por %p98, %p99
    %p101 = scmp.ne.s32.totalorder %s90, %s91
    %p102 = scmp.eq.s32.totalorder %s14, 0
    %p103 = por %p101, %p102
    %p104 = scmp.ne.s32.totalorder %s90, %s91
    %p105 = scmp.eq.s32.totalorder %s15, 1
    %p106 = por %p104, %p105
    %p108 = scmp.ne.s32.totalorder %s91, %s107
    %p109 = scmp.eq.s32.totalorder %s15, 0
    %p110 = por %p108, %p109
    %p111 = scmp.le.s32.totalorder 1, %s9
    %p112 = scmp.lt.s32.totalorder %s9, 3
    %p113 = pnand %p111, %p112
    %p114 = pneg %p113
    // Predicated region
    $region9: #{net_forward.4} parent=5 // pred_check
      _
    $region10: #{net_forward.4} parent=5 // pred_check_branch
      %116 = sbr.rel (%p113) target = $region12
    $region11: #{net_forward.4} parent=5 // pred_region
      %s117 = ssub.s32 %s9, 1
      // Predicated region
      $region13: #{net_forward.4} parent=11 // pred_check
        %p118 = pneg %p56
      $region14: #{net_forward.4} parent=11 // pred_check_branch
        %120 = sbr.rel (%p118) target = $region16
      $region15: #{net_forward.4} parent=11 // pred_region
        _
      $region16: #{net_forward.4} parent=11 // pred_fallthru
        _
      // Predicated region
      $region17: #{net_forward.4} parent=11 // pred_check
        %p121 = pneg %p77
      $region18: #{net_forward.4} parent=11 // pred_check_branch
        %123 = sbr.rel (%p121) target = $region20
      $region19: #{net_forward.4} parent=11 // pred_region
        _
      $region20: #{net_forward.4} parent=11 // pred_fallthru
        _
    $region12: #{net_forward.4} parent=5 // pred_fallthru
      _
    %p124 = scmp.lt.s32.totalorder %s9, 2
    // Predicated region
    $region21: #{net_forward.4} parent=5 // pred_check
      %p125 = pneg %p124
    $region22: #{net_forward.4} parent=5 // pred_check_branch
      %127 = sbr.rel (%p125) target = $region24
    $region23: #{net_forward.4} parent=5 // pred_region
      // Predicated region
      $region25: #{net_forward.4} parent=23 // pred_check
        %p128 = pneg %p29
      $region26: #{net_forward.4} parent=23 // pred_check_branch
        %130 = sbr.rel (%p128) target = $region28
      $region27: #{net_forward.4} parent=23 // pred_region
        %p131 = scmp.lt.s32.totalorder %s9, 1
        %s132 = scalar_select %p131, %s9, 1
        %s133 = smul.addr %s132, 44
        %s134 = smul.addr %s133, 4
        %s135 = scalar_lea.vmem %s0, %s134
      $region28: #{net_forward.4} parent=23 // pred_fallthru
        _
    $region24: #{net_forward.4} parent=5 // pred_fallthru
      _
    %p136 = scmp.le.s32.totalorder 1, %s9
    %p137 = scmp.lt.s32.totalorder %s9, 3
    %p138 = pnand %p136, %p137
    %p139 = pneg %p138
    // Predicated region
    $region29: #{net_forward.4} parent=5 // pred_check
      _
    $region30: #{net_forward.4} parent=5 // pred_check_branch
      %141 = sbr.rel (%p138) target = $region32
    $region31: #{net_forward.4} parent=5 // pred_region
      %s142 = ssub.s32 %s9, 1
      %p143 = scmp.lt.s32.totalorder %s14, 1
      %s144 = scalar_select %p143, %s14, 1
      %s145 = smul.addr %s144, 44
      %s146 = smul.addr %s145, 4
      %s147 = scalar_lea.vmem %s0, %s146
      %p148 = pneg %p35
      %p149 = pneg %p32
      %p150 = pneg %p56
      %p151 = pneg %p53
      %p152 = pneg %p77
      %p153 = pneg %p74
      %p154 = pneg %p103
      %p155 = pneg %p100
      %p156 = scmp.lt.s32.totalorder %s14, 1
      %s157 = scalar_select %p156, %s14, 1
      %s158 = smul.addr %s157, 32
      %s159 = smul.addr %s158, 4
      %s160 = scalar_lea.vmem %s3, %s159
      %p161 = scmp.lt.s32.totalorder %s14, 1
      %s162 = scalar_select %p161, %s14, 1
      %s163 = smul.addr %s162, 44
      %s164 = smul.addr %s163, 4
      %s165 = scalar_lea.vmem %s0, %s164
      %p166 = scmp.lt.s32.totalorder %s14, 1
      %s167 = scalar_select %p166, %s14, 1
      %s168 = smul.addr %s167, 32
      %s169 = smul.addr %s168, 4
      %s170 = scalar_lea.vmem %s3, %s169
      %v172 = vld [vmem:[%s165] sm:$0xf]
      %v173 = vld [vmem:[%s165 + $0x4] sm:$0xf]
      %v174 = vld [vmem:[%s165 + $0x8] sm:$0xf]
      %v175 = vld [vmem:[%s165 + $0xc] sm:$0xf]
      %v176 = vld [vmem:[%s165 + $0x10] sm:$0xf]
      %v177 = vld [vmem:[%s165 + $0x14] sm:$0xf]
      %v178 = vld [vmem:[%s165 + $0x18] sm:$0xf]
      %v179 = vld [vmem:[%s165 + $0x1c] sm:$0xf]
      %v180 = vld [vmem:[%s165 + $0x20] sm:$0xf]
      %v181 = vld [vmem:[%s165 + $0x24] sm:$0xf]
      %v182 = vld [vmem:[%s165 + $0x28] sm:$0xf]
      %v183 = vld [vmem:[%s165 + $0x2c] sm:$0xf]
      %v184 = vld [vmem:[%s165 + $0x30] sm:$0xf]
      %v185 = vld [vmem:[%s165 + $0x34] sm:$0xf]
      %v186 = vld [vmem:[%s165 + $0x38] sm:$0xf]
      %v187 = vld [vmem:[%s165 + $0x3c] sm:$0xf]
      %v188 = vld [vmem:[%s165 + $0x40] sm:$0xf]
      %v189 = vld [vmem:[%s165 + $0x44] sm:$0xf]
      %v190 = vld [vmem:[%s165 + $0x48] sm:$0xf]
      %v191 = vld [vmem:[%s165 + $0x4c] sm:$0xf]
      %v192 = vld [vmem:[%s165 + $0x50] sm:$0xf]
      %v193 = vld [vmem:[%s165 + $0x54] sm:$0xf]
      %v194 = vld [vmem:[%s165 + $0x58] sm:$0xf]
      %v195 = vld [vmem:[%s165 + $0x5c] sm:$0xf]
      %v196 = vld [vmem:[%s165 + $0x60] sm:$0xf]
      %v197 = vld [vmem:[%s165 + $0x64] sm:$0xf]
      %v198 = vld [vmem:[%s165 + $0x68] sm:$0xf]
      %v199 = vld [vmem:[%s165 + $0x6c] sm:$0xf]
      %v200 = vld [vmem:[%s165 + $0x70] sm:$0xf]
      %v201 = vld [vmem:[%s165 + $0x74] sm:$0xf]
      %v202 = vld [vmem:[%s165 + $0x78] sm:$0xf]
      %v203 = vld [vmem:[%s165 + $0x7c] sm:$0xf]
      %v204 = vld [vmem:[%s1] sm:$0xf]
      %v205 = vld [vmem:[%s1 + $0x4] sm:$0xf]
      %v206 = vld [vmem:[%s1 + $0x8] sm:$0xf]
      %v207 = vld [vmem:[%s165 + $0x80] sm:$0xf]
      %v208 = vld [vmem:[%s165 + $0x84] sm:$0xf]
      %s209 = scalar_lea.vmem %s1, 12
      %v210 = vld [vmem:[%s209] sm:$0xf]
      %v211 = vld [vmem:[%s209 + $0x4] sm:$0xf]
      %v212 = vld [vmem:[%s209 + $0x8] sm:$0xf]
      %v245 = vunpack.c.l.b16 %v174
      %v246 = vunpack.c.l.b16 %v175
      %v247 = vunpack.c.l.b16 %v176
      %v248 = vunpack.c.l.b16 %v177
      %v249 = vunpack.c.l.b16 %v178
      %v250 = vunpack.c.l.b16 %v179
      %v251 = vunpack.c.l.b16 %v180
      %v252 = vunpack.c.l.b16 %v181
      %v253 = vunpack.c.l.b16 %v182
      %v254 = vunpack.c.l.b16 %v183
      %v255 = vunpack.c.l.b16 %v184
      %v256 = vunpack.c.l.b16 %v185
      %v257 = vunpack.c.l.b16 %v186
      %v258 = vunpack.c.l.b16 %v187
      %v259 = vunpack.c.l.b16 %v188
      %v260 = vunpack.c.l.b16 %v189
      %v261 = vunpack.c.l.b16 %v190
      %v262 = vunpack.c.l.b16 %v191
      %v263 = vunpack.c.l.b16 %v192
      %v264 = vunpack.c.l.b16 %v193
      %v265 = vunpack.c.l.b16 %v194
      %v266 = vunpack.c.l.b16 %v195
      %v267 = vunpack.c.l.b16 %v196
      %v268 = vunpack.c.l.b16 %v197
      %v269 = vunpack.c.l.b16 %v198
      %v270 = vunpack.c.l.b16 %v199
      %v271 = vunpack.c.l.b16 %v200
      %v272 = vunpack.c.l.b16 %v201
      %v273 = vunpack.c.l.b16 %v202
      %v274 = vunpack.c.l.b16 %v203
      %v275 = vunpack.c.l.b16 %v207
      %v276 = vunpack.c.l.b16 %v208
      %v277 = vpack.c.b16 %v246, %v245
      %v278 = vpack.c.b16 %v248, %v247
      %v279 = vpack.c.b16 %v250, %v249
      %v280 = vpack.c.b16 %v252, %v251
      %v281 = vpack.c.b16 %v254, %v253
      %v282 = vpack.c.b16 %v256, %v255
      %v283 = vpack.c.b16 %v258, %v257
      %v284 = vpack.c.b16 %v260, %v259
      %v285 = vpack.c.b16 %v262, %v261
      %v286 = vpack.c.b16 %v264, %v263
      %v287 = vpack.c.b16 %v266, %v265
      %v288 = vpack.c.b16 %v268, %v267
      %v289 = vpack.c.b16 %v270, %v269
      %v290 = vpack.c.b16 %v272, %v271
      %v291 = vpack.c.b16 %v274, %v273
      %v292 = vpack.c.b16 %v276, %v275
      %v296 = vunpack.c.l.b16 %v210
      %v297 = vunpack.c.l.b16 %v211
      %v298 = vunpack.c.l.b16 %v212
      %v299 = vpack.c.b16 %v297, %v296
      %v300 = vpack.c.b16 %v298, %v298
      %vm302 = vcmask 195584
      %v304 = vsel %vm302, %v277, 0
      %v307 = vsel %vm302, %v278, 0
      %v310 = vsel %vm302, %v279, 0
      %v313 = vsel %vm302, %v280, 0
      %v316 = vsel %vm302, %v281, 0
      %v319 = vsel %vm302, %v282, 0
      %v322 = vsel %vm302, %v283, 0
      %v325 = vsel %vm302, %v284, 0
      %v328 = vsel %vm302, %v285, 0
      %v331 = vsel %vm302, %v286, 0
      %v334 = vsel %vm302, %v287, 0
      %v337 = vsel %vm302, %v288, 0
      %v340 = vsel %vm302, %v289, 0
      %v343 = vsel %vm302, %v290, 0
      %v346 = vsel %vm302, %v291, 0
      %v349 = vsel %vm302, %v292, 0
      %vm351 = vcmask 1043456
      %v353 = vsel %vm351, %v300, 0
      %355 = vmatprep.subr.bf16.mxu0 0
      %356 = vmatpush1.bf16.msra.mxu0 %v299
      %357 = vmatprep.subr.bf16.mxu0 0
      %358 = vmatpush1.bf16.msra.mxu0 %v353
      %359 = vmatprep.subr.bf16.mxu0 0
      %360 = vmatpush1.bf16.msra.mxu0 0
      %361 = vmatprep.subr.bf16.mxu0 0
      %362 = vmatpush1.bf16.msra.mxu0 0
      %363 = vmatprep.subr.bf16.mxu0 0
      %364 = vmatpush1.bf16.msra.mxu0 0
      %365 = vmatprep.subr.bf16.mxu0 0
      %366 = vmatpush1.bf16.msra.mxu0 0
      %367 = vmatprep.subr.bf16.mxu0 0
      %368 = vmatpush1.bf16.msra.mxu0 0
      %369 = vmatprep.subr.bf16.mxu0 0
      %370 = vmatpush1.bf16.msra.mxu0 0
      %371 = vmatprep.subr.bf16.mxu0 0
      %372 = vmatpush1.bf16.msra.mxu0 0
      %373 = vmatprep.subr.bf16.mxu0 0
      %374 = vmatpush1.bf16.msra.mxu0 0
      %375 = vmatprep.subr.bf16.mxu0 0
      %376 = vmatpush1.bf16.msra.mxu0 0
      %377 = vmatprep.subr.bf16.mxu0 0
      %378 = vmatpush1.bf16.msra.mxu0 0
      %379 = vmatprep.subr.bf16.mxu0 0
      %380 = vmatpush1.bf16.msra.mxu0 0
      %381 = vmatprep.subr.bf16.mxu0 0
      %382 = vmatpush1.bf16.msra.mxu0 0
      %383 = vmatprep.subr.bf16.mxu0 0
      %384 = vmatpush1.bf16.msra.mxu0 0
      %385 = vmatprep.subr.bf16.mxu0 0
      %386 = vmatpush1.bf16.msra.mxu0 0
      %387 = vmatprep.mubr.bf16.mxu0 0
      %388 = vmatmul.mubr.bf16.gmra.mrb[0].mxu0 %v304
      %v389 = vpop.f32.mrb[0].mxu0
      %v390 = vadd.f32 0.0, %v389
      %v391 = vpop.f32.mrb[0].mxu0
      %v392 = vpop.f32.mrb[0].mxu0
      %v393 = vadd.f32 0.0, %v392
      %v394 = vpop.f32.mrb[0].mxu0
      %395 = vmatprep.mubr.bf16.mxu0 0
      %396 = vmatmul.mubr.bf16.gmra.mrb[0].mxu0 %v307
      %v397 = vpop.f32.mrb[0].mxu0
      %v398 = vadd.f32 0.0, %v397
      %v399 = vpop.f32.mrb[0].mxu0
      %v400 = vpop.f32.mrb[0].mxu0
      %v401 = vadd.f32 0.0, %v400
      %v402 = vpop.f32.mrb[0].mxu0
      %403 = vmatprep.mubr.bf16.mxu0 0
      %404 = vmatmul.mubr.bf16.gmra.mrb[0].mxu0 %v310
      %v405 = vpop.f32.mrb[0].mxu0
      %v406 = vadd.f32 0.0, %v405
      %v407 = vpop.f32.mrb[0].mxu0
      %v408 = vpop.f32.mrb[0].mxu0
      %v409 = vadd.f32 0.0, %v408
      %v410 = vpop.f32.mrb[0].mxu0
      %411 = vmatprep.mubr.bf16.mxu0 0
      %412 = vmatmul.mubr.bf16.gmra.mrb[0].mxu0 %v313
      %v413 = vpop.f32.mrb[0].mxu0
      %v414 = vadd.f32 0.0, %v413
      %v415 = vpop.f32.mrb[0].mxu0
      %v416 = vpop.f32.mrb[0].mxu0
      %v417 = vadd.f32 0.0, %v416
      %v418 = vpop.f32.mrb[0].mxu0
      %419 = vmatprep.mubr.bf16.mxu0 0
      %420 = vmatmul.mubr.bf16.gmra.mrb[0].mxu0 %v316
      %v421 = vpop.f32.mrb[0].mxu0
      %v422 = vadd.f32 0.0, %v421
      %v423 = vpop.f32.mrb[0].mxu0
      %v424 = vpop.f32.mrb[0].mxu0
      %v425 = vadd.f32 0.0, %v424
      %v426 = vpop.f32.mrb[0].mxu0
      %427 = vmatprep.mubr.bf16.mxu0 0
      %428 = vmatmul.mubr.bf16.gmra.mrb[0].mxu0 %v319
      %v429 = vpop.f32.mrb[0].mxu0
      %v430 = vadd.f32 0.0, %v429
      %v431 = vpop.f32.mrb[0].mxu0
      %v432 = vpop.f32.mrb[0].mxu0
      %v433 = vadd.f32 0.0, %v432
      %v434 = vpop.f32.mrb[0].mxu0
      %435 = vmatprep.mubr.bf16.mxu0 0
      %436 = vmatmul.mubr.bf16.gmra.mrb[0].mxu0 %v322
      %v437 = vpop.f32.mrb[0].mxu0
      %v438 = vadd.f32 0.0, %v437
      %v439 = vpop.f32.mrb[0].mxu0
      %v440 = vpop.f32.mrb[0].mxu0
      %v441 = vadd.f32 0.0, %v440
      %v442 = vpop.f32.mrb[0].mxu0
      %443 = vmatprep.mubr.bf16.mxu0 0
      %444 = vmatmul.mubr.bf16.gmra.mrb[0].mxu0 %v325
      %v445 = vpop.f32.mrb[0].mxu0
      %v446 = vadd.f32 0.0, %v445
      %v447 = vpop.f32.mrb[0].mxu0
      %v448 = vpop.f32.mrb[0].mxu0
      %v449 = vadd.f32 0.0, %v448
      %v450 = vpop.f32.mrb[0].mxu0
      %451 = vmatprep.mubr.bf16.mxu0 0
      %452 = vmatmul.mubr.bf16.gmra.mrb[0].mxu0 %v328
      %v453 = vpop.f32.mrb[0].mxu0
      %v454 = vadd.f32 0.0, %v453
      %v455 = vpop.f32.mrb[0].mxu0
      %v456 = vpop.f32.mrb[0].mxu0
      %v457 = vadd.f32 0.0, %v456
      %v458 = vpop.f32.mrb[0].mxu0
      %459 = vmatprep.mubr.bf16.mxu0 0
      %460 = vmatmul.mubr.bf16.gmra.mrb[0].mxu0 %v331
      %v461 = vpop.f32.mrb[0].mxu0
      %v462 = vadd.f32 0.0, %v461
      %v463 = vpop.f32.mrb[0].mxu0
      %v464 = vpop.f32.mrb[0].mxu0
      %v465 = vadd.f32 0.0, %v464
      %v466 = vpop.f32.mrb[0].mxu0
      %467 = vmatprep.mubr.bf16.mxu0 0
      %468 = vmatmul.mubr.bf16.gmra.mrb[0].mxu0 %v334
      %v469 = vpop.f32.mrb[0].mxu0
      %v470 = vadd.f32 0.0, %v469
      %v471 = vpop.f32.mrb[0].mxu0
      %v472 = vpop.f32.mrb[0].mxu0
      %v473 = vadd.f32 0.0, %v472
      %v474 = vpop.f32.mrb[0].mxu0
      %475 = vmatprep.mubr.bf16.mxu0 0
      %476 = vmatmul.mubr.bf16.gmra.mrb[0].mxu0 %v337
      %v477 = vpop.f32.mrb[0].mxu0
      %v478 = vadd.f32 0.0, %v477
      %v479 = vpop.f32.mrb[0].mxu0
      %v480 = vpop.f32.mrb[0].mxu0
      %v481 = vadd.f32 0.0, %v480
      %v482 = vpop.f32.mrb[0].mxu0
      %483 = vmatprep.mubr.bf16.mxu0 0
      %484 = vmatmul.mubr.bf16.gmra.mrb[0].mxu0 %v340
      %v485 = vpop.f32.mrb[0].mxu0
      %v486 = vadd.f32 0.0, %v485
      %v487 = vpop.f32.mrb[0].mxu0
      %v488 = vpop.f32.mrb[0].mxu0
      %v489 = vadd.f32 0.0, %v488
      %v490 = vpop.f32.mrb[0].mxu0
      %491 = vmatprep.mubr.bf16.mxu0 0
      %492 = vmatmul.mubr.bf16.gmra.mrb[0].mxu0 %v343
      %v493 = vpop.f32.mrb[0].mxu0
      %v494 = vadd.f32 0.0, %v493
      %v495 = vpop.f32.mrb[0].mxu0
      %v496 = vpop.f32.mrb[0].mxu0
      %v497 = vadd.f32 0.0, %v496
      %v498 = vpop.f32.mrb[0].mxu0
      %499 = vmatprep.mubr.bf16.mxu0 0
      %500 = vmatmul.mubr.bf16.gmra.mrb[0].mxu0 %v346
      %v501 = vpop.f32.mrb[0].mxu0
      %v502 = vadd.f32 0.0, %v501
      %v503 = vpop.f32.mrb[0].mxu0
      %v504 = vpop.f32.mrb[0].mxu0
      %v505 = vadd.f32 0.0, %v504
      %v506 = vpop.f32.mrb[0].mxu0
      %507 = vmatprep.mubr.bf16.mxu0 0
      %508 = vmatmul.mubr.bf16.gmra.mrb[0].mxu0 %v349
      %v509 = vpop.f32.mrb[0].mxu0
      %v510 = vadd.f32 0.0, %v509
      %v511 = vpop.f32.mrb[0].mxu0
      %v512 = vpop.f32.mrb[0].mxu0
      %v513 = vadd.f32 0.0, %v512
      %v514 = vpop.f32.mrb[0].mxu0
      %515 = vdwg.mxu0
      %v518 = vunpack.c.l.b16 %v172
      %v519 = vunpack.c.l.b16 %v173
      %v520 = vpack.c.b16 %v519, %v518
      %v524 = vunpack.c.l.b16 %v204
      %v525 = vunpack.c.l.b16 %v205
      %v526 = vunpack.c.l.b16 %v206
      %v527 = vpack.c.b16 %v525, %v524
      %v528 = vpack.c.b16 %v526, %v526
      %v531 = vsel %vm302, %v520, 0
      %v534 = vsel %vm351, %v528, 0
      %536 = vmatprep.subr.bf16.mxu0 0
      %537 = vmatpush1.bf16.msra.mxu0 %v527
      %538 = vmatprep.subr.bf16.mxu0 0
      %539 = vmatpush1.bf16.msra.mxu0 %v534
      %540 = vmatprep.subr.bf16.mxu0 0
      %541 = vmatpush1.bf16.msra.mxu0 0
      %542 = vmatprep.subr.bf16.mxu0 0
      %543 = vmatpush1.bf16.msra.mxu0 0
      %544 = vmatprep.subr.bf16.mxu0 0
      %545 = vmatpush1.bf16.msra.mxu0 0
      %546 = vmatprep.subr.bf16.mxu0 0
      %547 = vmatpush1.bf16.msra.mxu0 0
      %548 = vmatprep.subr.bf16.mxu0 0
      %549 = vmatpush1.bf16.msra.mxu0 0
      %550 = vmatprep.subr.bf16.mxu0 0
      %551 = vmatpush1.bf16.msra.mxu0 0
      %552 = vmatprep.subr.bf16.mxu0 0
      %553 = vmatpush1.bf16.msra.mxu0 0
      %554 = vmatprep.subr.bf16.mxu0 0
      %555 = vmatpush1.bf16.msra.mxu0 0
      %556 = vmatprep.subr.bf16.mxu0 0
      %557 = vmatpush1.bf16.msra.mxu0 0
      %558 = vmatprep.subr.bf16.mxu0 0
      %559 = vmatpush1.bf16.msra.mxu0 0
      %560 = vmatprep.subr.bf16.mxu0 0
      %561 = vmatpush1.bf16.msra.mxu0 0
      %562 = vmatprep.subr.bf16.mxu0 0
      %563 = vmatpush1.bf16.msra.mxu0 0
      %564 = vmatprep.subr.bf16.mxu0 0
      %565 = vmatpush1.bf16.msra.mxu0 0
      %566 = vmatprep.subr.bf16.mxu0 0
      %567 = vmatpush1.bf16.msra.mxu0 0
      %568 = vmatprep.mubr.bf16.mxu0 0
      %569 = vmatmul.mubr.bf16.gmra.mrb[0].mxu0 %v531
      %v570 = vpop.f32.mrb[0].mxu0
      %v571 = vadd.f32 %v390, %v570
      %v572 = vpop.f32.mrb[0].mxu0
      %v573 = vpop.f32.mrb[0].mxu0
      %v574 = vadd.f32 %v393, %v573
      %v575 = vpop.f32.mrb[0].mxu0
      %576 = vmatprep.mubr.bf16.mxu0 0
      %577 = vmatmul.mubr.bf16.gmra.mrb[0].mxu0 %v304
      %v578 = vpop.f32.mrb[0].mxu0
      %v579 = vadd.f32 %v398, %v578
      %v580 = vpop.f32.mrb[0].mxu0
      %v581 = vpop.f32.mrb[0].mxu0
      %v582 = vadd.f32 %v401, %v581
      %v583 = vpop.f32.mrb[0].mxu0
      %584 = vmatprep.mubr.bf16.mxu0 0
      %585 = vmatmul.mubr.bf16.gmra.mrb[0].mxu0 %v307
      %v586 = vpop.f32.mrb[0].mxu0
      %v587 = vadd.f32 %v406, %v586
      %v588 = vpop.f32.mrb[0].mxu0
      %v589 = vpop.f32.mrb[0].mxu0
      %v590 = vadd.f32 %v409, %v589
      %v591 = vpop.f32.mrb[0].mxu0
      %592 = vmatprep.mubr.bf16.mxu0 0
      %593 = vmatmul.mubr.bf16.gmra.mrb[0].mxu0 %v310
      %v594 = vpop.f32.mrb[0].mxu0
      %v595 = vadd.f32 %v414, %v594
      %v596 = vpop.f32.mrb[0].mxu0
      %v597 = vpop.f32.mrb[0].mxu0
      %v598 = vadd.f32 %v417, %v597
      %v599 = vpop.f32.mrb[0].mxu0
      %600 = vmatprep.mubr.bf16.mxu0 0
      %601 = vmatmul.mubr.bf16.gmra.mrb[0].mxu0 %v313
      %v602 = vpop.f32.mrb[0].mxu0
      %v603 = vadd.f32 %v422, %v602
      %v604 = vpop.f32.mrb[0].mxu0
      %v605 = vpop.f32.mrb[0].mxu0
      %v606 = vadd.f32 %v425, %v605
      %v607 = vpop.f32.mrb[0].mxu0
      %608 = vmatprep.mubr.bf16.mxu0 0
      %609 = vmatmul.mubr.bf16.gmra.mrb[0].mxu0 %v316
      %v610 = vpop.f32.mrb[0].mxu0
      %v611 = vadd.f32 %v430, %v610
      %v612 = vpop.f32.mrb[0].mxu0
      %v613 = vpop.f32.mrb[0].mxu0
      %v614 = vadd.f32 %v433, %v613
      %v615 = vpop.f32.mrb[0].mxu0
      %616 = vmatprep.mubr.bf16.mxu0 0
      %617 = vmatmul.mubr.bf16.gmra.mrb[0].mxu0 %v319
      %v618 = vpop.f32.mrb[0].mxu0
      %v619 = vadd.f32 %v438, %v618
      %v620 = vpop.f32.mrb[0].mxu0
      %v621 = vpop.f32.mrb[0].mxu0
      %v622 = vadd.f32 %v441, %v621
      %v623 = vpop.f32.mrb[0].mxu0
      %624 = vmatprep.mubr.bf16.mxu0 0
      %625 = vmatmul.mubr.bf16.gmra.mrb[0].mxu0 %v322
      %v626 = vpop.f32.mrb[0].mxu0
      %v627 = vadd.f32 %v446, %v626
      %v628 = vpop.f32.mrb[0].mxu0
      %v629 = vpop.f32.mrb[0].mxu0
      %v630 = vadd.f32 %v449, %v629
      %v631 = vpop.f32.mrb[0].mxu0
      %632 = vmatprep.mubr.bf16.mxu0 0
      %633 = vmatmul.mubr.bf16.gmra.mrb[0].mxu0 %v325
      %v634 = vpop.f32.mrb[0].mxu0
      %v635 = vadd.f32 %v454, %v634
      %v636 = vpop.f32.mrb[0].mxu0
      %v637 = vpop.f32.mrb[0].mxu0
      %v638 = vadd.f32 %v457, %v637
      %v639 = vpop.f32.mrb[0].mxu0
      %640 = vmatprep.mubr.bf16.mxu0 0
      %641 = vmatmul.mubr.bf16.gmra.mrb[0].mxu0 %v328
      %v642 = vpop.f32.mrb[0].mxu0
      %v643 = vadd.f32 %v462, %v642
      %v644 = vpop.f32.mrb[0].mxu0
      %v645 = vpop.f32.mrb[0].mxu0
      %v646 = vadd.f32 %v465, %v645
      %v647 = vpop.f32.mrb[0].mxu0
      %648 = vmatprep.mubr.bf16.mxu0 0
      %649 = vmatmul.mubr.bf16.gmra.mrb[0].mxu0 %v331
      %v650 = vpop.f32.mrb[0].mxu0
      %v651 = vadd.f32 %v470, %v650
      %v652 = vpop.f32.mrb[0].mxu0
      %v653 = vpop.f32.mrb[0].mxu0
      %v654 = vadd.f32 %v473, %v653
      %v655 = vpop.f32.mrb[0].mxu0
      %656 = vmatprep.mubr.bf16.mxu0 0
      %657 = vmatmul.mubr.bf16.gmra.mrb[0].mxu0 %v334
      %v658 = vpop.f32.mrb[0].mxu0
      %v659 = vadd.f32 %v478, %v658
      %v660 = vpop.f32.mrb[0].mxu0
      %v661 = vpop.f32.mrb[0].mxu0
      %v662 = vadd.f32 %v481, %v661
      %v663 = vpop.f32.mrb[0].mxu0
      %664 = vmatprep.mubr.bf16.mxu0 0
      %665 = vmatmul.mubr.bf16.gmra.mrb[0].mxu0 %v337
      %v666 = vpop.f32.mrb[0].mxu0
      %v667 = vadd.f32 %v486, %v666
      %v668 = vpop.f32.mrb[0].mxu0
      %v669 = vpop.f32.mrb[0].mxu0
      %v670 = vadd.f32 %v489, %v669
      %v671 = vpop.f32.mrb[0].mxu0
      %672 = vmatprep.mubr.bf16.mxu0 0
      %673 = vmatmul.mubr.bf16.gmra.mrb[0].mxu0 %v340
      %v674 = vpop.f32.mrb[0].mxu0
      %v675 = vadd.f32 %v494, %v674
      %v676 = vpop.f32.mrb[0].mxu0
      %v677 = vpop.f32.mrb[0].mxu0
      %v678 = vadd.f32 %v497, %v677
      %v679 = vpop.f32.mrb[0].mxu0
      %680 = vmatprep.mubr.bf16.mxu0 0
      %681 = vmatmul.mubr.bf16.gmra.mrb[0].mxu0 %v343
      %v682 = vpop.f32.mrb[0].mxu0
      %v683 = vadd.f32 %v502, %v682
      %v684 = vpop.f32.mrb[0].mxu0
      %v685 = vpop.f32.mrb[0].mxu0
      %v686 = vadd.f32 %v505, %v685
      %v687 = vpop.f32.mrb[0].mxu0
      %688 = vmatprep.mubr.bf16.mxu0 0
      %689 = vmatmul.mubr.bf16.gmra.mrb[0].mxu0 %v346
      %v690 = vpop.f32.mrb[0].mxu0
      %v691 = vadd.f32 %v510, %v690
      %v692 = vpop.f32.mrb[0].mxu0
      %v693 = vpop.f32.mrb[0].mxu0
      %v694 = vadd.f32 %v513, %v693
      %v695 = vpop.f32.mrb[0].mxu0
      %696 = vdwg.mxu0
      %v697 = vld [vmem:[%s165 + $0x10] sm:$0xf]
      %v698 = vld [vmem:[%s165 + $0x14] sm:$0xf]
      %v699 = vld [vmem:[%s165 + $0x18] sm:$0xf]
      %v700 = vld [vmem:[%s165 + $0x1c] sm:$0xf]
      %v701 = vld [vmem:[%s165 + $0x20] sm:$0xf]
      %v702 = vld [vmem:[%s165 + $0x24] sm:$0xf]
      %v703 = vld [vmem:[%s165 + $0x28] sm:$0xf]
      %v704 = vld [vmem:[%s165 + $0x2c] sm:$0xf]
      %v705 = vld [vmem:[%s165 + $0x30] sm:$0xf]
      %v706 = vld [vmem:[%s165 + $0x34] sm:$0xf]
      %v707 = vld [vmem:[%s165 + $0x38] sm:$0xf]
      %v708 = vld [vmem:[%s165 + $0x3c] sm:$0xf]
      %v709 = vld [vmem:[%s165 + $0x40] sm:$0xf]
      %v710 = vld [vmem:[%s165 + $0x44] sm:$0xf]
      %v711 = vld [vmem:[%s165 + $0x48] sm:$0xf]
      %v712 = vld [vmem:[%s165 + $0x4c] sm:$0xf]
      %v713 = vld [vmem:[%s165 + $0x50] sm:$0xf]
      %v714 = vld [vmem:[%s165 + $0x54] sm:$0xf]
      %v715 = vld [vmem:[%s165 + $0x58] sm:$0xf]
      %v716 = vld [vmem:[%s165 + $0x5c] sm:$0xf]
      %v717 = vld [vmem:[%s165 + $0x60] sm:$0xf]
      %v718 = vld [vmem:[%s165 + $0x64] sm:$0xf]
      %v719 = vld [vmem:[%s165 + $0x68] sm:$0xf]
      %v720 = vld [vmem:[%s165 + $0x6c] sm:$0xf]
      %v721 = vld [vmem:[%s165 + $0x70] sm:$0xf]
      %v722 = vld [vmem:[%s165 + $0x74] sm:$0xf]
      %v723 = vld [vmem:[%s165 + $0x78] sm:$0xf]
      %v724 = vld [vmem:[%s165 + $0x7c] sm:$0xf]
      %v725 = vld [vmem:[%s165 + $0x80] sm:$0xf]
      %v726 = vld [vmem:[%s165 + $0x84] sm:$0xf]
      %v727 = vld [vmem:[%s165 + $0x88] sm:$0xf]
      %v728 = vld [vmem:[%s165 + $0x8c] sm:$0xf]
      %s729 = scalar_lea.vmem %s1, 24
      %v730 = vld [vmem:[%s729] sm:$0xf]
      %v731 = vld [vmem:[%s729 + $0x4] sm:$0xf]
      %v732 = vld [vmem:[%s729 + $0x8] sm:$0xf]
      %v765 = vunpack.c.l.b16 %v697
      %v766 = vunpack.c.l.b16 %v698
      %v767 = vunpack.c.l.b16 %v699
      %v768 = vunpack.c.l.b16 %v700
      %v769 = vunpack.c.l.b16 %v701
      %v770 = vunpack.c.l.b16 %v702
      %v771 = vunpack.c.l.b16 %v703
      %v772 = vunpack.c.l.b16 %v704
      %v773 = vunpack.c.l.b16 %v705
      %v774 = vunpack.c.l.b16 %v706
      %v775 = vunpack.c.l.b16 %v707
      %v776 = vunpack.c.l.b16 %v708
      %v777 = vunpack.c.l.b16 %v709
      %v778 = vunpack.c.l.b16 %v710
      %v779 = vunpack.c.l.b16 %v711
      %v780 = vunpack.c.l.b16 %v712
      %v781 = vunpack.c.l.b16 %v713
      %v782 = vunpack.c.l.b16 %v714
      %v783 = vunpack.c.l.b16 %v715
      %v784 = vunpack.c.l.b16 %v716
      %v785 = vunpack.c.l.b16 %v717
      %v786 = vunpack.c.l.b16 %v718
      %v787 = vunpack.c.l.b16 %v719
      %v788 = vunpack.c.l.b16 %v720
      %v789 = vunpack.c.l.b16 %v721
      %v790 = vunpack.c.l.b16 %v722
      %v791 = vunpack.c.l.b16 %v723
      %v792 = vunpack.c.l.b16 %v724
      %v793 = vunpack.c.l.b16 %v725
      %v794 = vunpack.c.l.b16 %v726
      %v795 = vunpack.c.l.b16 %v727
      %v796 = vunpack.c.l.b16 %v728
      %v797 = vpack.c.b16 %v766, %v765
      %v798 = vpack.c.b16 %v768, %v767
      %v799 = vpack.c.b16 %v770, %v769
      %v800 = vpack.c.b16 %v772, %v771
      %v801 = vpack.c.b16 %v774, %v773
      %v802 = vpack.c.b16 %v776, %v775
      %v803 = vpack.c.b16 %v778, %v777
      %v804 = vpack.c.b16 %v780, %v779
      %v805 = vpack.c.b16 %v782, %v781
      %v806 = vpack.c.b16 %v784, %v783
      %v807 = vpack.c.b16 %v786, %v785
      %v808 = vpack.c.b16 %v788, %v787
      %v809 = vpack.c.b16 %v790, %v789
      %v810 = vpack.c.b16 %v792, %v791
      %v811 = vpack.c.b16 %v794, %v793
      %v812 = vpack.c.b16 %v796, %v795
      %v816 = vunpack.c.l.b16 %v730
      %v817 = vunpack.c.l.b16 %v731
      %v818 = vunpack.c.l.b16 %v732
      %v819 = vpack.c.b16 %v817, %v816
      %v820 = vpack.c.b16 %v818, %v818
      %v823 = vsel %vm302, %v797, 0
      %v826 = vsel %vm302, %v798, 0
      %v829 = vsel %vm302, %v799, 0
      %v832 = vsel %vm302, %v800, 0
      %v835 = vsel %vm302, %v801, 0
      %v838 = vsel %vm302, %v802, 0
      %v841 = vsel %vm302, %v803, 0
      %v844 = vsel %vm302, %v804, 0
      %v847 = vsel %vm302, %v805, 0
      %v850 = vsel %vm302, %v806, 0
      %v853 = vsel %vm302, %v807, 0
      %v856 = vsel %vm302, %v808, 0
      %v859 = vsel %vm302, %v809, 0
      %v862 = vsel %vm302, %v810, 0
      %v865 = vsel %vm302, %v811, 0
      %v868 = vsel %vm302, %v812, 0
      %v871 = vsel %vm351, %v820, 0
      %873 = vmatprep.subr.bf16.mxu0 0
      %874 = vmatpush1.bf16.msra.mxu0 %v819
      %875 = vmatprep.subr.bf16.mxu0 0
      %876 = vmatpush1.bf16.msra.mxu0 %v871
      %877 = vmatprep.subr.bf16.mxu0 0
      %878 = vmatpush1.bf16.msra.mxu0 0
      %879 = vmatprep.subr.bf16.mxu0 0
      %880 = vmatpush1.bf16.msra.mxu0 0
      %881 = vmatprep.subr.bf16.mxu0 0
      %882 = vmatpush1.bf16.msra.mxu0 0
      %883 = vmatprep.subr.bf16.mxu0 0
      %884 = vmatpush1.bf16.msra.mxu0 0
      %885 = vmatprep.subr.bf16.mxu0 0
      %886 = vmatpush1.bf16.msra.mxu0 0
      %887 = vmatprep.subr.bf16.mxu0 0
      %888 = vmatpush1.bf16.msra.mxu0 0
      %889 = vmatprep.subr.bf16.mxu0 0
      %890 = vmatpush1.bf16.msra.mxu0 0
      %891 = vmatprep.subr.bf16.mxu0 0
      %892 = vmatpush1.bf16.msra.mxu0 0
      %893 = vmatprep.subr.bf16.mxu0 0
      %894 = vmatpush1.bf16.msra.mxu0 0
      %895 = vmatprep.subr.bf16.mxu0 0
      %896 = vmatpush1.bf16.msra.mxu0 0
      %897 = vmatprep.subr.bf16.mxu0 0
      %898 = vmatpush1.bf16.msra.mxu0 0
      %899 = vmatprep.subr.bf16.mxu0 0
      %900 = vmatpush1.bf16.msra.mxu0 0
      %901 = vmatprep.subr.bf16.mxu0 0
      %902 = vmatpush1.bf16.msra.mxu0 0
      %903 = vmatprep.subr.bf16.mxu0 0
      %904 = vmatpush1.bf16.msra.mxu0 0
      %905 = vmatprep.mubr.bf16.mxu0 0
      %906 = vmatmul.mubr.bf16.gmra.mrb[0].mxu0 %v823
      %v907 = vpop.f32.mrb[0].mxu0
      %v908 = vadd.f32 0.0, %v907
      %v909 = vpop.f32.mrb[0].mxu0
      %v910 = vpop.f32.mrb[0].mxu0
      %v911 = vadd.f32 0.0, %v910
      %v912 = vpop.f32.mrb[0].mxu0
      %913 = vmatprep.mubr.bf16.mxu0 0
      %914 = vmatmul.mubr.bf16.gmra.mrb[0].mxu0 %v826
      %v915 = vpop.f32.mrb[0].mxu0
      %v916 = vadd.f32 0.0, %v915
      %v917 = vpop.f32.mrb[0].mxu0
      %v918 = vpop.f32.mrb[0].mxu0
      %v919 = vadd.f32 0.0, %v918
      %v920 = vpop.f32.mrb[0].mxu0
      %921 = vmatprep.mubr.bf16.mxu0 0
      %922 = vmatmul.mubr.bf16.gmra.mrb[0].mxu0 %v829
      %v923 = vpop.f32.mrb[0].mxu0
      %v924 = vadd.f32 0.0, %v923
      %v925 = vpop.f32.mrb[0].mxu0
      %v926 = vpop.f32.mrb[0].mxu0
      %v927 = vadd.f32 0.0, %v926
      %v928 = vpop.f32.mrb[0].mxu0
      %929 = vmatprep.mubr.bf16.mxu0 0
      %930 = vmatmul.mubr.bf16.gmra.mrb[0].mxu0 %v832
      %v931 = vpop.f32.mrb[0].mxu0
      %v932 = vadd.f32 0.0, %v931
      %v933 = vpop.f32.mrb[0].mxu0
      %v934 = vpop.f32.mrb[0].mxu0
      %v935 = vadd.f32 0.0, %v934
      %v936 = vpop.f32.mrb[0].mxu0
      %937 = vmatprep.mubr.bf16.mxu0 0
      %938 = vmatmul.mubr.bf16.gmra.mrb[0].mxu0 %v835
      %v939 = vpop.f32.mrb[0].mxu0
      %v940 = vadd.f32 0.0, %v939
      %v941 = vpop.f32.mrb[0].mxu0
      %v942 = vpop.f32.mrb[0].mxu0
      %v943 = vadd.f32 0.0, %v942
      %v944 = vpop.f32.mrb[0].mxu0
      %945 = vmatprep.mubr.bf16.mxu0 0
      %946 = vmatmul.mubr.bf16.gmra.mrb[0].mxu0 %v838
      %v947 = vpop.f32.mrb[0].mxu0
      %v948 = vadd.f32 0.0, %v947
      %v949 = vpop.f32.mrb[0].mxu0
      %v950 = vpop.f32.mrb[0].mxu0
      %v951 = vadd.f32 0.0, %v950
      %v952 = vpop.f32.mrb[0].mxu0
      %953 = vmatprep.mubr.bf16.mxu0 0
      %954 = vmatmul.mubr.bf16.gmra.mrb[0].mxu0 %v841
      %v955 = vpop.f32.mrb[0].mxu0
      %v956 = vadd.f32 0.0, %v955
      %v957 = vpop.f32.mrb[0].mxu0
      %v958 = vpop.f32.mrb[0].mxu0
      %v959 = vadd.f32 0.0, %v958
      %v960 = vpop.f32.mrb[0].mxu0
      %961 = vmatprep.mubr.bf16.mxu0 0
      %962 = vmatmul.mubr.bf16.gmra.mrb[0].mxu0 %v844
      %v963 = vpop.f32.mrb[0].mxu0
      %v964 = vadd.f32 0.0, %v963
      %v965 = vpop.f32.mrb[0].mxu0
      %v966 = vpop.f32.mrb[0].mxu0
      %v967 = vadd.f32 0.0, %v966
      %v968 = vpop.f32.mrb[0].mxu0
      %969 = vmatprep.mubr.bf16.mxu0 0
      %970 = vmatmul.mubr.bf16.gmra.mrb[0].mxu0 %v847
      %v971 = vpop.f32.mrb[0].mxu0
      %v972 = vadd.f32 0.0, %v971
      %v973 = vpop.f32.mrb[0].mxu0
      %v974 = vpop.f32.mrb[0].mxu0
      %v975 = vadd.f32 0.0, %v974
      %v976 = vpop.f32.mrb[0].mxu0
      %977 = vmatprep.mubr.bf16.mxu0 0
      %978 = vmatmul.mubr.bf16.gmra.mrb[0].mxu0 %v850
      %v979 = vpop.f32.mrb[0].mxu0
      %v980 = vadd.f32 0.0, %v979
      %v981 = vpop.f32.mrb[0].mxu0
      %v982 = vpop.f32.mrb[0].mxu0
      %v983 = vadd.f32 0.0, %v982
      %v984 = vpop.f32.mrb[0].mxu0
      %985 = vmatprep.mubr.bf16.mxu0 0
      %986 = vmatmul.mubr.bf16.gmra.mrb[0].mxu0 %v853
      %v987 = vpop.f32.mrb[0].mxu0
      %v988 = vadd.f32 0.0, %v987
      %v989 = vpop.f32.mrb[0].mxu0
      %v990 = vpop.f32.mrb[0].mxu0
      %v991 = vadd.f32 0.0, %v990
      %v992 = vpop.f32.mrb[0].mxu0
      %993 = vmatprep.mubr.bf16.mxu0 0
      %994 = vmatmul.mubr.bf16.gmra.mrb[0].mxu0 %v856
      %v995 = vpop.f32.mrb[0].mxu0
      %v996 = vadd.f32 0.0, %v995
      %v997 = vpop.f32.mrb[0].mxu0
      %v998 = vpop.f32.mrb[0].mxu0
      %v999 = vadd.f32 0.0, %v998
      %v1000 = vpop.f32.mrb[0].mxu0
      %1001 = vmatprep.mubr.bf16.mxu0 0
      %1002 = vmatmul.mubr.bf16.gmra.mrb[0].mxu0 %v859
      %v1003 = vpop.f32.mrb[0].mxu0
      %v1004 = vadd.f32 0.0, %v1003
      %v1005 = vpop.f32.mrb[0].mxu0
      %v1006 = vpop.f32.mrb[0].mxu0
      %v1007 = vadd.f32 0.0, %v1006
      %v1008 = vpop.f32.mrb[0].mxu0
      %1009 = vmatprep.mubr.bf16.mxu0 0
      %1010 = vmatmul.mubr.bf16.gmra.mrb[0].mxu0 %v862
      %v1011 = vpop.f32.mrb[0].mxu0
      %v1012 = vadd.f32 0.0, %v1011
      %v1013 = vpop.f32.mrb[0].mxu0
      %v1014 = vpop.f32.mrb[0].mxu0
      %v1015 = vadd.f32 0.0, %v1014
      %v1016 = vpop.f32.mrb[0].mxu0
      %1017 = vmatprep.mubr.bf16.mxu0 0
      %1018 = vmatmul.mubr.bf16.gmra.mrb[0].mxu0 %v865
      %v1019 = vpop.f32.mrb[0].mxu0
      %v1020 = vadd.f32 0.0, %v1019
      %v1021 = vpop.f32.mrb[0].mxu0
      %v1022 = vpop.f32.mrb[0].mxu0
      %v1023 = vadd.f32 0.0, %v1022
      %v1024 = vpop.f32.mrb[0].mxu0
      %1025 = vmatprep.mubr.bf16.mxu0 0
      %1026 = vmatmul.mubr.bf16.gmra.mrb[0].mxu0 %v868
      %v1027 = vpop.f32.mrb[0].mxu0
      %v1028 = vadd.f32 0.0, %v1027
      %v1029 = vpop.f32.mrb[0].mxu0
      %v1030 = vpop.f32.mrb[0].mxu0
      %v1031 = vadd.f32 0.0, %v1030
      %v1032 = vpop.f32.mrb[0].mxu0
      %1033 = vdwg.mxu0
      %v1034 = vadd.f32 %v571, %v908
      %v1035 = vadd.f32 %v574, %v911
      %v1036 = vadd.f32 %v579, %v916
      %v1037 = vadd.f32 %v582, %v919
      %v1038 = vadd.f32 %v587, %v924
      %v1039 = vadd.f32 %v590, %v927
      %v1040 = vadd.f32 %v595, %v932
      %v1041 = vadd.f32 %v598, %v935
      %v1042 = vadd.f32 %v603, %v940
      %v1043 = vadd.f32 %v606, %v943
      %v1044 = vadd.f32 %v611, %v948
      %v1045 = vadd.f32 %v614, %v951
      %v1046 = vadd.f32 %v619, %v956
      %v1047 = vadd.f32 %v622, %v959
      %v1048 = vadd.f32 %v627, %v964
      %v1049 = vadd.f32 %v630, %v967
      %v1050 = vadd.f32 %v635, %v972
      %v1051 = vadd.f32 %v638, %v975
      %v1052 = vadd.f32 %v643, %v980
      %v1053 = vadd.f32 %v646, %v983
      %v1054 = vadd.f32 %v651, %v988
      %v1055 = vadd.f32 %v654, %v991
      %v1056 = vadd.f32 %v659, %v996
      %v1057 = vadd.f32 %v662, %v999
      %v1058 = vadd.f32 %v667, %v1004
      %v1059 = vadd.f32 %v670, %v1007
      %v1060 = vadd.f32 %v675, %v1012
      %v1061 = vadd.f32 %v678, %v1015
      %v1062 = vadd.f32 %v683, %v1020
      %v1063 = vadd.f32 %v686, %v1023
      %v1064 = vadd.f32 %v691, %v1028
      %v1065 = vadd.f32 %v694, %v1031
      %v1066 = vld [vmem:[%s165 + $0x18] sm:$0xf]
      %v1067 = vld [vmem:[%s165 + $0x1c] sm:$0xf]
      %v1068 = vld [vmem:[%s165 + $0x20] sm:$0xf]
      %v1069 = vld [vmem:[%s165 + $0x24] sm:$0xf]
      %v1070 = vld [vmem:[%s165 + $0x28] sm:$0xf]
      %v1071 = vld [vmem:[%s165 + $0x2c] sm:$0xf]
      %v1072 = vld [vmem:[%s165 + $0x30] sm:$0xf]
      %v1073 = vld [vmem:[%s165 + $0x34] sm:$0xf]
      %v1074 = vld [vmem:[%s165 + $0x38] sm:$0xf]
      %v1075 = vld [vmem:[%s165 + $0x3c] sm:$0xf]
      %v1076 = vld [vmem:[%s165 + $0x40] sm:$0xf]
      %v1077 = vld [vmem:[%s165 + $0x44] sm:$0xf]
      %v1078 = vld [vmem:[%s165 + $0x48] sm:$0xf]
      %v1079 = vld [vmem:[%s165 + $0x4c] sm:$0xf]
      %v1080 = vld [vmem:[%s165 + $0x50] sm:$0xf]
      %v1081 = vld [vmem:[%s165 + $0x54] sm:$0xf]
      %v1082 = vld [vmem:[%s165 + $0x58] sm:$0xf]
      %v1083 = vld [vmem:[%s165 + $0x5c] sm:$0xf]
      %v1084 = vld [vmem:[%s165 + $0x60] sm:$0xf]
      %v1085 = vld [vmem:[%s165 + $0x64] sm:$0xf]
      %v1086 = vld [vmem:[%s165 + $0x68] sm:$0xf]
      %v1087 = vld [vmem:[%s165 + $0x6c] sm:$0xf]
      %v1088 = vld [vmem:[%s165 + $0x70] sm:$0xf]
      %v1089 = vld [vmem:[%s165 + $0x74] sm:$0xf]
      %v1090 = vld [vmem:[%s165 + $0x78] sm:$0xf]
      %v1091 = vld [vmem:[%s165 + $0x7c] sm:$0xf]
      %v1092 = vld [vmem:[%s165 + $0x80] sm:$0xf]
      %v1093 = vld [vmem:[%s165 + $0x84] sm:$0xf]
      %v1094 = vld [vmem:[%s165 + $0x88] sm:$0xf]
      %v1095 = vld [vmem:[%s165 + $0x8c] sm:$0xf]
      %v1096 = vld [vmem:[%s165 + $0x90] sm:$0xf]
      %v1097 = vld [vmem:[%s165 + $0x94] sm:$0xf]
      %s1098 = scalar_lea.vmem %s1, 36
      %v1099 = vld [vmem:[%s1098] sm:$0xf]
      %v1100 = vld [vmem:[%s1098 + $0x4] sm:$0xf]
      %v1101 = vld [vmem:[%s1098 + $0x8] sm:$0xf]
      %v1134 = vunpack.c.l.b16 %v1066
      %v1135 = vunpack.c.l.b16 %v1067
      %v1136 = vunpack.c.l.b16 %v1068
      %v1137 = vunpack.c.l.b16 %v1069
      %v1138 = vunpack.c.l.b16 %v1070
      %v1139 = vunpack.c.l.b16 %v1071
      %v1140 = vunpack.c.l.b16 %v1072
      %v1141 = vunpack.c.l.b16 %v1073
      %v1142 = vunpack.c.l.b16 %v1074
      %v1143 = vunpack.c.l.b16 %v1075
      %v1144 = vunpack.c.l.b16 %v1076
      %v1145 = vunpack.c.l.b16 %v1077
      %v1146 = vunpack.c.l.b16 %v1078
      %v1147 = vunpack.c.l.b16 %v1079
      %v1148 = vunpack.c.l.b16 %v1080
      %v1149 = vunpack.c.l.b16 %v1081
      %v1150 = vunpack.c.l.b16 %v1082
      %v1151 = vunpack.c.l.b16 %v1083
      %v1152 = vunpack.c.l.b16 %v1084
      %v1153 = vunpack.c.l.b16 %v1085
      %v1154 = vunpack.c.l.b16 %v1086
      %v1155 = vunpack.c.l.b16 %v1087
      %v1156 = vunpack.c.l.b16 %v1088
      %v1157 = vunpack.c.l.b16 %v1089
      %v1158 = vunpack.c.l.b16 %v1090
      %v1159 = vunpack.c.l.b16 %v1091
      %v1160 = vunpack.c.l.b16 %v1092
      %v1161 = vunpack.c.l.b16 %v1093
      %v1162 = vunpack.c.l.b16 %v1094
      %v1163 = vunpack.c.l.b16 %v1095
      %v1164 = vunpack.c.l.b16 %v1096
      %v1165 = vunpack.c.l.b16 %v1097
      %v1166 = vpack.c.b16 %v1135, %v1134
      %v1167 = vpack.c.b16 %v1137, %v1136
      %v1168 = vpack.c.b16 %v1139, %v1138
      %v1169 = vpack.c.b16 %v1141, %v1140
      %v1170 = vpack.c.b16 %v1143, %v1142
      %v1171 = vpack.c.b16 %v1145, %v1144
      %v1172 = vpack.c.b16 %v1147, %v1146
      %v1173 = vpack.c.b16 %v1149, %v1148
      %v1174 = vpack.c.b16 %v1151, %v1150
      %v1175 = vpack.c.b16 %v1153, %v1152
      %v1176 = vpack.c.b16 %v1155, %v1154
      %v1177 = vpack.c.b16 %v1157, %v1156
      %v1178 = vpack.c.b16 %v1159, %v1158
      %v1179 = vpack.c.b16 %v1161, %v1160
      %v1180 = vpack.c.b16 %v1163, %v1162
      %v1181 = vpack.c.b16 %v1165, %v1164
      %v1185 = vunpack.c.l.b16 %v1099
      %v1186 = vunpack.c.l.b16 %v1100
      %v1187 = vunpack.c.l.b16 %v1101
      %v1188 = vpack.c.b16 %v1186, %v1185
      %v1189 = vpack.c.b16 %v1187, %v1187
      %v1192 = vsel %vm302, %v1166, 0
      %v1195 = vsel %vm302, %v1167, 0
      %v1198 = vsel %vm302, %v1168, 0
      %v1201 = vsel %vm302, %v1169, 0
      %v1204 = vsel %vm302, %v1170, 0
      %v1207 = vsel %vm302, %v1171, 0
      %v1210 = vsel %vm302, %v1172, 0
      %v1213 = vsel %vm302, %v1173, 0
      %v1216 = vsel %vm302, %v1174, 0
      %v1219 = vsel %vm302, %v1175, 0
      %v1222 = vsel %vm302, %v1176, 0
      %v1225 = vsel %vm302, %v1177, 0
      %v1228 = vsel %vm302, %v1178, 0
      %v1231 = vsel %vm302, %v1179, 0
      %v1234 = vsel %vm302, %v1180, 0
      %v1237 = vsel %vm302, %v1181, 0
      %v1240 = vsel %vm351, %v1189, 0
      %1242 = vmatprep.subr.bf16.mxu0 0
      %1243 = vmatpush1.bf16.msra.mxu0 %v1188
      %1244 = vmatprep.subr.bf16.mxu0 0
      %1245 = vmatpush1.bf16.msra.mxu0 %v1240
      %1246 = vmatprep.subr.bf16.mxu0 0
      %1247 = vmatpush1.bf16.msra.mxu0 0
      %1248 = vmatprep.subr.bf16.mxu0 0
      %1249 = vmatpush1.bf16.msra.mxu0 0
      %1250 = vmatprep.subr.bf16.mxu0 0
      %1251 = vmatpush1.bf16.msra.mxu0 0
      %1252 = vmatprep.subr.bf16.mxu0 0
      %1253 = vmatpush1.bf16.msra.mxu0 0
      %1254 = vmatprep.subr.bf16.mxu0 0
      %1255 = vmatpush1.bf16.msra.mxu0 0
      %1256 = vmatprep.subr.bf16.mxu0 0
      %1257 = vmatpush1.bf16.msra.mxu0 0
      %1258 = vmatprep.subr.bf16.mxu0 0
      %1259 = vmatpush1.bf16.msra.mxu0 0
      %1260 = vmatprep.subr.bf16.mxu0 0
      %1261 = vmatpush1.bf16.msra.mxu0 0
      %1262 = vmatprep.subr.bf16.mxu0 0
      %1263 = vmatpush1.bf16.msra.mxu0 0
      %1264 = vmatprep.subr.bf16.mxu0 0
      %1265 = vmatpush1.bf16.msra.mxu0 0
      %1266 = vmatprep.subr.bf16.mxu0 0
      %1267 = vmatpush1.bf16.msra.mxu0 0
      %1268 = vmatprep.subr.bf16.mxu0 0
      %1269 = vmatpush1.bf16.msra.mxu0 0
      %1270 = vmatprep.subr.bf16.mxu0 0
      %1271 = vmatpush1.bf16.msra.mxu0 0
      %1272 = vmatprep.subr.bf16.mxu0 0
      %1273 = vmatpush1.bf16.msra.mxu0 0
      %1274 = vmatprep.mubr.bf16.mxu0 0
      %1275 = vmatmul.mubr.bf16.gmra.mrb[0].mxu0 %v1192
      %v1276 = vpop.f32.mrb[0].mxu0
      %v1277 = vadd.f32 0.0, %v1276
      %v1278 = vpop.f32.mrb[0].mxu0
      %v1279 = vpop.f32.mrb[0].mxu0
      %v1280 = vadd.f32 0.0, %v1279
      %v1281 = vpop.f32.mrb[0].mxu0
      %1282 = vmatprep.mubr.bf16.mxu0 0
      %1283 = vmatmul.mubr.bf16.gmra.mrb[0].mxu0 %v1195
      %v1284 = vpop.f32.mrb[0].mxu0
      %v1285 = vadd.f32 0.0, %v1284
      %v1286 = vpop.f32.mrb[0].mxu0
      %v1287 = vpop.f32.mrb[0].mxu0
      %v1288 = vadd.f32 0.0, %v1287
      %v1289 = vpop.f32.mrb[0].mxu0
      %1290 = vmatprep.mubr.bf16.mxu0 0
      %1291 = vmatmul.mubr.bf16.gmra.mrb[0].mxu0 %v1198
      %v1292 = vpop.f32.mrb[0].mxu0
      %v1293 = vadd.f32 0.0, %v1292
      %v1294 = vpop.f32.mrb[0].mxu0
      %v1295 = vpop.f32.mrb[0].mxu0
      %v1296 = vadd.f32 0.0, %v1295
      %v1297 = vpop.f32.mrb[0].mxu0
      %1298 = vmatprep.mubr.bf16.mxu0 0
      %1299 = vmatmul.mubr.bf16.gmra.mrb[0].mxu0 %v1201
      %v1300 = vpop.f32.mrb[0].mxu0
      %v1301 = vadd.f32 0.0, %v1300
      %v1302 = vpop.f32.mrb[0].mxu0
      %v1303 = vpop.f32.mrb[0].mxu0
      %v1304 = vadd.f32 0.0, %v1303
      %v1305 = vpop.f32.mrb[0].mxu0
      %1306 = vmatprep.mubr.bf16.mxu0 0
      %1307 = vmatmul.mubr.bf16.gmra.mrb[0].mxu0 %v1204
      %v1308 = vpop.f32.mrb[0].mxu0
      %v1309 = vadd.f32 0.0, %v1308
      %v1310 = vpop.f32.mrb[0].mxu0
      %v1311 = vpop.f32.mrb[0].mxu0
      %v1312 = vadd.f32 0.0, %v1311
      %v1313 = vpop.f32.mrb[0].mxu0
      %1314 = vmatprep.mubr.bf16.mxu0 0
      %1315 = vmatmul.mubr.bf16.gmra.mrb[0].mxu0 %v1207
      %v1316 = vpop.f32.mrb[0].mxu0
      %v1317 = vadd.f32 0.0, %v1316
      %v1318 = vpop.f32.mrb[0].mxu0
      %v1319 = vpop.f32.mrb[0].mxu0
      %v1320 = vadd.f32 0.0, %v1319
      %v1321 = vpop.f32.mrb[0].mxu0
      %1322 = vmatprep.mubr.bf16.mxu0 0
      %1323 = vmatmul.mubr.bf16.gmra.mrb[0].mxu0 %v1210
      %v1324 = vpop.f32.mrb[0].mxu0
      %v1325 = vadd.f32 0.0, %v1324
      %v1326 = vpop.f32.mrb[0].mxu0
      %v1327 = vpop.f32.mrb[0].mxu0
      %v1328 = vadd.f32 0.0, %v1327
      %v1329 = vpop.f32.mrb[0].mxu0
      %1330 = vmatprep.mubr.bf16.mxu0 0
      %1331 = vmatmul.mubr.bf16.gmra.mrb[0].mxu0 %v1213
      %v1332 = vpop.f32.mrb[0].mxu0
      %v1333 = vadd.f32 0.0, %v1332
      %v1334 = vpop.f32.mrb[0].mxu0
      %v1335 = vpop.f32.mrb[0].mxu0
      %v1336 = vadd.f32 0.0, %v1335
      %v1337 = vpop.f32.mrb[0].mxu0
      %1338 = vmatprep.mubr.bf16.mxu0 0
      %1339 = vmatmul.mubr.bf16.gmra.mrb[0].mxu0 %v1216
      %v1340 = vpop.f32.mrb[0].mxu0
      %v1341 = vadd.f32 0.0, %v1340
      %v1342 = vpop.f32.mrb[0].mxu0
      %v1343 = vpop.f32.mrb[0].mxu0
      %v1344 = vadd.f32 0.0, %v1343
      %v1345 = vpop.f32.mrb[0].mxu0
      %1346 = vmatprep.mubr.bf16.mxu0 0
      %1347 = vmatmul.mubr.bf16.gmra.mrb[0].mxu0 %v1219
      %v1348 = vpop.f32.mrb[0].mxu0
      %v1349 = vadd.f32 0.0, %v1348
      %v1350 = vpop.f32.mrb[0].mxu0
      %v1351 = vpop.f32.mrb[0].mxu0
      %v1352 = vadd.f32 0.0, %v1351
      %v1353 = vpop.f32.mrb[0].mxu0
      %1354 = vmatprep.mubr.bf16.mxu0 0
      %1355 = vmatmul.mubr.bf16.gmra.mrb[0].mxu0 %v1222
      %v1356 = vpop.f32.mrb[0].mxu0
      %v1357 = vadd.f32 0.0, %v1356
      %v1358 = vpop.f32.mrb[0].mxu0
      %v1359 = vpop.f32.mrb[0].mxu0
      %v1360 = vadd.f32 0.0, %v1359
      %v1361 = vpop.f32.mrb[0].mxu0
      %1362 = vmatprep.mubr.bf16.mxu0 0
      %1363 = vmatmul.mubr.bf16.gmra.mrb[0].mxu0 %v1225
      %v1364 = vpop.f32.mrb[0].mxu0
      %v1365 = vadd.f32 0.0, %v1364
      %v1366 = vpop.f32.mrb[0].mxu0
      %v1367 = vpop.f32.mrb[0].mxu0
      %v1368 = vadd.f32 0.0, %v1367
      %v1369 = vpop.f32.mrb[0].mxu0
      %1370 = vmatprep.mubr.bf16.mxu0 0
      %1371 = vmatmul.mubr.bf16.gmra.mrb[0].mxu0 %v1228
      %v1372 = vpop.f32.mrb[0].mxu0
      %v1373 = vadd.f32 0.0, %v1372
      %v1374 = vpop.f32.mrb[0].mxu0
      %v1375 = vpop.f32.mrb[0].mxu0
      %v1376 = vadd.f32 0.0, %v1375
      %v1377 = vpop.f32.mrb[0].mxu0
      %1378 = vmatprep.mubr.bf16.mxu0 0
      %1379 = vmatmul.mubr.bf16.gmra.mrb[0].mxu0 %v1231
      %v1380 = vpop.f32.mrb[0].mxu0
      %v1381 = vadd.f32 0.0, %v1380
      %v1382 = vpop.f32.mrb[0].mxu0
      %v1383 = vpop.f32.mrb[0].mxu0
      %v1384 = vadd.f32 0.0, %v1383
      %v1385 = vpop.f32.mrb[0].mxu0
      %1386 = vmatprep.mubr.bf16.mxu0 0
      %1387 = vmatmul.mubr.bf16.gmra.mrb[0].mxu0 %v1234
      %v1388 = vpop.f32.mrb[0].mxu0
      %v1389 = vadd.f32 0.0, %v1388
      %v1390 = vpop.f32.mrb[0].mxu0
      %v1391 = vpop.f32.mrb[0].mxu0
      %v1392 = vadd.f32 0.0, %v1391
      %v1393 = vpop.f32.mrb[0].mxu0
      %1394 = vmatprep.mubr.bf16.mxu0 0
      %1395 = vmatmul.mubr.bf16.gmra.mrb[0].mxu0 %v1237
      %v1396 = vpop.f32.mrb[0].mxu0
      %v1397 = vadd.f32 0.0, %v1396
      %v1398 = vpop.f32.mrb[0].mxu0
      %v1399 = vpop.f32.mrb[0].mxu0
      %v1400 = vadd.f32 0.0, %v1399
      %v1401 = vpop.f32.mrb[0].mxu0
      %1402 = vdwg.mxu0
      %v1403 = vadd.f32 %v1034, %v1277
      %v1404 = vadd.f32 %v1035, %v1280
      %v1405 = vadd.f32 %v1036, %v1285
      %v1406 = vadd.f32 %v1037, %v1288
      %v1407 = vadd.f32 %v1038, %v1293
      %v1408 = vadd.f32 %v1039, %v1296
      %v1409 = vadd.f32 %v1040, %v1301
      %v1410 = vadd.f32 %v1041, %v1304
      %v1411 = vadd.f32 %v1042, %v1309
      %v1412 = vadd.f32 %v1043, %v1312
      %v1413 = vadd.f32 %v1044, %v1317
      %v1414 = vadd.f32 %v1045, %v1320
      %v1415 = vadd.f32 %v1046, %v1325
      %v1416 = vadd.f32 %v1047, %v1328
      %v1417 = vadd.f32 %v1048, %v1333
      %v1418 = vadd.f32 %v1049, %v1336
      %v1419 = vadd.f32 %v1050, %v1341
      %v1420 = vadd.f32 %v1051, %v1344
      %v1421 = vadd.f32 %v1052, %v1349
      %v1422 = vadd.f32 %v1053, %v1352
      %v1423 = vadd.f32 %v1054, %v1357
      %v1424 = vadd.f32 %v1055, %v1360
      %v1425 = vadd.f32 %v1056, %v1365
      %v1426 = vadd.f32 %v1057, %v1368
      %v1427 = vadd.f32 %v1058, %v1373
      %v1428 = vadd.f32 %v1059, %v1376
      %v1429 = vadd.f32 %v1060, %v1381
      %v1430 = vadd.f32 %v1061, %v1384
      %v1431 = vadd.f32 %v1062, %v1389
      %v1432 = vadd.f32 %v1063, %v1392
      %v1433 = vadd.f32 %v1064, %v1397
      %v1434 = vadd.f32 %v1065, %v1400
      %v1435 = vld [vmem:[%s165 + $0x20] sm:$0xf]
      %v1436 = vld [vmem:[%s165 + $0x24] sm:$0xf]
      %v1437 = vld [vmem:[%s165 + $0x28] sm:$0xf]
      %v1438 = vld [vmem:[%s165 + $0x2c] sm:$0xf]
      %v1439 = vld [vmem:[%s165 + $0x30] sm:$0xf]
      %v1440 = vld [vmem:[%s165 + $0x34] sm:$0xf]
      %v1441 = vld [vmem:[%s165 + $0x38] sm:$0xf]
      %v1442 = vld [vmem:[%s165 + $0x3c] sm:$0xf]
      %v1443 = vld [vmem:[%s165 + $0x40] sm:$0xf]
      %v1444 = vld [vmem:[%s165 + $0x44] sm:$0xf]
      %v1445 = vld [vmem:[%s165 + $0x48] sm:$0xf]
      %v1446 = vld [vmem:[%s165 + $0x4c] sm:$0xf]
      %v1447 = vld [vmem:[%s165 + $0x50] sm:$0xf]
      %v1448 = vld [vmem:[%s165 + $0x54] sm:$0xf]
      %v1449 = vld [vmem:[%s165 + $0x58] sm:$0xf]
      %v1450 = vld [vmem:[%s165 + $0x5c] sm:$0xf]
      %v1451 = vld [vmem:[%s165 + $0x60] sm:$0xf]
      %v1452 = vld [vmem:[%s165 + $0x64] sm:$0xf]
      %v1453 = vld [vmem:[%s165 + $0x68] sm:$0xf]
      %v1454 = vld [vmem:[%s165 + $0x6c] sm:$0xf]
      %v1455 = vld [vmem:[%s165 + $0x70] sm:$0xf]
      %v1456 = vld [vmem:[%s165 + $0x74] sm:$0xf]
      %v1457 = vld [vmem:[%s165 + $0x78] sm:$0xf]
      %v1458 = vld [vmem:[%s165 + $0x7c] sm:$0xf]
      %v1459 = vld [vmem:[%s165 + $0x80] sm:$0xf]
      %v1460 = vld [vmem:[%s165 + $0x84] sm:$0xf]
      %v1461 = vld [vmem:[%s165 + $0x88] sm:$0xf]
      %v1462 = vld [vmem:[%s165 + $0x8c] sm:$0xf]
      %v1463 = vld [vmem:[%s165 + $0x90] sm:$0xf]
      %v1464 = vld [vmem:[%s165 + $0x94] sm:$0xf]
      %v1465 = vld [vmem:[%s165 + $0x98] sm:$0xf]
      %v1466 = vld [vmem:[%s165 + $0x9c] sm:$0xf]
      %s1467 = scalar_lea.vmem %s1, 48
      %v1468 = vld [vmem:[%s1467] sm:$0xf]
      %v1469 = vld [vmem:[%s1467 + $0x4] sm:$0xf]
      %v1470 = vld [vmem:[%s1467 + $0x8] sm:$0xf]
      %v1503 = vunpack.c.l.b16 %v1435
      %v1504 = vunpack.c.l.b16 %v1436
      %v1505 = vunpack.c.l.b16 %v1437
      %v1506 = vunpack.c.l.b16 %v1438
      %v1507 = vunpack.c.l.b16 %v1439
      %v1508 = vunpack.c.l.b16 %v1440
      %v1509 = vunpack.c.l.b16 %v1441
      %v1510 = vunpack.c.l.b16 %v1442
      %v1511 = vunpack.c.l.b16 %v1443
      %v1512 = vunpack.c.l.b16 %v1444
      %v1513 = vunpack.c.l.b16 %v1445
      %v1514 = vunpack.c.l.b16 %v1446
      %v1515 = vunpack.c.l.b16 %v1447
      %v1516 = vunpack.c.l.b16 %v1448
      %v1517 = vunpack.c.l.b16 %v1449
      %v1518 = vunpack.c.l.b16 %v1450
      %v1519 = vunpack.c.l.b16 %v1451
      %v1520 = vunpack.c.l.b16 %v1452
      %v1521 = vunpack.c.l.b16 %v1453
      %v1522 = vunpack.c.l.b16 %v1454
      %v1523 = vunpack.c.l.b16 %v1455
      %v1524 = vunpack.c.l.b16 %v1456
      %v1525 = vunpack.c.l.b16 %v1457
      %v1526 = vunpack.c.l.b16 %v1458
      %v1527 = vunpack.c.l.b16 %v1459
      %v1528 = vunpack.c.l.b16 %v1460
      %v1529 = vunpack.c.l.b16 %v1461
      %v1530 = vunpack.c.l.b16 %v1462
      %v1531 = vunpack.c.l.b16 %v1463
      %v1532 = vunpack.c.l.b16 %v1464
      %v1533 = vunpack.c.l.b16 %v1465
      %v1534 = vunpack.c.l.b16 %v1466
      %v1535 = vpack.c.b16 %v1504, %v1503
      %v1536 = vpack.c.b16 %v1506, %v1505
      %v1537 = vpack.c.b16 %v1508, %v1507
      %v1538 = vpack.c.b16 %v1510, %v1509
      %v1539 = vpack.c.b16 %v1512, %v1511
      %v1540 = vpack.c.b16 %v1514, %v1513
      %v1541 = vpack.c.b16 %v1516, %v1515
      %v1542 = vpack.c.b16 %v1518, %v1517
      %v1543 = vpack.c.b16 %v1520, %v1519
      %v1544 = vpack.c.b16 %v1522, %v1521
      %v1545 = vpack.c.b16 %v1524, %v1523
      %v1546 = vpack.c.b16 %v1526, %v1525
      %v1547 = vpack.c.b16 %v1528, %v1527
      %v1548 = vpack.c.b16 %v1530, %v1529
      %v1549 = vpack.c.b16 %v1532, %v1531
      %v1550 = vpack.c.b16 %v1534, %v1533
      %v1554 = vunpack.c.l.b16 %v1468
      %v1555 = vunpack.c.l.b16 %v1469
      %v1556 = vunpack.c.l.b16 %v1470
      %v1557 = vpack.c.b16 %v1555, %v1554
      %v1558 = vpack.c.b16 %v1556, %v1556
      %v1561 = vsel %vm302, %v1535, 0
      %v1564 = vsel %vm302, %v1536, 0
      %v1567 = vsel %vm302, %v1537, 0
      %v1570 = vsel %vm302, %v1538, 0
      %v1573 = vsel %vm302, %v1539, 0
      %v1576 = vsel %vm302, %v1540, 0
      %v1579 = vsel %vm302, %v1541, 0
      %v1582 = vsel %vm302, %v1542, 0
      %v1585 = vsel %vm302, %v1543, 0
      %v1588 = vsel %vm302, %v1544, 0
      %v1591 = vsel %vm302, %v1545, 0
      %v1594 = vsel %vm302, %v1546, 0
      %v1597 = vsel %vm302, %v1547, 0
      %v1600 = vsel %vm302, %v1548, 0
      %v1603 = vsel %vm302, %v1549, 0
      %v1606 = vsel %vm302, %v1550, 0
      %v1609 = vsel %vm351, %v1558, 0
      %1611 = vmatprep.subr.bf16.mxu0 0
      %1612 = vmatpush1.bf16.msra.mxu0 %v1557
      %1613 = vmatprep.subr.bf16.mxu0 0
      %1614 = vmatpush1.bf16.msra.mxu0 %v1609
      %1615 = vmatprep.subr.bf16.mxu0 0
      %1616 = vmatpush1.bf16.msra.mxu0 0
      %1617 = vmatprep.subr.bf16.mxu0 0
      %1618 = vmatpush1.bf16.msra.mxu0 0
      %1619 = vmatprep.subr.bf16.mxu0 0
      %1620 = vmatpush1.bf16.msra.mxu0 0
      %1621 = vmatprep.subr.bf16.mxu0 0
      %1622 = vmatpush1.bf16.msra.mxu0 0
      %1623 = vmatprep.subr.bf16.mxu0 0
      %1624 = vmatpush1.bf16.msra.mxu0 0
      %1625 = vmatprep.subr.bf16.mxu0 0
      %1626 = vmatpush1.bf16.msra.mxu0 0
      %1627 = vmatprep.subr.bf16.mxu0 0
      %1628 = vmatpush1.bf16.msra.mxu0 0
      %1629 = vmatprep.subr.bf16.mxu0 0
      %1630 = vmatpush1.bf16.msra.mxu0 0
      %1631 = vmatprep.subr.bf16.mxu0 0
      %1632 = vmatpush1.bf16.msra.mxu0 0
      %1633 = vmatprep.subr.bf16.mxu0 0
      %1634 = vmatpush1.bf16.msra.mxu0 0
      %1635 = vmatprep.subr.bf16.mxu0 0
      %1636 = vmatpush1.bf16.msra.mxu0 0
      %1637 = vmatprep.subr.bf16.mxu0 0
      %1638 = vmatpush1.bf16.msra.mxu0 0
      %1639 = vmatprep.subr.bf16.mxu0 0
      %1640 = vmatpush1.bf16.msra.mxu0 0
      %1641 = vmatprep.subr.bf16.mxu0 0
      %1642 = vmatpush1.bf16.msra.mxu0 0
      %1643 = vmatprep.mubr.bf16.mxu0 0
      %1644 = vmatmul.mubr.bf16.gmra.mrb[0].mxu0 %v1561
      %v1645 = vpop.f32.mrb[0].mxu0
      %v1646 = vadd.f32 0.0, %v1645
      %v1647 = vpop.f32.mrb[0].mxu0
      %v1648 = vpop.f32.mrb[0].mxu0
      %v1649 = vadd.f32 0.0, %v1648
      %v1650 = vpop.f32.mrb[0].mxu0
      %1651 = vmatprep.mubr.bf16.mxu0 0
      %1652 = vmatmul.mubr.bf16.gmra.mrb[0].mxu0 %v1564
      %v1653 = vpop.f32.mrb[0].mxu0
      %v1654 = vadd.f32 0.0, %v1653
      %v1655 = vpop.f32.mrb[0].mxu0
      %v1656 = vpop.f32.mrb[0].mxu0
      %v1657 = vadd.f32 0.0, %v1656
      %v1658 = vpop.f32.mrb[0].mxu0
      %1659 = vmatprep.mubr.bf16.mxu0 0
      %1660 = vmatmul.mubr.bf16.gmra.mrb[0].mxu0 %v1567
      %v1661 = vpop.f32.mrb[0].mxu0
      %v1662 = vadd.f32 0.0, %v1661
      %v1663 = vpop.f32.mrb[0].mxu0
      %v1664 = vpop.f32.mrb[0].mxu0
      %v1665 = vadd.f32 0.0, %v1664
      %v1666 = vpop.f32.mrb[0].mxu0
      %1667 = vmatprep.mubr.bf16.mxu0 0
      %1668 = vmatmul.mubr.bf16.gmra.mrb[0].mxu0 %v1570
      %v1669 = vpop.f32.mrb[0].mxu0
      %v1670 = vadd.f32 0.0, %v1669
      %v1671 = vpop.f32.mrb[0].mxu0
      %v1672 = vpop.f32.mrb[0].mxu0
      %v1673 = vadd.f32 0.0, %v1672
      %v1674 = vpop.f32.mrb[0].mxu0
      %1675 = vmatprep.mubr.bf16.mxu0 0
      %1676 = vmatmul.mubr.bf16.gmra.mrb[0].mxu0 %v1573
      %v1677 = vpop.f32.mrb[0].mxu0
      %v1678 = vadd.f32 0.0, %v1677
      %v1679 = vpop.f32.mrb[0].mxu0
      %v1680 = vpop.f32.mrb[0].mxu0
      %v1681 = vadd.f32 0.0, %v1680
      %v1682 = vpop.f32.mrb[0].mxu0
      %1683 = vmatprep.mubr.bf16.mxu0 0
      %1684 = vmatmul.mubr.bf16.gmra.mrb[0].mxu0 %v1576
      %v1685 = vpop.f32.mrb[0].mxu0
      %v1686 = vadd.f32 0.0, %v1685
      %v1687 = vpop.f32.mrb[0].mxu0
      %v1688 = vpop.f32.mrb[0].mxu0
      %v1689 = vadd.f32 0.0, %v1688
      %v1690 = vpop.f32.mrb[0].mxu0
      %1691 = vmatprep.mubr.bf16.mxu0 0
      %1692 = vmatmul.mubr.bf16.gmra.mrb[0].mxu0 %v1579
      %v1693 = vpop.f32.mrb[0].mxu0
      %v1694 = vadd.f32 0.0, %v1693
      %v1695 = vpop.f32.mrb[0].mxu0
      %v1696 = vpop.f32.mrb[0].mxu0
      %v1697 = vadd.f32 0.0, %v1696
      %v1698 = vpop.f32.mrb[0].mxu0
      %1699 = vmatprep.mubr.bf16.mxu0 0
      %1700 = vmatmul.mubr.bf16.gmra.mrb[0].mxu0 %v1582
      %v1701 = vpop.f32.mrb[0].mxu0
      %v1702 = vadd.f32 0.0, %v1701
      %v1703 = vpop.f32.mrb[0].mxu0
      %v1704 = vpop.f32.mrb[0].mxu0
      %v1705 = vadd.f32 0.0, %v1704
      %v1706 = vpop.f32.mrb[0].mxu0
      %1707 = vmatprep.mubr.bf16.mxu0 0
      %1708 = vmatmul.mubr.bf16.gmra.mrb[0].mxu0 %v1585
      %v1709 = vpop.f32.mrb[0].mxu0
      %v1710 = vadd.f32 0.0, %v1709
      %v1711 = vpop.f32.mrb[0].mxu0
      %v1712 = vpop.f32.mrb[0].mxu0
      %v1713 = vadd.f32 0.0, %v1712
      %v1714 = vpop.f32.mrb[0].mxu0
      %1715 = vmatprep.mubr.bf16.mxu0 0
      %1716 = vmatmul.mubr.bf16.gmra.mrb[0].mxu0 %v1588
      %v1717 = vpop.f32.mrb[0].mxu0
      %v1718 = vadd.f32 0.0, %v1717
      %v1719 = vpop.f32.mrb[0].mxu0
      %v1720 = vpop.f32.mrb[0].mxu0
      %v1721 = vadd.f32 0.0, %v1720
      %v1722 = vpop.f32.mrb[0].mxu0
      %1723 = vmatprep.mubr.bf16.mxu0 0
      %1724 = vmatmul.mubr.bf16.gmra.mrb[0].mxu0 %v1591
      %v1725 = vpop.f32.mrb[0].mxu0
      %v1726 = vadd.f32 0.0, %v1725
      %v1727 = vpop.f32.mrb[0].mxu0
      %v1728 = vpop.f32.mrb[0].mxu0
      %v1729 = vadd.f32 0.0, %v1728
      %v1730 = vpop.f32.mrb[0].mxu0
      %1731 = vmatprep.mubr.bf16.mxu0 0
      %1732 = vmatmul.mubr.bf16.gmra.mrb[0].mxu0 %v1594
      %v1733 = vpop.f32.mrb[0].mxu0
      %v1734 = vadd.f32 0.0, %v1733
      %v1735 = vpop.f32.mrb[0].mxu0
      %v1736 = vpop.f32.mrb[0].mxu0
      %v1737 = vadd.f32 0.0, %v1736
      %v1738 = vpop.f32.mrb[0].mxu0
      %1739 = vmatprep.mubr.bf16.mxu0 0
      %1740 = vmatmul.mubr.bf16.gmra.mrb[0].mxu0 %v1597
      %v1741 = vpop.f32.mrb[0].mxu0
      %v1742 = vadd.f32 0.0, %v1741
      %v1743 = vpop.f32.mrb[0].mxu0
      %v1744 = vpop.f32.mrb[0].mxu0
      %v1745 = vadd.f32 0.0, %v1744
      %v1746 = vpop.f32.mrb[0].mxu0
      %1747 = vmatprep.mubr.bf16.mxu0 0
      %1748 = vmatmul.mubr.bf16.gmra.mrb[0].mxu0 %v1600
      %v1749 = vpop.f32.mrb[0].mxu0
      %v1750 = vadd.f32 0.0, %v1749
      %v1751 = vpop.f32.mrb[0].mxu0
      %v1752 = vpop.f32.mrb[0].mxu0
      %v1753 = vadd.f32 0.0, %v1752
      %v1754 = vpop.f32.mrb[0].mxu0
      %1755 = vmatprep.mubr.bf16.mxu0 0
      %1756 = vmatmul.mubr.bf16.gmra.mrb[0].mxu0 %v1603
      %v1757 = vpop.f32.mrb[0].mxu0
      %v1758 = vadd.f32 0.0, %v1757
      %v1759 = vpop.f32.mrb[0].mxu0
      %v1760 = vpop.f32.mrb[0].mxu0
      %v1761 = vadd.f32 0.0, %v1760
      %v1762 = vpop.f32.mrb[0].mxu0
      %1763 = vmatprep.mubr.bf16.mxu0 0
      %1764 = vmatmul.mubr.bf16.gmra.mrb[0].mxu0 %v1606
      %v1765 = vpop.f32.mrb[0].mxu0
      %v1766 = vadd.f32 0.0, %v1765
      %v1767 = vpop.f32.mrb[0].mxu0
      %v1768 = vpop.f32.mrb[0].mxu0
      %v1769 = vadd.f32 0.0, %v1768
      %v1770 = vpop.f32.mrb[0].mxu0
      %1771 = vdwg.mxu0
      %v1772 = vadd.f32 %v1403, %v1646
      %v1773 = vadd.f32 %v1404, %v1649
      %v1774 = vadd.f32 %v1405, %v1654
      %v1775 = vadd.f32 %v1406, %v1657
      %v1776 = vadd.f32 %v1407, %v1662
      %v1777 = vadd.f32 %v1408, %v1665
      %v1778 = vadd.f32 %v1409, %v1670
      %v1779 = vadd.f32 %v1410, %v1673
      %v1780 = vadd.f32 %v1411, %v1678
      %v1781 = vadd.f32 %v1412, %v1681
      %v1782 = vadd.f32 %v1413, %v1686
      %v1783 = vadd.f32 %v1414, %v1689
      %v1784 = vadd.f32 %v1415, %v1694
      %v1785 = vadd.f32 %v1416, %v1697
      %v1786 = vadd.f32 %v1417, %v1702
      %v1787 = vadd.f32 %v1418, %v1705
      %v1788 = vadd.f32 %v1419, %v1710
      %v1789 = vadd.f32 %v1420, %v1713
      %v1790 = vadd.f32 %v1421, %v1718
      %v1791 = vadd.f32 %v1422, %v1721
      %v1792 = vadd.f32 %v1423, %v1726
      %v1793 = vadd.f32 %v1424, %v1729
      %v1794 = vadd.f32 %v1425, %v1734
      %v1795 = vadd.f32 %v1426, %v1737
      %v1796 = vadd.f32 %v1427, %v1742
      %v1797 = vadd.f32 %v1428, %v1745
      %v1798 = vadd.f32 %v1429, %v1750
      %v1799 = vadd.f32 %v1430, %v1753
      %v1800 = vadd.f32 %v1431, %v1758
      %v1801 = vadd.f32 %v1432, %v1761
      %v1802 = vadd.f32 %v1433, %v1766
      %v1803 = vadd.f32 %v1434, %v1769
      %v1804 = vld [vmem:[%s165 + $0x28] sm:$0xf]
      %v1805 = vld [vmem:[%s165 + $0x2c] sm:$0xf]
      %v1806 = vld [vmem:[%s165 + $0x30] sm:$0xf]
      %v1807 = vld [vmem:[%s165 + $0x34] sm:$0xf]
      %v1808 = vld [vmem:[%s165 + $0x38] sm:$0xf]
      %v1809 = vld [vmem:[%s165 + $0x3c] sm:$0xf]
      %v1810 = vld [vmem:[%s165 + $0x40] sm:$0xf]
      %v1811 = vld [vmem:[%s165 + $0x44] sm:$0xf]
      %v1812 = vld [vmem:[%s165 + $0x48] sm:$0xf]
      %v1813 = vld [vmem:[%s165 + $0x4c] sm:$0xf]
      %v1814 = vld [vmem:[%s165 + $0x50] sm:$0xf]
      %v1815 = vld [vmem:[%s165 + $0x54] sm:$0xf]
      %v1816 = vld [vmem:[%s165 + $0x58] sm:$0xf]
      %v1817 = vld [vmem:[%s165 + $0x5c] sm:$0xf]
      %v1818 = vld [vmem:[%s165 + $0x60] sm:$0xf]
      %v1819 = vld [vmem:[%s165 + $0x64] sm:$0xf]
      %v1820 = vld [vmem:[%s165 + $0x68] sm:$0xf]
      %v1821 = vld [vmem:[%s165 + $0x6c] sm:$0xf]
      %v1822 = vld [vmem:[%s165 + $0x70] sm:$0xf]
      %v1823 = vld [vmem:[%s165 + $0x74] sm:$0xf]
      %v1824 = vld [vmem:[%s165 + $0x78] sm:$0xf]
      %v1825 = vld [vmem:[%s165 + $0x7c] sm:$0xf]
      %v1826 = vld [vmem:[%s165 + $0x80] sm:$0xf]
      %v1827 = vld [vmem:[%s165 + $0x84] sm:$0xf]
      %v1828 = vld [vmem:[%s165 + $0x88] sm:$0xf]
      %v1829 = vld [vmem:[%s165 + $0x8c] sm:$0xf]
      %v1830 = vld [vmem:[%s165 + $0x90] sm:$0xf]
      %v1831 = vld [vmem:[%s165 + $0x94] sm:$0xf]
      %v1832 = vld [vmem:[%s165 + $0x98] sm:$0xf]
      %v1833 = vld [vmem:[%s165 + $0x9c] sm:$0xf]
      %v1834 = vld [vmem:[%s165 + $0xa0] sm:$0xf]
      %v1835 = vld [vmem:[%s165 + $0xa4] sm:$0xf]
      %s1836 = scalar_lea.vmem %s1, 60
      %v1837 = vld [vmem:[%s1836] sm:$0xf]
      %v1838 = vld [vmem:[%s1836 + $0x4] sm:$0xf]
      %v1839 = vld [vmem:[%s1836 + $0x8] sm:$0xf]
      %v1872 = vunpack.c.l.b16 %v1804
      %v1873 = vunpack.c.l.b16 %v1805
      %v1874 = vunpack.c.l.b16 %v1806
      %v1875 = vunpack.c.l.b16 %v1807
      %v1876 = vunpack.c.l.b16 %v1808
      %v1877 = vunpack.c.l.b16 %v1809
      %v1878 = vunpack.c.l.b16 %v1810
      %v1879 = vunpack.c.l.b16 %v1811
      %v1880 = vunpack.c.l.b16 %v1812
      %v1881 = vunpack.c.l.b16 %v1813
      %v1882 = vunpack.c.l.b16 %v1814
      %v1883 = vunpack.c.l.b16 %v1815
      %v1884 = vunpack.c.l.b16 %v1816
      %v1885 = vunpack.c.l.b16 %v1817
      %v1886 = vunpack.c.l.b16 %v1818
      %v1887 = vunpack.c.l.b16 %v1819
      %v1888 = vunpack.c.l.b16 %v1820
      %v1889 = vunpack.c.l.b16 %v1821
      %v1890 = vunpack.c.l.b16 %v1822
      %v1891 = vunpack.c.l.b16 %v1823
      %v1892 = vunpack.c.l.b16 %v1824
      %v1893 = vunpack.c.l.b16 %v1825
      %v1894 = vunpack.c.l.b16 %v1826
      %v1895 = vunpack.c.l.b16 %v1827
      %v1896 = vunpack.c.l.b16 %v1828
      %v1897 = vunpack.c.l.b16 %v1829
      %v1898 = vunpack.c.l.b16 %v1830
      %v1899 = vunpack.c.l.b16 %v1831
      %v1900 = vunpack.c.l.b16 %v1832
      %v1901 = vunpack.c.l.b16 %v1833
      %v1902 = vunpack.c.l.b16 %v1834
      %v1903 = vunpack.c.l.b16 %v1835
      %v1904 = vpack.c.b16 %v1873, %v1872
      %v1905 = vpack.c.b16 %v1875, %v1874
      %v1906 = vpack.c.b16 %v1877, %v1876
      %v1907 = vpack.c.b16 %v1879, %v1878
      %v1908 = vpack.c.b16 %v1881, %v1880
      %v1909 = vpack.c.b16 %v1883, %v1882
      %v1910 = vpack.c.b16 %v1885, %v1884
      %v1911 = vpack.c.b16 %v1887, %v1886
      %v1912 = vpack.c.b16 %v1889, %v1888
      %v1913 = vpack.c.b16 %v1891, %v1890
      %v1914 = vpack.c.b16 %v1893, %v1892
      %v1915 = vpack.c.b16 %v1895, %v1894
      %v1916 = vpack.c.b16 %v1897, %v1896
      %v1917 = vpack.c.b16 %v1899, %v1898
      %v1918 = vpack.c.b16 %v1901, %v1900
      %v1919 = vpack.c.b16 %v1903, %v1902
      %v1923 = vunpack.c.l.b16 %v1837
      %v1924 = vunpack.c.l.b16 %v1838
      %v1925 = vunpack.c.l.b16 %v1839
      %v1926 = vpack.c.b16 %v1924, %v1923
      %v1927 = vpack.c.b16 %v1925, %v1925
      %v1930 = vsel %vm302, %v1904, 0
      %v1933 = vsel %vm302, %v1905, 0
      %v1936 = vsel %vm302, %v1906, 0
      %v1939 = vsel %vm302, %v1907, 0
      %v1942 = vsel %vm302, %v1908, 0
      %v1945 = vsel %vm302, %v1909, 0
      %v1948 = vsel %vm302, %v1910, 0
      %v1951 = vsel %vm302, %v1911, 0
      %v1954 = vsel %vm302, %v1912, 0
      %v1957 = vsel %vm302, %v1913, 0
      %v1960 = vsel %vm302, %v1914, 0
      %v1963 = vsel %vm302, %v1915, 0
      %v1966 = vsel %vm302, %v1916, 0
      %v1969 = vsel %vm302, %v1917, 0
      %v1972 = vsel %vm302, %v1918, 0
      %v1975 = vsel %vm302, %v1919, 0
      %v1978 = vsel %vm351, %v1927, 0
      %1980 = vmatprep.subr.bf16.mxu0 0
      %1981 = vmatpush1.bf16.msra.mxu0 %v1926
      %1982 = vmatprep.subr.bf16.mxu0 0
      %1983 = vmatpush1.bf16.msra.mxu0 %v1978
      %1984 = vmatprep.subr.bf16.mxu0 0
      %1985 = vmatpush1.bf16.msra.mxu0 0
      %1986 = vmatprep.subr.bf16.mxu0 0
      %1987 = vmatpush1.bf16.msra.mxu0 0
      %1988 = vmatprep.subr.bf16.mxu0 0
      %1989 = vmatpush1.bf16.msra.mxu0 0
      %1990 = vmatprep.subr.bf16.mxu0 0
      %1991 = vmatpush1.bf16.msra.mxu0 0
      %1992 = vmatprep.subr.bf16.mxu0 0
      %1993 = vmatpush1.bf16.msra.mxu0 0
      %1994 = vmatprep.subr.bf16.mxu0 0
      %1995 = vmatpush1.bf16.msra.mxu0 0
      %1996 = vmatprep.subr.bf16.mxu0 0
      %1997 = vmatpush1.bf16.msra.mxu0 0
      %1998 = vmatprep.subr.bf16.mxu0 0
      %1999 = vmatpush1.bf16.msra.mxu0 0
      %2000 = vmatprep.subr.bf16.mxu0 0
      %2001 = vmatpush1.bf16.msra.mxu0 0
      %2002 = vmatprep.subr.bf16.mxu0 0
      %2003 = vmatpush1.bf16.msra.mxu0 0
      %2004 = vmatprep.subr.bf16.mxu0 0
      %2005 = vmatpush1.bf16.msra.mxu0 0
      %2006 = vmatprep.subr.bf16.mxu0 0
      %2007 = vmatpush1.bf16.msra.mxu0 0
      %2008 = vmatprep.subr.bf16.mxu0 0
      %2009 = vmatpush1.bf16.msra.mxu0 0
      %2010 = vmatprep.subr.bf16.mxu0 0
      %2011 = vmatpush1.bf16.msra.mxu0 0
      %2012 = vmatprep.mubr.bf16.mxu0 0
      %2013 = vmatmul.mubr.bf16.gmra.mrb[0].mxu0 %v1930
      %v2014 = vpop.f32.mrb[0].mxu0
      %v2015 = vadd.f32 0.0, %v2014
      %v2016 = vpop.f32.mrb[0].mxu0
      %v2017 = vpop.f32.mrb[0].mxu0
      %v2018 = vadd.f32 0.0, %v2017
      %v2019 = vpop.f32.mrb[0].mxu0
      %2020 = vmatprep.mubr.bf16.mxu0 0
      %2021 = vmatmul.mubr.bf16.gmra.mrb[0].mxu0 %v1933
      %v2022 = vpop.f32.mrb[0].mxu0
      %v2023 = vadd.f32 0.0, %v2022
      %v2024 = vpop.f32.mrb[0].mxu0
      %v2025 = vpop.f32.mrb[0].mxu0
      %v2026 = vadd.f32 0.0, %v2025
      %v2027 = vpop.f32.mrb[0].mxu0
      %2028 = vmatprep.mubr.bf16.mxu0 0
      %2029 = vmatmul.mubr.bf16.gmra.mrb[0].mxu0 %v1936
      %v2030 = vpop.f32.mrb[0].mxu0
      %v2031 = vadd.f32 0.0, %v2030
      %v2032 = vpop.f32.mrb[0].mxu0
      %v2033 = vpop.f32.mrb[0].mxu0
      %v2034 = vadd.f32 0.0, %v2033
      %v2035 = vpop.f32.mrb[0].mxu0
      %2036 = vmatprep.mubr.bf16.mxu0 0
      %2037 = vmatmul.mubr.bf16.gmra.mrb[0].mxu0 %v1939
      %v2038 = vpop.f32.mrb[0].mxu0
      %v2039 = vadd.f32 0.0, %v2038
      %v2040 = vpop.f32.mrb[0].mxu0
      %v2041 = vpop.f32.mrb[0].mxu0
      %v2042 = vadd.f32 0.0, %v2041
      %v2043 = vpop.f32.mrb[0].mxu0
      %2044 = vmatprep.mubr.bf16.mxu0 0
      %2045 = vmatmul.mubr.bf16.gmra.mrb[0].mxu0 %v1942
      %v2046 = vpop.f32.mrb[0].mxu0
      %v2047 = vadd.f32 0.0, %v2046
      %v2048 = vpop.f32.mrb[0].mxu0
      %v2049 = vpop.f32.mrb[0].mxu0
      %v2050 = vadd.f32 0.0, %v2049
      %v2051 = vpop.f32.mrb[0].mxu0
      %2052 = vmatprep.mubr.bf16.mxu0 0
      %2053 = vmatmul.mubr.bf16.gmra.mrb[0].mxu0 %v1945
      %v2054 = vpop.f32.mrb[0].mxu0
      %v2055 = vadd.f32 0.0, %v2054
      %v2056 = vpop.f32.mrb[0].mxu0
      %v2057 = vpop.f32.mrb[0].mxu0
      %v2058 = vadd.f32 0.0, %v2057
      %v2059 = vpop.f32.mrb[0].mxu0
      %2060 = vmatprep.mubr.bf16.mxu0 0
      %2061 = vmatmul.mubr.bf16.gmra.mrb[0].mxu0 %v1948
      %v2062 = vpop.f32.mrb[0].mxu0
      %v2063 = vadd.f32 0.0, %v2062
      %v2064 = vpop.f32.mrb[0].mxu0
      %v2065 = vpop.f32.mrb[0].mxu0
      %v2066 = vadd.f32 0.0, %v2065
      %v2067 = vpop.f32.mrb[0].mxu0
      %2068 = vmatprep.mubr.bf16.mxu0 0
      %2069 = vmatmul.mubr.bf16.gmra.mrb[0].mxu0 %v1951
      %v2070 = vpop.f32.mrb[0].mxu0
      %v2071 = vadd.f32 0.0, %v2070
      %v2072 = vpop.f32.mrb[0].mxu0
      %v2073 = vpop.f32.mrb[0].mxu0
      %v2074 = vadd.f32 0.0, %v2073
      %v2075 = vpop.f32.mrb[0].mxu0
      %2076 = vmatprep.mubr.bf16.mxu0 0
      %2077 = vmatmul.mubr.bf16.gmra.mrb[0].mxu0 %v1954
      %v2078 = vpop.f32.mrb[0].mxu0
      %v2079 = vadd.f32 0.0, %v2078
      %v2080 = vpop.f32.mrb[0].mxu0
      %v2081 = vpop.f32.mrb[0].mxu0
      %v2082 = vadd.f32 0.0, %v2081
      %v2083 = vpop.f32.mrb[0].mxu0
      %2084 = vmatprep.mubr.bf16.mxu0 0
      %2085 = vmatmul.mubr.bf16.gmra.mrb[0].mxu0 %v1957
      %v2086 = vpop.f32.mrb[0].mxu0
      %v2087 = vadd.f32 0.0, %v2086
      %v2088 = vpop.f32.mrb[0].mxu0
      %v2089 = vpop.f32.mrb[0].mxu0
      %v2090 = vadd.f32 0.0, %v2089
      %v2091 = vpop.f32.mrb[0].mxu0
      %2092 = vmatprep.mubr.bf16.mxu0 0
      %2093 = vmatmul.mubr.bf16.gmra.mrb[0].mxu0 %v1960
      %v2094 = vpop.f32.mrb[0].mxu0
      %v2095 = vadd.f32 0.0, %v2094
      %v2096 = vpop.f32.mrb[0].mxu0
      %v2097 = vpop.f32.mrb[0].mxu0
      %v2098 = vadd.f32 0.0, %v2097
      %v2099 = vpop.f32.mrb[0].mxu0
      %2100 = vmatprep.mubr.bf16.mxu0 0
      %2101 = vmatmul.mubr.bf16.gmra.mrb[0].mxu0 %v1963
      %v2102 = vpop.f32.mrb[0].mxu0
      %v2103 = vadd.f32 0.0, %v2102
      %v2104 = vpop.f32.mrb[0].mxu0
      %v2105 = vpop.f32.mrb[0].mxu0
      %v2106 = vadd.f32 0.0, %v2105
      %v2107 = vpop.f32.mrb[0].mxu0
      %2108 = vmatprep.mubr.bf16.mxu0 0
      %2109 = vmatmul.mubr.bf16.gmra.mrb[0].mxu0 %v1966
      %v2110 = vpop.f32.mrb[0].mxu0
      %v2111 = vadd.f32 0.0, %v2110
      %v2112 = vpop.f32.mrb[0].mxu0
      %v2113 = vpop.f32.mrb[0].mxu0
      %v2114 = vadd.f32 0.0, %v2113
      %v2115 = vpop.f32.mrb[0].mxu0
      %2116 = vmatprep.mubr.bf16.mxu0 0
      %2117 = vmatmul.mubr.bf16.gmra.mrb[0].mxu0 %v1969
      %v2118 = vpop.f32.mrb[0].mxu0
      %v2119 = vadd.f32 0.0, %v2118
      %v2120 = vpop.f32.mrb[0].mxu0
      %v2121 = vpop.f32.mrb[0].mxu0
      %v2122 = vadd.f32 0.0, %v2121
      %v2123 = vpop.f32.mrb[0].mxu0
      %2124 = vmatprep.mubr.bf16.mxu0 0
      %2125 = vmatmul.mubr.bf16.gmra.mrb[0].mxu0 %v1972
      %v2126 = vpop.f32.mrb[0].mxu0
      %v2127 = vadd.f32 0.0, %v2126
      %v2128 = vpop.f32.mrb[0].mxu0
      %v2129 = vpop.f32.mrb[0].mxu0
      %v2130 = vadd.f32 0.0, %v2129
      %v2131 = vpop.f32.mrb[0].mxu0
      %2132 = vmatprep.mubr.bf16.mxu0 0
      %2133 = vmatmul.mubr.bf16.gmra.mrb[0].mxu0 %v1975
      %v2134 = vpop.f32.mrb[0].mxu0
      %v2135 = vadd.f32 0.0, %v2134
      %v2136 = vpop.f32.mrb[0].mxu0
      %v2137 = vpop.f32.mrb[0].mxu0
      %v2138 = vadd.f32 0.0, %v2137
      %v2139 = vpop.f32.mrb[0].mxu0
      %2140 = vdwg.mxu0
      %v2141 = vadd.f32 %v1772, %v2015
      %v2142 = vadd.f32 %v1773, %v2018
      %v2143 = vadd.f32 %v1774, %v2023
      %v2144 = vadd.f32 %v1775, %v2026
      %v2145 = vadd.f32 %v1776, %v2031
      %v2146 = vadd.f32 %v1777, %v2034
      %v2147 = vadd.f32 %v1778, %v2039
      %v2148 = vadd.f32 %v1779, %v2042
      %v2149 = vadd.f32 %v1780, %v2047
      %v2150 = vadd.f32 %v1781, %v2050
      %v2151 = vadd.f32 %v1782, %v2055
      %v2152 = vadd.f32 %v1783, %v2058
      %v2153 = vadd.f32 %v1784, %v2063
      %v2154 = vadd.f32 %v1785, %v2066
      %v2155 = vadd.f32 %v1786, %v2071
      %v2156 = vadd.f32 %v1787, %v2074
      %v2157 = vadd.f32 %v1788, %v2079
      %v2158 = vadd.f32 %v1789, %v2082
      %v2159 = vadd.f32 %v1790, %v2087
      %v2160 = vadd.f32 %v1791, %v2090
      %v2161 = vadd.f32 %v1792, %v2095
      %v2162 = vadd.f32 %v1793, %v2098
      %v2163 = vadd.f32 %v1794, %v2103
      %v2164 = vadd.f32 %v1795, %v2106
      %v2165 = vadd.f32 %v1796, %v2111
      %v2166 = vadd.f32 %v1797, %v2114
      %v2167 = vadd.f32 %v1798, %v2119
      %v2168 = vadd.f32 %v1799, %v2122
      %v2169 = vadd.f32 %v1800, %v2127
      %v2170 = vadd.f32 %v1801, %v2130
      %v2171 = vadd.f32 %v1802, %v2135
      %v2172 = vadd.f32 %v1803, %v2138
      %v2173 = vld [vmem:[%s165 + $0x30] sm:$0xf]
      %v2174 = vld [vmem:[%s165 + $0x34] sm:$0xf]
      %v2175 = vld [vmem:[%s165 + $0x38] sm:$0xf]
      %v2176 = vld [vmem:[%s165 + $0x3c] sm:$0xf]
      %v2177 = vld [vmem:[%s165 + $0x40] sm:$0xf]
      %v2178 = vld [vmem:[%s165 + $0x44] sm:$0xf]
      %v2179 = vld [vmem:[%s165 + $0x48] sm:$0xf]
      %v2180 = vld [vmem:[%s165 + $0x4c] sm:$0xf]
      %v2181 = vld [vmem:[%s165 + $0x50] sm:$0xf]
      %v2182 = vld [vmem:[%s165 + $0x54] sm:$0xf]
      %v2183 = vld [vmem:[%s165 + $0x58] sm:$0xf]
      %v2184 = vld [vmem:[%s165 + $0x5c] sm:$0xf]
      %v2185 = vld [vmem:[%s165 + $0x60] sm:$0xf]
      %v2186 = vld [vmem:[%s165 + $0x64] sm:$0xf]
      %v2187 = vld [vmem:[%s165 + $0x68] sm:$0xf]
      %v2188 = vld [vmem:[%s165 + $0x6c] sm:$0xf]
      %v2189 = vld [vmem:[%s165 + $0x70] sm:$0xf]
      %v2190 = vld [vmem:[%s165 + $0x74] sm:$0xf]
      %v2191 = vld [vmem:[%s165 + $0x78] sm:$0xf]
      %v2192 = vld [vmem:[%s165 + $0x7c] sm:$0xf]
      %v2193 = vld [vmem:[%s165 + $0x80] sm:$0xf]
      %v2194 = vld [vmem:[%s165 + $0x84] sm:$0xf]
      %v2195 = vld [vmem:[%s165 + $0x88] sm:$0xf]
      %v2196 = vld [vmem:[%s165 + $0x8c] sm:$0xf]
      %v2197 = vld [vmem:[%s165 + $0x90] sm:$0xf]
      %v2198 = vld [vmem:[%s165 + $0x94] sm:$0xf]
      %v2199 = vld [vmem:[%s165 + $0x98] sm:$0xf]
      %v2200 = vld [vmem:[%s165 + $0x9c] sm:$0xf]
      %v2201 = vld [vmem:[%s165 + $0xa0] sm:$0xf]
      %v2202 = vld [vmem:[%s165 + $0xa4] sm:$0xf]
      %v2203 = vld [vmem:[%s165 + $0xa8] sm:$0xf]
      %v2204 = vld [vmem:[%s165 + $0xac] sm:$0xf]
      %s2205 = scalar_lea.vmem %s1, 72
      %v2206 = vld [vmem:[%s2205] sm:$0xf]
      %v2207 = vld [vmem:[%s2205 + $0x4] sm:$0xf]
      %v2208 = vld [vmem:[%s2205 + $0x8] sm:$0xf]
      %v2241 = vunpack.c.l.b16 %v2173
      %v2242 = vunpack.c.l.b16 %v2174
      %v2243 = vunpack.c.l.b16 %v2175
      %v2244 = vunpack.c.l.b16 %v2176
      %v2245 = vunpack.c.l.b16 %v2177
      %v2246 = vunpack.c.l.b16 %v2178
      %v2247 = vunpack.c.l.b16 %v2179
      %v2248 = vunpack.c.l.b16 %v2180
      %v2249 = vunpack.c.l.b16 %v2181
      %v2250 = vunpack.c.l.b16 %v2182
      %v2251 = vunpack.c.l.b16 %v2183
      %v2252 = vunpack.c.l.b16 %v2184
      %v2253 = vunpack.c.l.b16 %v2185
      %v2254 = vunpack.c.l.b16 %v2186
      %v2255 = vunpack.c.l.b16 %v2187
      %v2256 = vunpack.c.l.b16 %v2188
      %v2257 = vunpack.c.l.b16 %v2189
      %v2258 = vunpack.c.l.b16 %v2190
      %v2259 = vunpack.c.l.b16 %v2191
      %v2260 = vunpack.c.l.b16 %v2192
      %v2261 = vunpack.c.l.b16 %v2193
      %v2262 = vunpack.c.l.b16 %v2194
      %v2263 = vunpack.c.l.b16 %v2195
      %v2264 = vunpack.c.l.b16 %v2196
      %v2265 = vunpack.c.l.b16 %v2197
      %v2266 = vunpack.c.l.b16 %v2198
      %v2267 = vunpack.c.l.b16 %v2199
      %v2268 = vunpack.c.l.b16 %v2200
      %v2269 = vunpack.c.l.b16 %v2201
      %v2270 = vunpack.c.l.b16 %v2202
      %v2271 = vunpack.c.l.b16 %v2203
      %v2272 = vunpack.c.l.b16 %v2204
      %v2273 = vpack.c.b16 %v2242, %v2241
      %v2274 = vpack.c.b16 %v2244, %v2243
      %v2275 = vpack.c.b16 %v2246, %v2245
      %v2276 = vpack.c.b16 %v2248, %v2247
      %v2277 = vpack.c.b16 %v2250, %v2249
      %v2278 = vpack.c.b16 %v2252, %v2251
      %v2279 = vpack.c.b16 %v2254, %v2253
      %v2280 = vpack.c.b16 %v2256, %v2255
      %v2281 = vpack.c.b16 %v2258, %v2257
      %v2282 = vpack.c.b16 %v2260, %v2259
      %v2283 = vpack.c.b16 %v2262, %v2261
      %v2284 = vpack.c.b16 %v2264, %v2263
      %v2285 = vpack.c.b16 %v2266, %v2265
      %v2286 = vpack.c.b16 %v2268, %v2267
      %v2287 = vpack.c.b16 %v2270, %v2269
      %v2288 = vpack.c.b16 %v2272, %v2271
      %v2292 = vunpack.c.l.b16 %v2206
      %v2293 = vunpack.c.l.b16 %v2207
      %v2294 = vunpack.c.l.b16 %v2208
      %v2295 = vpack.c.b16 %v2293, %v2292
      %v2296 = vpack.c.b16 %v2294, %v2294
      %v2299 = vsel %vm302, %v2273, 0
      %v2302 = vsel %vm302, %v2274, 0
      %v2305 = vsel %vm302, %v2275, 0
      %v2308 = vsel %vm302, %v2276, 0
      %v2311 = vsel %vm302, %v2277, 0
      %v2314 = vsel %vm302, %v2278, 0
      %v2317 = vsel %vm302, %v2279, 0
      %v2320 = vsel %vm302, %v2280, 0
      %v2323 = vsel %vm302, %v2281, 0
      %v2326 = vsel %vm302, %v2282, 0
      %v2329 = vsel %vm302, %v2283, 0
      %v2332 = vsel %vm302, %v2284, 0
      %v2335 = vsel %vm302, %v2285, 0
      %v2338 = vsel %vm302, %v2286, 0
      %v2341 = vsel %vm302, %v2287, 0
      %v2344 = vsel %vm302, %v2288, 0
      %v2347 = vsel %vm351, %v2296, 0
      %2349 = vmatprep.subr.bf16.mxu0 0
      %2350 = vmatpush1.bf16.msra.mxu0 %v2295
      %2351 = vmatprep.subr.bf16.mxu0 0
      %2352 = vmatpush1.bf16.msra.mxu0 %v2347
      %2353 = vmatprep.subr.bf16.mxu0 0
      %2354 = vmatpush1.bf16.msra.mxu0 0
      %2355 = vmatprep.subr.bf16.mxu0 0
      %2356 = vmatpush1.bf16.msra.mxu0 0
      %2357 = vmatprep.subr.bf16.mxu0 0
      %2358 = vmatpush1.bf16.msra.mxu0 0
      %2359 = vmatprep.subr.bf16.mxu0 0
      %2360 = vmatpush1.bf16.msra.mxu0 0
      %2361 = vmatprep.subr.bf16.mxu0 0
      %2362 = vmatpush1.bf16.msra.mxu0 0
      %2363 = vmatprep.subr.bf16.mxu0 0
      %2364 = vmatpush1.bf16.msra.mxu0 0
      %2365 = vmatprep.subr.bf16.mxu0 0
      %2366 = vmatpush1.bf16.msra.mxu0 0
      %2367 = vmatprep.subr.bf16.mxu0 0
      %2368 = vmatpush1.bf16.msra.mxu0 0
      %2369 = vmatprep.subr.bf16.mxu0 0
      %2370 = vmatpush1.bf16.msra.mxu0 0
      %2371 = vmatprep.subr.bf16.mxu0 0
      %2372 = vmatpush1.bf16.msra.mxu0 0
      %2373 = vmatprep.subr.bf16.mxu0 0
      %2374 = vmatpush1.bf16.msra.mxu0 0
      %2375 = vmatprep.subr.bf16.mxu0 0
      %2376 = vmatpush1.bf16.msra.mxu0 0
      %2377 = vmatprep.subr.bf16.mxu0 0
      %2378 = vmatpush1.bf16.msra.mxu0 0
      %2379 = vmatprep.subr.bf16.mxu0 0
      %2380 = vmatpush1.bf16.msra.mxu0 0
      %2381 = vmatprep.mubr.bf16.mxu0 0
      %2382 = vmatmul.mubr.bf16.gmra.mrb[0].mxu0 %v2299
      %v2383 = vpop.f32.mrb[0].mxu0
      %v2384 = vadd.f32 0.0, %v2383
      %v2385 = vpop.f32.mrb[0].mxu0
      %v2386 = vpop.f32.mrb[0].mxu0
      %v2387 = vadd.f32 0.0, %v2386
      %v2388 = vpop.f32.mrb[0].mxu0
      %2389 = vmatprep.mubr.bf16.mxu0 0
      %2390 = vmatmul.mubr.bf16.gmra.mrb[0].mxu0 %v2302
      %v2391 = vpop.f32.mrb[0].mxu0
      %v2392 = vadd.f32 0.0, %v2391
      %v2393 = vpop.f32.mrb[0].mxu0
      %v2394 = vpop.f32.mrb[0].mxu0
      %v2395 = vadd.f32 0.0, %v2394
      %v2396 = vpop.f32.mrb[0].mxu0
      %2397 = vmatprep.mubr.bf16.mxu0 0
      %2398 = vmatmul.mubr.bf16.gmra.mrb[0].mxu0 %v2305
      %v2399 = vpop.f32.mrb[0].mxu0
      %v2400 = vadd.f32 0.0, %v2399
      %v2401 = vpop.f32.mrb[0].mxu0
      %v2402 = vpop.f32.mrb[0].mxu0
      %v2403 = vadd.f32 0.0, %v2402
      %v2404 = vpop.f32.mrb[0].mxu0
      %2405 = vmatprep.mubr.bf16.mxu0 0
      %2406 = vmatmul.mubr.bf16.gmra.mrb[0].mxu0 %v2308
      %v2407 = vpop.f32.mrb[0].mxu0
      %v2408 = vadd.f32 0.0, %v2407
      %v2409 = vpop.f32.mrb[0].mxu0
      %v2410 = vpop.f32.mrb[0].mxu0
      %v2411 = vadd.f32 0.0, %v2410
      %v2412 = vpop.f32.mrb[0].mxu0
      %2413 = vmatprep.mubr.bf16.mxu0 0
      %2414 = vmatmul.mubr.bf16.gmra.mrb[0].mxu0 %v2311
      %v2415 = vpop.f32.mrb[0].mxu0
      %v2416 = vadd.f32 0.0, %v2415
      %v2417 = vpop.f32.mrb[0].mxu0
      %v2418 = vpop.f32.mrb[0].mxu0
      %v2419 = vadd.f32 0.0, %v2418
      %v2420 = vpop.f32.mrb[0].mxu0
      %2421 = vmatprep.mubr.bf16.mxu0 0
      %2422 = vmatmul.mubr.bf16.gmra.mrb[0].mxu0 %v2314
      %v2423 = vpop.f32.mrb[0].mxu0
      %v2424 = vadd.f32 0.0, %v2423
      %v2425 = vpop.f32.mrb[0].mxu0
      %v2426 = vpop.f32.mrb[0].mxu0
      %v2427 = vadd.f32 0.0, %v2426
      %v2428 = vpop.f32.mrb[0].mxu0
      %2429 = vmatprep.mubr.bf16.mxu0 0
      %2430 = vmatmul.mubr.bf16.gmra.mrb[0].mxu0 %v2317
      %v2431 = vpop.f32.mrb[0].mxu0
      %v2432 = vadd.f32 0.0, %v2431
      %v2433 = vpop.f32.mrb[0].mxu0
      %v2434 = vpop.f32.mrb[0].mxu0
      %v2435 = vadd.f32 0.0, %v2434
      %v2436 = vpop.f32.mrb[0].mxu0
      %2437 = vmatprep.mubr.bf16.mxu0 0
      %2438 = vmatmul.mubr.bf16.gmra.mrb[0].mxu0 %v2320
      %v2439 = vpop.f32.mrb[0].mxu0
      %v2440 = vadd.f32 0.0, %v2439
      %v2441 = vpop.f32.mrb[0].mxu0
      %v2442 = vpop.f32.mrb[0].mxu0
      %v2443 = vadd.f32 0.0, %v2442
      %v2444 = vpop.f32.mrb[0].mxu0
      %2445 = vmatprep.mubr.bf16.mxu0 0
      %2446 = vmatmul.mubr.bf16.gmra.mrb[0].mxu0 %v2323
      %v2447 = vpop.f32.mrb[0].mxu0
      %v2448 = vadd.f32 0.0, %v2447
      %v2449 = vpop.f32.mrb[0].mxu0
      %v2450 = vpop.f32.mrb[0].mxu0
      %v2451 = vadd.f32 0.0, %v2450
      %v2452 = vpop.f32.mrb[0].mxu0
      %2453 = vmatprep.mubr.bf16.mxu0 0
      %2454 = vmatmul.mubr.bf16.gmra.mrb[0].mxu0 %v2326
      %v2455 = vpop.f32.mrb[0].mxu0
      %v2456 = vadd.f32 0.0, %v2455
      %v2457 = vpop.f32.mrb[0].mxu0
      %v2458 = vpop.f32.mrb[0].mxu0
      %v2459 = vadd.f32 0.0, %v2458
      %v2460 = vpop.f32.mrb[0].mxu0
      %2461 = vmatprep.mubr.bf16.mxu0 0
      %2462 = vmatmul.mubr.bf16.gmra.mrb[0].mxu0 %v2329
      %v2463 = vpop.f32.mrb[0].mxu0
      %v2464 = vadd.f32 0.0, %v2463
      %v2465 = vpop.f32.mrb[0].mxu0
      %v2466 = vpop.f32.mrb[0].mxu0
      %v2467 = vadd.f32 0.0, %v2466
      %v2468 = vpop.f32.mrb[0].mxu0
      %2469 = vmatprep.mubr.bf16.mxu0 0
      %2470 = vmatmul.mubr.bf16.gmra.mrb[0].mxu0 %v2332
      %v2471 = vpop.f32.mrb[0].mxu0
      %v2472 = vadd.f32 0.0, %v2471
      %v2473 = vpop.f32.mrb[0].mxu0
      %v2474 = vpop.f32.mrb[0].mxu0
      %v2475 = vadd.f32 0.0, %v2474
      %v2476 = vpop.f32.mrb[0].mxu0
      %2477 = vmatprep.mubr.bf16.mxu0 0
      %2478 = vmatmul.mubr.bf16.gmra.mrb[0].mxu0 %v2335
      %v2479 = vpop.f32.mrb[0].mxu0
      %v2480 = vadd.f32 0.0, %v2479
      %v2481 = vpop.f32.mrb[0].mxu0
      %v2482 = vpop.f32.mrb[0].mxu0
      %v2483 = vadd.f32 0.0, %v2482
      %v2484 = vpop.f32.mrb[0].mxu0
      %2485 = vmatprep.mubr.bf16.mxu0 0
      %2486 = vmatmul.mubr.bf16.gmra.mrb[0].mxu0 %v2338
      %v2487 = vpop.f32.mrb[0].mxu0
      %v2488 = vadd.f32 0.0, %v2487
      %v2489 = vpop.f32.mrb[0].mxu0
      %v2490 = vpop.f32.mrb[0].mxu0
      %v2491 = vadd.f32 0.0, %v2490
      %v2492 = vpop.f32.mrb[0].mxu0
      %2493 = vmatprep.mubr.bf16.mxu0 0
      %2494 = vmatmul.mubr.bf16.gmra.mrb[0].mxu0 %v2341
      %v2495 = vpop.f32.mrb[0].mxu0
      %v2496 = vadd.f32 0.0, %v2495
      %v2497 = vpop.f32.mrb[0].mxu0
      %v2498 = vpop.f32.mrb[0].mxu0
      %v2499 = vadd.f32 0.0, %v2498
      %v2500 = vpop.f32.mrb[0].mxu0
      %2501 = vmatprep.mubr.bf16.mxu0 0
      %2502 = vmatmul.mubr.bf16.gmra.mrb[0].mxu0 %v2344
      %v2503 = vpop.f32.mrb[0].mxu0
      %v2504 = vadd.f32 0.0, %v2503
      %v2505 = vpop.f32.mrb[0].mxu0
      %v2506 = vpop.f32.mrb[0].mxu0
      %v2507 = vadd.f32 0.0, %v2506
      %v2508 = vpop.f32.mrb[0].mxu0
      %2509 = vdwg.mxu0
      %v2510 = vadd.f32 %v2141, %v2384
      %v2511 = vadd.f32 %v2142, %v2387
      %v2512 = vadd.f32 %v2143, %v2392
      %v2513 = vadd.f32 %v2144, %v2395
      %v2514 = vadd.f32 %v2145, %v2400
      %v2515 = vadd.f32 %v2146, %v2403
      %v2516 = vadd.f32 %v2147, %v2408
      %v2517 = vadd.f32 %v2148, %v2411
      %v2518 = vadd.f32 %v2149, %v2416
      %v2519 = vadd.f32 %v2150, %v2419
      %v2520 = vadd.f32 %v2151, %v2424
      %v2521 = vadd.f32 %v2152, %v2427
      %v2522 = vadd.f32 %v2153, %v2432
      %v2523 = vadd.f32 %v2154, %v2435
      %v2524 = vadd.f32 %v2155, %v2440
      %v2525 = vadd.f32 %v2156, %v2443
      %v2526 = vadd.f32 %v2157, %v2448
      %v2527 = vadd.f32 %v2158, %v2451
      %v2528 = vadd.f32 %v2159, %v2456
      %v2529 = vadd.f32 %v2160, %v2459
      %v2530 = vadd.f32 %v2161, %v2464
      %v2531 = vadd.f32 %v2162, %v2467
      %v2532 = vadd.f32 %v2163, %v2472
      %v2533 = vadd.f32 %v2164, %v2475
      %v2534 = vadd.f32 %v2165, %v2480
      %v2535 = vadd.f32 %v2166, %v2483
      %v2536 = vadd.f32 %v2167, %v2488
      %v2537 = vadd.f32 %v2168, %v2491
      %v2538 = vadd.f32 %v2169, %v2496
      %v2539 = vadd.f32 %v2170, %v2499
      %v2540 = vadd.f32 %v2171, %v2504
      %v2541 = vadd.f32 %v2172, %v2507
      %v2542 = vld [vmem:[%s2] sm:$0x1]
      %v2544 = vlaneseq
      %v2545 = vshrl.u32 %v2544, 7
      %v2546 = vsub.s32 0, %v2545
      %v2547 = vrot.slane %v2542, %v2546
      %v2549 = vadd.f32 %v2510, %v2547
      %v2550 = vadd.f32 %v2511, %v2547
      %v2551 = vadd.f32 %v2512, %v2547
      %v2552 = vadd.f32 %v2513, %v2547
      %v2553 = vadd.f32 %v2514, %v2547
      %v2554 = vadd.f32 %v2515, %v2547
      %v2555 = vadd.f32 %v2516, %v2547
      %v2556 = vadd.f32 %v2517, %v2547
      %v2557 = vadd.f32 %v2518, %v2547
      %v2558 = vadd.f32 %v2519, %v2547
      %v2559 = vadd.f32 %v2520, %v2547
      %v2560 = vadd.f32 %v2521, %v2547
      %v2561 = vadd.f32 %v2522, %v2547
      %v2562 = vadd.f32 %v2523, %v2547
      %v2563 = vadd.f32 %v2524, %v2547
      %v2564 = vadd.f32 %v2525, %v2547
      %v2565 = vadd.f32 %v2526, %v2547
      %v2566 = vadd.f32 %v2527, %v2547
      %v2567 = vadd.f32 %v2528, %v2547
      %v2568 = vadd.f32 %v2529, %v2547
      %v2569 = vadd.f32 %v2530, %v2547
      %v2570 = vadd.f32 %v2531, %v2547
      %v2571 = vadd.f32 %v2532, %v2547
      %v2572 = vadd.f32 %v2533, %v2547
      %v2573 = vadd.f32 %v2534, %v2547
      %v2574 = vadd.f32 %v2535, %v2547
      %v2575 = vadd.f32 %v2536, %v2547
      %v2576 = vadd.f32 %v2537, %v2547
      %v2577 = vadd.f32 %v2538, %v2547
      %v2578 = vadd.f32 %v2539, %v2547
      %v2579 = vadd.f32 %v2540, %v2547
      %v2580 = vadd.f32 %v2541, %v2547
      %v2581 = vmax.f32 %v2549, 0.0
      %v2582 = vmax.f32 %v2550, 0.0
      %v2583 = vmax.f32 %v2551, 0.0
      %v2584 = vmax.f32 %v2552, 0.0
      %v2585 = vmax.f32 %v2553, 0.0
      %v2586 = vmax.f32 %v2554, 0.0
      %v2587 = vmax.f32 %v2555, 0.0
      %v2588 = vmax.f32 %v2556, 0.0
      %v2589 = vmax.f32 %v2557, 0.0
      %v2590 = vmax.f32 %v2558, 0.0
      %v2591 = vmax.f32 %v2559, 0.0
      %v2592 = vmax.f32 %v2560, 0.0
      %v2593 = vmax.f32 %v2561, 0.0
      %v2594 = vmax.f32 %v2562, 0.0
      %v2595 = vmax.f32 %v2563, 0.0
      %v2596 = vmax.f32 %v2564, 0.0
      %v2597 = vmax.f32 %v2565, 0.0
      %v2598 = vmax.f32 %v2566, 0.0
      %v2599 = vmax.f32 %v2567, 0.0
      %v2600 = vmax.f32 %v2568, 0.0
      %v2601 = vmax.f32 %v2569, 0.0
      %v2602 = vmax.f32 %v2570, 0.0
      %v2603 = vmax.f32 %v2571, 0.0
      %v2604 = vmax.f32 %v2572, 0.0
      %v2605 = vmax.f32 %v2573, 0.0
      %v2606 = vmax.f32 %v2574, 0.0
      %v2607 = vmax.f32 %v2575, 0.0
      %v2608 = vmax.f32 %v2576, 0.0
      %v2609 = vmax.f32 %v2577, 0.0
      %v2610 = vmax.f32 %v2578, 0.0
      %v2611 = vmax.f32 %v2579, 0.0
      %v2612 = vmax.f32 %v2580, 0.0
      %v2613 = vpack.c.bf16 %v2582, %v2581
      %v2614 = vpack.c.bf16 %v2584, %v2583
      %v2615 = vpack.c.bf16 %v2586, %v2585
      %v2616 = vpack.c.bf16 %v2588, %v2587
      %v2617 = vpack.c.bf16 %v2590, %v2589
      %v2618 = vpack.c.bf16 %v2592, %v2591
      %v2619 = vpack.c.bf16 %v2594, %v2593
      %v2620 = vpack.c.bf16 %v2596, %v2595
      %v2621 = vpack.c.bf16 %v2598, %v2597
      %v2622 = vpack.c.bf16 %v2600, %v2599
      %v2623 = vpack.c.bf16 %v2602, %v2601
      %v2624 = vpack.c.bf16 %v2604, %v2603
      %v2625 = vpack.c.bf16 %v2606, %v2605
      %v2626 = vpack.c.bf16 %v2608, %v2607
      %v2627 = vpack.c.bf16 %v2610, %v2609
      %v2628 = vpack.c.bf16 %v2612, %v2611
      %v2645 = vunpack.c.l.b16 %v2613
      %v2646 = vunpack.c.h.b16 %v2613
      %v2647 = vunpack.c.l.b16 %v2614
      %v2648 = vunpack.c.h.b16 %v2614
      %v2649 = vunpack.c.l.b16 %v2615
      %v2650 = vunpack.c.h.b16 %v2615
      %v2651 = vunpack.c.l.b16 %v2616
      %v2652 = vunpack.c.h.b16 %v2616
      %v2653 = vunpack.c.l.b16 %v2617
      %v2654 = vunpack.c.h.b16 %v2617
      %v2655 = vunpack.c.l.b16 %v2618
      %v2656 = vunpack.c.h.b16 %v2618
      %v2657 = vunpack.c.l.b16 %v2619
      %v2658 = vunpack.c.h.b16 %v2619
      %v2659 = vunpack.c.l.b16 %v2620
      %v2660 = vunpack.c.h.b16 %v2620
      %v2661 = vunpack.c.l.b16 %v2621
      %v2662 = vunpack.c.h.b16 %v2621
      %v2663 = vunpack.c.l.b16 %v2622
      %v2664 = vunpack.c.h.b16 %v2622
      %v2665 = vunpack.c.l.b16 %v2623
      %v2666 = vunpack.c.h.b16 %v2623
      %v2667 = vunpack.c.l.b16 %v2624
      %v2668 = vunpack.c.h.b16 %v2624
      %v2669 = vunpack.c.l.b16 %v2625
      %v2670 = vunpack.c.h.b16 %v2625
      %v2671 = vunpack.c.l.b16 %v2626
      %v2672 = vunpack.c.h.b16 %v2626
      %v2673 = vunpack.c.l.b16 %v2627
      %v2674 = vunpack.c.h.b16 %v2627
      %v2675 = vunpack.c.l.b16 %v2628
      %v2676 = vunpack.c.h.b16 %v2628
      %v2677 = vpack.c.b16 %v2645, %v2645
      %v2678 = vpack.c.b16 %v2646, %v2646
      %v2679 = vpack.c.b16 %v2647, %v2647
      %v2680 = vpack.c.b16 %v2648, %v2648
      %v2681 = vpack.c.b16 %v2649, %v2649
      %v2682 = vpack.c.b16 %v2650, %v2650
      %v2683 = vpack.c.b16 %v2651, %v2651
      %v2684 = vpack.c.b16 %v2652, %v2652
      %v2685 = vpack.c.b16 %v2653, %v2653
      %v2686 = vpack.c.b16 %v2654, %v2654
      %v2687 = vpack.c.b16 %v2655, %v2655
      %v2688 = vpack.c.b16 %v2656, %v2656
      %v2689 = vpack.c.b16 %v2657, %v2657
      %v2690 = vpack.c.b16 %v2658, %v2658
      %v2691 = vpack.c.b16 %v2659, %v2659
      %v2692 = vpack.c.b16 %v2660, %v2660
      %v2693 = vpack.c.b16 %v2661, %v2661
      %v2694 = vpack.c.b16 %v2662, %v2662
      %v2695 = vpack.c.b16 %v2663, %v2663
      %v2696 = vpack.c.b16 %v2664, %v2664
      %v2697 = vpack.c.b16 %v2665, %v2665
      %v2698 = vpack.c.b16 %v2666, %v2666
      %v2699 = vpack.c.b16 %v2667, %v2667
      %v2700 = vpack.c.b16 %v2668, %v2668
      %v2701 = vpack.c.b16 %v2669, %v2669
      %v2702 = vpack.c.b16 %v2670, %v2670
      %v2703 = vpack.c.b16 %v2671, %v2671
      %v2704 = vpack.c.b16 %v2672, %v2672
      %v2705 = vpack.c.b16 %v2673, %v2673
      %v2706 = vpack.c.b16 %v2674, %v2674
      %v2707 = vpack.c.b16 %v2675, %v2675
      %v2708 = vpack.c.b16 %v2676, %v2676
      %2741 = vst [vmem:[%s170] sm:$0xf] %v2677
      %2742 = vst [vmem:[%s170 + $0x4] sm:$0xf] %v2678
      %2743 = vst [vmem:[%s170 + $0x8] sm:$0xf] %v2679
      %2744 = vst [vmem:[%s170 + $0xc] sm:$0xf] %v2680
      %2745 = vst [vmem:[%s170 + $0x10] sm:$0xf] %v2681
      %2746 = vst [vmem:[%s170 + $0x14] sm:$0xf] %v2682
      %2747 = vst [vmem:[%s170 + $0x18] sm:$0xf] %v2683
      %2748 = vst [vmem:[%s170 + $0x1c] sm:$0xf] %v2684
      %2749 = vst [vmem:[%s170 + $0x20] sm:$0xf] %v2685
      %2750 = vst [vmem:[%s170 + $0x24] sm:$0xf] %v2686
      %2751 = vst [vmem:[%s170 + $0x28] sm:$0xf] %v2687
      %2752 = vst [vmem:[%s170 + $0x2c] sm:$0xf] %v2688
      %2753 = vst [vmem:[%s170 + $0x30] sm:$0xf] %v2689
      %2754 = vst [vmem:[%s170 + $0x34] sm:$0xf] %v2690
      %2755 = vst [vmem:[%s170 + $0x38] sm:$0xf] %v2691
      %2756 = vst [vmem:[%s170 + $0x3c] sm:$0xf] %v2692
      %2757 = vst [vmem:[%s170 + $0x40] sm:$0xf] %v2693
      %2758 = vst [vmem:[%s170 + $0x44] sm:$0xf] %v2694
      %2759 = vst [vmem:[%s170 + $0x48] sm:$0xf] %v2695
      %2760 = vst [vmem:[%s170 + $0x4c] sm:$0xf] %v2696
      %2761 = vst [vmem:[%s170 + $0x50] sm:$0xf] %v2697
      %2762 = vst [vmem:[%s170 + $0x54] sm:$0xf] %v2698
      %2763 = vst [vmem:[%s170 + $0x58] sm:$0xf] %v2699
      %2764 = vst [vmem:[%s170 + $0x5c] sm:$0xf] %v2700
      %2765 = vst [vmem:[%s170 + $0x60] sm:$0xf] %v2701
      %2766 = vst [vmem:[%s170 + $0x64] sm:$0xf] %v2702
      %2767 = vst [vmem:[%s170 + $0x68] sm:$0xf] %v2703
      %2768 = vst [vmem:[%s170 + $0x6c] sm:$0xf] %v2704
      %2769 = vst [vmem:[%s170 + $0x70] sm:$0xf] %v2705
      %2770 = vst [vmem:[%s170 + $0x74] sm:$0xf] %v2706
      %2771 = vst [vmem:[%s170 + $0x78] sm:$0xf] %v2707
      %2772 = vst [vmem:[%s170 + $0x7c] sm:$0xf] %v2708
      %p2773 = scmp.lt.s32.totalorder %s14, 1
      %s2774 = scalar_select %p2773, %s14, 1
      %s2775 = smul.addr %s2774, 32
      %s2776 = smul.addr %s2775, 4
      %s2777 = scalar_lea.vmem %s3, %s2776
      // Predicated region
      $region33: #{net_forward.4} parent=31 // pred_check
        %p2778 = pneg %p100
      $region34: #{net_forward.4} parent=31 // pred_check_branch
        %2780 = sbr.rel (%p2778) target = $region36
      $region35: #{net_forward.4} parent=31 // pred_region
        _
      $region36: #{net_forward.4} parent=31 // pred_fallthru
        _
    $region32: #{net_forward.4} parent=5 // pred_fallthru
      _
    %p2781 = scmp.le.s32.totalorder 2, %s9
    // Predicated region
    $region37: #{net_forward.4} parent=5 // pred_check
      %p2782 = pneg %p2781
    $region38: #{net_forward.4} parent=5 // pred_check_branch
      %2784 = sbr.rel (%p2782) target = $region40
    $region39: #{net_forward.4} parent=5 // pred_region
      %s2785 = ssub.s32 %s9, 2
      // Predicated region
      $region41: #{net_forward.4} parent=39 // pred_check
        %p2786 = pneg %p106
      $region42: #{net_forward.4} parent=39 // pred_check_branch
        %2788 = sbr.rel (%p2786) target = $region44
      $region43: #{net_forward.4} parent=39 // pred_region
        %p2789 = scmp.lt.s32.totalorder %s15, 1
        %s2790 = scalar_select %p2789, %s15, 1
        %s2791 = smul.addr %s2790, 32
        %s2792 = smul.addr %s2791, 4
        %s2793 = scalar_lea.vmem %s3, %s2792
      $region44: #{net_forward.4} parent=39 // pred_fallthru
        _
    $region40: #{net_forward.4} parent=5 // pred_fallthru
      _
  $region6: #{net_forward.4} parent=0 // loop_footer
    %s13 = sadd.s32 1, %s9
  $region7: #{net_forward.4} parent=0 // loop_footer_branch
    %8 = sbr.rel target = $region3
  $region8: #{net_forward.4} parent=0 // loop_exit
    _

// kernel: net_forward.7
$region0: #{net_forward.7}
  #allocation0 [shape = 'u32[]', space=smem, size = 0x4, offset = 0x4, fixed_abs, tag = 'smem constant byte address 0x4 - core index']
  #allocation1 [shape = 'u32[144,128]{1,0:T(1,128)}', space=vmem, size = 0x12000, scoped, tag = 'internal scratch']
  #allocation2 [shape = 'f32[16,256]{1,0:T(8,128)}', space=vmem, size = 0x4000, scoped, tag = 'scratch operand']
  %s0 = inlined_call_operand.vmem [shape: bf16[16,512], index: 0, kind: input, shape index: {}]
  %s1 = inlined_call_operand.vmem [shape: bf16[512,256], index: 1, kind: input, shape index: {}]
  %s2 = inlined_call_operand.vmem [shape: f32[1,256], index: 2, kind: input, shape index: {}]
  %s3 = inlined_call_operand.vmem [shape: bf16[256,128], index: 3, kind: input, shape index: {}]
  %s4 = inlined_call_operand.vmem [shape: f32[1,128], index: 4, kind: input, shape index: {}]
  %s5 = inlined_call_operand.vmem [shape: bf16[128,128], index: 5, kind: input, shape index: {}]
  %s6 = inlined_call_operand.vmem [shape: f32[1,128], index: 6, kind: input, shape index: {}]
  %s7 = inlined_call_operand.vmem [shape: f32[16,128], index: 7, kind: output, shape index: {}]
  %s8 = sld [smem:[#allocation0]]
  $region107: #{net_forward.7} parent=0
    _
  %s10 = ssub.s32 1, %s8
  %s11 = scalar_select 0, %s10, %s8
  $region1: #{net_forward.7} parent=0
    #allocation3 [shape = 'u8[16384]{0}', space=vmem, size = 0x4000, scoped, tag = 'input window, operand 0']
    loop: start=0, step=1, limit=4
    $region2: #{net_forward.7} parent=1 // loop_pre_header
      _
    $region3: #{net_forward.7} parent=1 // loop_header
      %s13 = sphi 0, %s17
      %p14 = scmp.ge.s32.totalorder %s13, 4
      %s23 = sphi 0, %s25
      %s26 = sphi 0, %s23
      %s27 = sphi 0, %s26
      %s43 = sphi 0, %s27
      %s49 = sphi 0, %s51
      %s52 = sphi 0, %s49
      %s53 = sphi 0, %s52
      %s69 = sphi 0, %s53
      %s73 = sphi 0, %s73
      %s75 = sphi 0, %s73
      %s76 = sphi 0, %s75
      %s90 = sphi 0, %s76
      %s94 = sphi 0, %s94
      %s96 = sphi 0, %s94
      %s97 = sphi 0, %s96
      %s111 = sphi 0, %s97
      %s115 = sphi 0, %s115
      %s117 = sphi 0, %s115
      %s118 = sphi 0, %s117
      %s132 = sphi 0, %s118
      %s136 = sphi 0, %s136
      %s138 = sphi 0, %s136
      %s139 = sphi 0, %s138
      %s153 = sphi 0, %s139
      %s157 = sphi 0, %s157
      %s159 = sphi 0, %s157
      %s160 = sphi 0, %s159
      %s174 = sphi 0, %s160
      %s178 = sphi 0, %s178
      %s180 = sphi 0, %s178
      %s181 = sphi 0, %s180
      %s195 = sphi 0, %s181
    $region4: #{net_forward.7} parent=1 // loop_header_branch
      %16 = sbr.rel (%p14) target = $region8
    $region5: #{net_forward.7} parent=1 // loop_body
      %s18 = ssub.s32 %s13, 1
      %s19 = ssub.s32 %s13, 2
      %s20 = sadd.s32 %s13, 1
      %s21 = ssub.s32 %s13, %s20
      %p22 = scmp.eq.s32.totalorder %s21, 0
      %s24 = sadd.s32 %s23, 1
      %s25 = scalar_select %p22, %s23, %s24
      %p28 = pneg %p22
      %p29 = scmp.eq.s32.totalorder %s13, 1
      %p30 = por %p28, %p29
      %p31 = scmp.ne.s32.totalorder %s23, %s26
      %p32 = scmp.eq.s32.totalorder %s13, 0
      %p33 = por %p31, %p32
      %p34 = scmp.ne.s32.totalorder %s23, %s26
      %p35 = scmp.eq.s32.totalorder %s18, 1
      %p36 = por %p34, %p35
      %p37 = scmp.ne.s32.totalorder %s26, %s27
      %p38 = scmp.eq.s32.totalorder %s18, 0
      %p39 = por %p37, %p38
      %p40 = scmp.ne.s32.totalorder %s26, %s27
      %p41 = scmp.eq.s32.totalorder %s19, 1
      %p42 = por %p40, %p41
      %p44 = scmp.ne.s32.totalorder %s27, %s43
      %p45 = scmp.eq.s32.totalorder %s19, 0
      %p46 = por %p44, %p45
      %s47 = ssub.s32 %s13, %s20
      %p48 = scmp.eq.s32.totalorder %s47, 0
      %s50 = sadd.s32 %s49, 1
      %s51 = scalar_select %p48, %s49, %s50
      %p54 = pneg %p48
      %p55 = scmp.eq.s32.totalorder %s13, 1
      %p56 = por %p54, %p55
      %p57 = scmp.ne.s32.totalorder %s49, %s52
      %p58 = scmp.eq.s32.totalorder %s13, 0
      %p59 = por %p57, %p58
      %p60 = scmp.ne.s32.totalorder %s49, %s52
      %p61 = scmp.eq.s32.totalorder %s18, 1
      %p62 = por %p60, %p61
      %p63 = scmp.ne.s32.totalorder %s52, %s53
      %p64 = scmp.eq.s32.totalorder %s18, 0
      %p65 = por %p63, %p64
      %p66 = scmp.ne.s32.totalorder %s52, %s53
      %p67 = scmp.eq.s32.totalorder %s19, 1
      %p68 = por %p66, %p67
      %p70 = scmp.ne.s32.totalorder %s53, %s69
      %p71 = scmp.eq.s32.totalorder %s19, 0
      %p72 = por %p70, %p71
      %s74 = sadd.s32 %s73, 1
      %p77 = scmp.eq.s32.totalorder %s13, 1
      %p78 = scmp.ne.s32.totalorder %s73, %s75
      %p79 = scmp.eq.s32.totalorder %s13, 0
      %p80 = por %p78, %p79
      %p81 = scmp.ne.s32.totalorder %s73, %s75
      %p82 = scmp.eq.s32.totalorder %s18, 1
      %p83 = por %p81, %p82
      %p84 = scmp.ne.s32.totalorder %s75, %s76
      %p85 = scmp.eq.s32.totalorder %s18, 0
      %p86 = por %p84, %p85
      %p87 = scmp.ne.s32.totalorder %s75, %s76
      %p88 = scmp.eq.s32.totalorder %s19, 1
      %p89 = por %p87, %p88
      %p91 = scmp.ne.s32.totalorder %s76, %s90
      %p92 = scmp.eq.s32.totalorder %s19, 0
      %p93 = por %p91, %p92
      %s95 = sadd.s32 %s94, 1
      %p98 = scmp.eq.s32.totalorder %s13, 1
      %p99 = scmp.ne.s32.totalorder %s94, %s96
      %p100 = scmp.eq.s32.totalorder %s13, 0
      %p101 = por %p99, %p100
      %p102 = scmp.ne.s32.totalorder %s94, %s96
      %p103 = scmp.eq.s32.totalorder %s18, 1
      %p104 = por %p102, %p103
      %p105 = scmp.ne.s32.totalorder %s96, %s97
      %p106 = scmp.eq.s32.totalorder %s18, 0
      %p107 = por %p105, %p106
      %p108 = scmp.ne.s32.totalorder %s96, %s97
      %p109 = scmp.eq.s32.totalorder %s19, 1
      %p110 = por %p108, %p109
      %p112 = scmp.ne.s32.totalorder %s97, %s111
      %p113 = scmp.eq.s32.totalorder %s19, 0
      %p114 = por %p112, %p113
      %s116 = sadd.s32 %s115, 1
      %p119 = scmp.eq.s32.totalorder %s13, 1
      %p120 = scmp.ne.s32.totalorder %s115, %s117
      %p121 = scmp.eq.s32.totalorder %s13, 0
      %p122 = por %p120, %p121
      %p123 = scmp.ne.s32.totalorder %s115, %s117
      %p124 = scmp.eq.s32.totalorder %s18, 1
      %p125 = por %p123, %p124
      %p126 = scmp.ne.s32.totalorder %s117, %s118
      %p127 = scmp.eq.s32.totalorder %s18, 0
      %p128 = por %p126, %p127
      %p129 = scmp.ne.s32.totalorder %s117, %s118
      %p130 = scmp.eq.s32.totalorder %s19, 1
      %p131 = por %p129, %p130
      %p133 = scmp.ne.s32.totalorder %s118, %s132
      %p134 = scmp.eq.s32.totalorder %s19, 0
      %p135 = por %p133, %p134
      %s137 = sadd.s32 %s136, 1
      %p140 = scmp.eq.s32.totalorder %s13, 1
      %p141 = scmp.ne.s32.totalorder %s136, %s138
      %p142 = scmp.eq.s32.totalorder %s13, 0
      %p143 = por %p141, %p142
      %p144 = scmp.ne.s32.totalorder %s136, %s138
      %p145 = scmp.eq.s32.totalorder %s18, 1
      %p146 = por %p144, %p145
      %p147 = scmp.ne.s32.totalorder %s138, %s139
      %p148 = scmp.eq.s32.totalorder %s18, 0
      %p149 = por %p147, %p148
      %p150 = scmp.ne.s32.totalorder %s138, %s139
      %p151 = scmp.eq.s32.totalorder %s19, 1
      %p152 = por %p150, %p151
      %p154 = scmp.ne.s32.totalorder %s139, %s153
      %p155 = scmp.eq.s32.totalorder %s19, 0
      %p156 = por %p154, %p155
      %s158 = sadd.s32 %s157, 1
      %p161 = scmp.eq.s32.totalorder %s13, 1
      %p162 = scmp.ne.s32.totalorder %s157, %s159
      %p163 = scmp.eq.s32.totalorder %s13, 0
      %p164 = por %p162, %p163
      %p165 = scmp.ne.s32.totalorder %s157, %s159
      %p166 = scmp.eq.s32.totalorder %s18, 1
      %p167 = por %p165, %p166
      %p168 = scmp.ne.s32.totalorder %s159, %s160
      %p169 = scmp.eq.s32.totalorder %s18, 0
      %p170 = por %p168, %p169
      %p171 = scmp.ne.s32.totalorder %s159, %s160
      %p172 = scmp.eq.s32.totalorder %s19, 1
      %p173 = por %p171, %p172
      %p175 = scmp.ne.s32.totalorder %s160, %s174
      %p176 = scmp.eq.s32.totalorder %s19, 0
      %p177 = por %p175, %p176
      %s179 = sadd.s32 %s178, 1
      %p182 = scmp.eq.s32.totalorder %s13, 1
      %p183 = scmp.ne.s32.totalorder %s178, %s180
      %p184 = scmp.eq.s32.totalorder %s13, 0
      %p185 = por %p183, %p184
      %p186 = scmp.ne.s32.totalorder %s178, %s180
      %p187 = scmp.eq.s32.totalorder %s18, 1
      %p188 = por %p186, %p187
      %p189 = scmp.ne.s32.totalorder %s180, %s181
      %p190 = scmp.eq.s32.totalorder %s18, 0
      %p191 = por %p189, %p190
      %p192 = scmp.ne.s32.totalorder %s180, %s181
      %p193 = scmp.eq.s32.totalorder %s19, 1
      %p194 = por %p192, %p193
      %p196 = scmp.ne.s32.totalorder %s181, %s195
      %p197 = scmp.eq.s32.totalorder %s19, 0
      %p198 = por %p196, %p197
      %p199 = scmp.le.s32.totalorder 1, %s13
      %p200 = scmp.lt.s32.totalorder %s13, 3
      %p201 = pnand %p199, %p200
      %p202 = pneg %p201
      // Predicated region
      $region9: #{net_forward.7} parent=5 // pred_check
        _
      $region10: #{net_forward.7} parent=5 // pred_check_branch
        %204 = sbr.rel (%p201) target = $region12
      $region11: #{net_forward.7} parent=5 // pred_region
        %s205 = ssub.s32 %s13, 1
        // Predicated region
        $region13: #{net_forward.7} parent=11 // pred_check
          %p206 = pneg %p86
        $region14: #{net_forward.7} parent=11 // pred_check_branch
          %208 = sbr.rel (%p206) target = $region16
        $region15: #{net_forward.7} parent=11 // pred_region
          _
        $region16: #{net_forward.7} parent=11 // pred_fallthru
          _
        // Predicated region
        $region17: #{net_forward.7} parent=11 // pred_check
          %p209 = pneg %p107
        $region18: #{net_forward.7} parent=11 // pred_check_branch
          %211 = sbr.rel (%p209) target = $region20
        $region19: #{net_forward.7} parent=11 // pred_region
          _
        $region20: #{net_forward.7} parent=11 // pred_fallthru
          _
        // Predicated region
        $region21: #{net_forward.7} parent=11 // pred_check
          %p212 = pneg %p128
        $region22: #{net_forward.7} parent=11 // pred_check_branch
          %214 = sbr.rel (%p212) target = $region24
        $region23: #{net_forward.7} parent=11 // pred_region
          _
        $region24: #{net_forward.7} parent=11 // pred_fallthru
          _
        // Predicated region
        $region25: #{net_forward.7} parent=11 // pred_check
          %p215 = pneg %p149
        $region26: #{net_forward.7} parent=11 // pred_check_branch
          %217 = sbr.rel (%p215) target = $region28
        $region27: #{net_forward.7} parent=11 // pred_region
          _
        $region28: #{net_forward.7} parent=11 // pred_fallthru
          _
        // Predicated region
        $region29: #{net_forward.7} parent=11 // pred_check
          %p218 = pneg %p170
        $region30: #{net_forward.7} parent=11 // pred_check_branch
          %220 = sbr.rel (%p218) target = $region32
        $region31: #{net_forward.7} parent=11 // pred_region
          _
        $region32: #{net_forward.7} parent=11 // pred_fallthru
          _
      $region12: #{net_forward.7} parent=5 // pred_fallthru
        _
      %p221 = scmp.lt.s32.totalorder %s13, 2
      // Predicated region
      $region33: #{net_forward.7} parent=5 // pred_check
        %p222 = pneg %p221
      $region34: #{net_forward.7} parent=5 // pred_check_branch
        %224 = sbr.rel (%p222) target = $region36
      $region35: #{net_forward.7} parent=5 // pred_region
        // Predicated region
        $region37: #{net_forward.7} parent=35 // pred_check
          %p225 = pneg %p33
        $region38: #{net_forward.7} parent=35 // pred_check_branch
          %227 = sbr.rel (%p225) target = $region40
        $region39: #{net_forward.7} parent=35 // pred_region
          %s228 = sand.u32 %s23, 1
          %s229 = sand.u32 %s23, 1
          %s230 = smul.addr %s229, 16
          %s231 = scalar_lea.vmem [#allocation3], %s230
          %s232 = smul.u32 2, %s13
          %s233 = smul.addr %s232, 4
          %s234 = scalar_lea.vmem %s0, %s233
          // Predicated region
          $region41: #{net_forward.7} parent=39 // pred_check
            _
          $region42: #{net_forward.7} parent=39 // pred_check_branch
            %236 = sbr.rel (0) target = $region44
          $region43: #{net_forward.7} parent=39 // pred_region
            // Predicated region
            $region45: #{net_forward.7} parent=43 // pred_check
              _
            $region46: #{net_forward.7} parent=43 // pred_check_branch
              %238 = sbr.rel (0) target = $region48
            $region47: #{net_forward.7} parent=43 // pred_region
              // Predicated region
              $region60: #{net_forward.7} parent=47 // pred_check
                _
              $region61: #{net_forward.7} parent=47 // pred_check_branch
                %255 = sbr.rel (0) target = $region63
              $region62: #{net_forward.7} parent=47 // pred_region
                loop: start=0, step=1, limit=1
                $region64: #{net_forward.7} parent=62 // loop_pre_header
                  _
                $region65: #{net_forward.7} parent=62 // loop_header
                  %s257 = sphi 0, %s261
                  %p258 = scmp.ge.s32.totalorder %s257, 1
                  %s262 = sphi %s234, %s234
                  %s263 = sphi %s231, %s231
                $region66: #{net_forward.7} parent=62 // loop_header_branch
                  %260 = sbr.rel (%p258) target = $region70
                $region67: #{net_forward.7} parent=62 // loop_body
                  %v264 = vld [vmem:[%s262] sm:$0xff]
                  %265 = vst [vmem:[%s263] sm:$0xff] %v264
                  %v266 = vld [vmem:[%s262 + $0x10] sm:$0xff]
                  %267 = vst [vmem:[%s263 + $0x8] sm:$0xff] %v266
                $region68: #{net_forward.7} parent=62 // loop_footer
                  %s261 = sadd.s32 1, %s257
                $region69: #{net_forward.7} parent=62 // loop_footer_branch
                  %256 = sbr.rel target = $region65
                $region70: #{net_forward.7} parent=62 // loop_exit
                  _
              $region63: #{net_forward.7} parent=47 // pred_fallthru
                _
              // Predicated region
              $region71: #{net_forward.7} parent=47 // pred_check
                _
              $region72: #{net_forward.7} parent=47 // pred_check_branch
                %269 = sbr.rel target = $region74
              $region73: #{net_forward.7} parent=47 // pred_region
                _
              $region74: #{net_forward.7} parent=47 // pred_fallthru
                _
            $region48: #{net_forward.7} parent=43 // pred_fallthru
              _
            // Predicated region
            $region49: #{net_forward.7} parent=43 // pred_check
              _
            $region50: #{net_forward.7} parent=43 // pred_check_branch
              %240 = sbr.rel target = $region52
            $region51: #{net_forward.7} parent=43 // pred_region
              loop: start=0, step=1, limit=1
              $region53: #{net_forward.7} parent=51 // loop_pre_header
                _
              $region54: #{net_forward.7} parent=51 // loop_header
                %s243 = sphi 0, %s247
                %p244 = scmp.ge.s32.totalorder %s243, 1
                %s248 = sphi %s234, %s234
                %s249 = sphi %s231, %s231
              $region55: #{net_forward.7} parent=51 // loop_header_branch
                %246 = sbr.rel (%p244) target = $region59
              $region56: #{net_forward.7} parent=51 // loop_body
                %v250 = vld [vmem:[%s248] sm:$0xff]
                %251 = vst [vmem:[%s249] sm:$0xff] %v250
                %v252 = vld [vmem:[%s248 + $0x10] sm:$0xff]
                %253 = vst [vmem:[%s249 + $0x8] sm:$0xff] %v252
              $region57: #{net_forward.7} parent=51 // loop_footer
                %s247 = sadd.s32 1, %s243
              $region58: #{net_forward.7} parent=51 // loop_footer_branch
                %242 = sbr.rel target = $region54
              $region59: #{net_forward.7} parent=51 // loop_exit
                _
            $region52: #{net_forward.7} parent=43 // pred_fallthru
              _
          $region44: #{net_forward.7} parent=39 // pred_fallthru
            _
          %270 = vnop
        $region40: #{net_forward.7} parent=35 // pred_fallthru
          _
        // Predicated region
        $region75: #{net_forward.7} parent=35 // pred_check
          %p271 = pneg %p59
        $region76: #{net_forward.7} parent=35 // pred_check_branch
          %273 = sbr.rel (%p271) target = $region78
        $region77: #{net_forward.7} parent=35 // pred_region
          %s274 = smul.u32 32, %s13
          %p275 = scmp.lt.s32.totalorder %s274, 63
          %s276 = scalar_select %p275, %s274, 63
          %s277 = smul.addr %s276, 2
          %s278 = smul.addr %s277, 4
          %s279 = scalar_lea.vmem %s1, %s278
          %s280 = smul.u32 32, %s13
        $region78: #{net_forward.7} parent=35 // pred_fallthru
          _
      $region36: #{net_forward.7} parent=5 // pred_fallthru
        _
      %p281 = scmp.le.s32.totalorder 1, %s13
      %p282 = scmp.lt.s32.totalorder %s13, 3
      %p283 = pnand %p281, %p282
      %p284 = pneg %p283
      // Predicated region
      $region79: #{net_forward.7} parent=5 // pred_check
        _
      $region80: #{net_forward.7} parent=5 // pred_check_branch
        %286 = sbr.rel (%p283) target = $region82
      $region81: #{net_forward.7} parent=5 // pred_region
        %s287 = ssub.s32 %s13, 1
        %s288 = sand.u32 %s26, 1
        %s289 = sand.u32 %s26, 1
        %s290 = smul.addr %s289, 16
        %s291 = scalar_lea.vmem [#allocation3], %s290
        // Predicated region
        $region83: #{net_forward.7} parent=81 // pred_check
          %p292 = pneg %p39
        $region84: #{net_forward.7} parent=81 // pred_check_branch
          %294 = sbr.rel (%p292) target = $region86
        $region85: #{net_forward.7} parent=81 // pred_region
          _
        $region86: #{net_forward.7} parent=81 // pred_fallthru
          _
        %s295 = sand.u32 %s26, 1
        %s296 = sand.u32 %s26, 1
        %s297 = smul.addr %s296, 16
        %s298 = scalar_lea.vmem [#allocation3], %s297
        %p299 = pneg %p39
        %p300 = pneg %p36
        %s301 = smul.u32 32, %s18
        %p302 = scmp.lt.s32.totalorder %s301, 63
        %s303 = scalar_select %p302, %s301, 63
        %s304 = smul.addr %s303, 2
        %s305 = smul.addr %s304, 4
        %s306 = scalar_lea.vmem %s1, %s305
        %p307 = pneg %p65
        %p308 = pneg %p62
        %p309 = pneg %p86
        %p310 = pneg %p83
        %p311 = pneg %p107
        %p312 = pneg %p104
        %p313 = pneg %p128
        %p314 = pneg %p125
        %p315 = pneg %p149
        %p316 = pneg %p146
        %p317 = pneg %p170
        %p318 = pneg %p167
        %p319 = pneg %p191
        %p320 = pneg %p188
        %s321 = smul.u32 2, %s18
        %s322 = smul.u32 32, %s18
        %p323 = scmp.lt.s32.totalorder %s322, 63
        %s324 = scalar_select %p323, %s322, 63
        %s325 = smul.addr %s324, 2
        %s326 = smul.addr %s325, 4
        %s327 = scalar_lea.vmem %s1, %s326
        %s328 = smul.u32 32, %s18
        %p330 = scmp.eq.s32.totalorder %s18, 0
        // Predicated region
        $region87: #{net_forward.7} parent=81 // pred_check
          %p331 = pneg %p330
        $region88: #{net_forward.7} parent=81 // pred_check_branch
          %333 = sbr.rel (%p331) target = $region90
        $region89: #{net_forward.7} parent=81 // pred_region
          %334 = vst [vmem:[#allocation2] sm:$0xff] 0.0
          %335 = vst [vmem:[#allocation2 + $0x8] sm:$0xff] 0.0
          %336 = vst [vmem:[#allocation2 + $0x10] sm:$0xff] 0.0
          %337 = vst [vmem:[#allocation2 + $0x18] sm:$0xff] 0.0
        $region90: #{net_forward.7} parent=81 // pred_fallthru
          _
        %v338 = vld [vmem:[#allocation2] sm:$0xff]
        %v339 = vld [vmem:[#allocation2 + $0x8] sm:$0xff]
        %v340 = vld [vmem:[#allocation2 + $0x10] sm:$0xff]
        %v341 = vld [vmem:[#allocation2 + $0x18] sm:$0xff]
        %v342 = vld [vmem:[%s291] sm:$0xff]
        %v343 = vld [vmem:[%s291 + $0x8] sm:$0xff]
        %v344 = vld [vmem:[%s327] sm:$0xff]
        %v345 = vld [vmem:[%s327 + $0x8] sm:$0xff]
        %v346 = vld [vmem:[%s327 + $0x10] sm:$0xff]
        %v347 = vld [vmem:[%s327 + $0x18] sm:$0xff]
        %v348 = vld [vmem:[%s327 + $0x20] sm:$0xff]
        %v349 = vld [vmem:[%s327 + $0x28] sm:$0xff]
        %v350 = vld [vmem:[%s327 + $0x30] sm:$0xff]
        %v351 = vld [vmem:[%s327 + $0x38] sm:$0xff]
        %v352 = vld [vmem:[%s327 + $0x40] sm:$0xff]
        %v353 = vld [vmem:[%s327 + $0x48] sm:$0xff]
        %v354 = vld [vmem:[%s327 + $0x50] sm:$0xff]
        %v355 = vld [vmem:[%s327 + $0x58] sm:$0xff]
        %v356 = vld [vmem:[%s327 + $0x60] sm:$0xff]
        %v357 = vld [vmem:[%s327 + $0x68] sm:$0xff]
        %v358 = vld [vmem:[%s327 + $0x70] sm:$0xff]
        %v359 = vld [vmem:[%s327 + $0x78] sm:$0xff]
        %v360 = vld [vmem:[%s327 + $0x80] sm:$0xff]
        %v361 = vld [vmem:[%s327 + $0x88] sm:$0xff]
        %v362 = vld [vmem:[%s327 + $0x90] sm:$0xff]
        %v363 = vld [vmem:[%s327 + $0x98] sm:$0xff]
        %v364 = vld [vmem:[%s327 + $0xa0] sm:$0xff]
        %v365 = vld [vmem:[%s327 + $0xa8] sm:$0xff]
        %v366 = vld [vmem:[%s327 + $0xb0] sm:$0xff]
        %v367 = vld [vmem:[%s327 + $0xb8] sm:$0xff]
        %v368 = vld [vmem:[%s327 + $0xc0] sm:$0xff]
        %v369 = vld [vmem:[%s327 + $0xc8] sm:$0xff]
        %v370 = vld [vmem:[%s327 + $0xd0] sm:$0xff]
        %v371 = vld [vmem:[%s327 + $0xd8] sm:$0xff]
        %v372 = vld [vmem:[%s327 + $0xe0] sm:$0xff]
        %v373 = vld [vmem:[%s327 + $0xe8] sm:$0xff]
        %v374 = vld [vmem:[%s327 + $0xf0] sm:$0xff]
        %v375 = vld [vmem:[%s327 + $0xf8] sm:$0xff]
        %v378 = vunpack.c.l.b16 %v342
        %v379 = vunpack.c.h.b16 %v342
        %v380 = vunpack.c.l.b16 %v343
        %v381 = vunpack.c.h.b16 %v343
        %v382 = vpack.c.b16 %v380, %v378
        %v383 = vpack.c.b16 %v381, %v379
        %v418 = vunpack.c.l.b16 %v344
        %v419 = vunpack.c.h.b16 %v344
        %v420 = vunpack.c.l.b16 %v345
        %v421 = vunpack.c.h.b16 %v345
        %v422 = vunpack.c.l.b16 %v346
        %v423 = vunpack.c.h.b16 %v346
        %v424 = vunpack.c.l.b16 %v347
        %v425 = vunpack.c.h.b16 %v347
        %v426 = vunpack.c.l.b16 %v348
        %v427 = vunpack.c.h.b16 %v348
        %v428 = vunpack.c.l.b16 %v349
        %v429 = vunpack.c.h.b16 %v349
        %v430 = vunpack.c.l.b16 %v350
        %v431 = vunpack.c.h.b16 %v350
        %v432 = vunpack.c.l.b16 %v351
        %v433 = vunpack.c.h.b16 %v351
        %v434 = vunpack.c.l.b16 %v352
        %v435 = vunpack.c.h.b16 %v352
        %v436 = vunpack.c.l.b16 %v353
        %v437 = vunpack.c.h.b16 %v353
        %v438 = vunpack.c.l.b16 %v354
        %v439 = vunpack.c.h.b16 %v354
        %v440 = vunpack.c.l.b16 %v355
        %v441 = vunpack.c.h.b16 %v355
        %v442 = vunpack.c.l.b16 %v356
        %v443 = vunpack.c.h.b16 %v356
        %v444 = vunpack.c.l.b16 %v357
        %v445 = vunpack.c.h.b16 %v357
        %v446 = vunpack.c.l.b16 %v358
        %v447 = vunpack.c.h.b16 %v358
        %v448 = vunpack.c.l.b16 %v359
        %v449 = vunpack.c.h.b16 %v359
        %v450 = vunpack.c.l.b16 %v360
        %v451 = vunpack.c.h.b16 %v360
        %v452 = vunpack.c.l.b16 %v361
        %v453 = vunpack.c.h.b16 %v361
        %v454 = vunpack.c.l.b16 %v362
        %v455 = vunpack.c.h.b16 %v362
        %v456 = vunpack.c.l.b16 %v363
        %v457 = vunpack.c.h.b16 %v363
        %v458 = vunpack.c.l.b16 %v364
        %v459 = vunpack.c.h.b16 %v364
        %v460 = vunpack.c.l.b16 %v365
        %v461 = vunpack.c.h.b16 %v365
        %v462 = vunpack.c.l.b16 %v366
        %v463 = vunpack.c.h.b16 %v366
        %v464 = vunpack.c.l.b16 %v367
        %v465 = vunpack.c.h.b16 %v367
        %v466 = vunpack.c.l.b16 %v368
        %v467 = vunpack.c.h.b16 %v368
        %v468 = vunpack.c.l.b16 %v369
        %v469 = vunpack.c.h.b16 %v369
        %v470 = vunpack.c.l.b16 %v370
        %v471 = vunpack.c.h.b16 %v370
        %v472 = vunpack.c.l.b16 %v371
        %v473 = vunpack.c.h.b16 %v371
        %v474 = vunpack.c.l.b16 %v372
        %v475 = vunpack.c.h.b16 %v372
        %v476 = vunpack.c.l.b16 %v373
        %v477 = vunpack.c.h.b16 %v373
        %v478 = vunpack.c.l.b16 %v374
        %v479 = vunpack.c.h.b16 %v374
        %v480 = vunpack.c.l.b16 %v375
        %v481 = vunpack.c.h.b16 %v375
        %v482 = vpack.c.b16 %v420, %v418
        %v483 = vpack.c.b16 %v421, %v419
        %v484 = vpack.c.b16 %v424, %v422
        %v485 = vpack.c.b16 %v425, %v423
        %v486 = vpack.c.b16 %v428, %v426
        %v487 = vpack.c.b16 %v429, %v427
        %v488 = vpack.c.b16 %v432, %v430
        %v489 = vpack.c.b16 %v433, %v431
        %v490 = vpack.c.b16 %v436, %v434
        %v491 = vpack.c.b16 %v437, %v435
        %v492 = vpack.c.b16 %v440, %v438
        %v493 = vpack.c.b16 %v441, %v439
        %v494 = vpack.c.b16 %v444, %v442
        %v495 = vpack.c.b16 %v445, %v443
        %v496 = vpack.c.b16 %v448, %v446
        %v497 = vpack.c.b16 %v449, %v447
        %v498 = vpack.c.b16 %v452, %v450
        %v499 = vpack.c.b16 %v453, %v451
        %v500 = vpack.c.b16 %v456, %v454
        %v501 = vpack.c.b16 %v457, %v455
        %v502 = vpack.c.b16 %v460, %v458
        %v503 = vpack.c.b16 %v461, %v459
        %v504 = vpack.c.b16 %v464, %v462
        %v505 = vpack.c.b16 %v465, %v463
        %v506 = vpack.c.b16 %v468, %v466
        %v507 = vpack.c.b16 %v469, %v467
        %v508 = vpack.c.b16 %v472, %v470
        %v509 = vpack.c.b16 %v473, %v471
        %v510 = vpack.c.b16 %v476, %v474
        %v511 = vpack.c.b16 %v477, %v475
        %v512 = vpack.c.b16 %v480, %v478
        %v513 = vpack.c.b16 %v481, %v479
        %546 = vmatprep.subr.bf16.mxu0 %v483
        %547 = vmatpush1.bf16.msra.mxu0 %v482
        %548 = vmatprep.subr.bf16.mxu0 %v485
        %549 = vmatpush1.bf16.msra.mxu0 %v484
        %550 = vmatprep.subr.bf16.mxu0 %v487
        %551 = vmatpush1.bf16.msra.mxu0 %v486
        %552 = vmatprep.subr.bf16.mxu0 %v489
        %553 = vmatpush1.bf16.msra.mxu0 %v488
        %554 = vmatprep.subr.bf16.mxu0 %v491
        %555 = vmatpush1.bf16.msra.mxu0 %v490
        %556 = vmatprep.subr.bf16.mxu0 %v493
        %557 = vmatpush1.bf16.msra.mxu0 %v492
        %558 = vmatprep.subr.bf16.mxu0 %v495
        %559 = vmatpush1.bf16.msra.mxu0 %v494
        %560 = vmatprep.subr.bf16.mxu0 %v497
        %561 = vmatpush1.bf16.msra.mxu0 %v496
        %562 = vmatprep.subr.bf16.mxu0 %v499
        %563 = vmatpush1.bf16.msra.mxu0 %v498
        %564 = vmatprep.subr.bf16.mxu0 %v501
        %565 = vmatpush1.bf16.msra.mxu0 %v500
        %566 = vmatprep.subr.bf16.mxu0 %v503
        %567 = vmatpush1.bf16.msra.mxu0 %v502
        %568 = vmatprep.subr.bf16.mxu0 %v505
        %569 = vmatpush1.bf16.msra.mxu0 %v504
        %570 = vmatprep.subr.bf16.mxu0 %v507
        %571 = vmatpush1.bf16.msra.mxu0 %v506
        %572 = vmatprep.subr.bf16.mxu0 %v509
        %573 = vmatpush1.bf16.msra.mxu0 %v508
        %574 = vmatprep.subr.bf16.mxu0 %v511
        %575 = vmatpush1.bf16.msra.mxu0 %v510
        %576 = vmatprep.subr.bf16.mxu0 %v513
        %577 = vmatpush1.bf16.msra.mxu0 %v512
        %578 = vmatprep.mubr.bf16.mxu0 %v383
        %579 = vmatmul.mubr.bf16.gmra.mrb[0].mxu0 %v382
        %v580 = vpop.f32.mrb[0].mxu0
        %v581 = vadd.f32 0.0, %v580
        %v582 = vpop.f32.mrb[0].mxu0
        %v583 = vadd.f32 0.0, %v582
        %v584 = vpop.f32.mrb[0].mxu0
        %v585 = vadd.f32 0.0, %v584
        %v586 = vpop.f32.mrb[0].mxu0
        %v587 = vadd.f32 0.0, %v586
        %588 = vdwg.mxu0
        %v589 = vadd.f32 %v338, %v581
        %v590 = vadd.f32 %v339, %v583
        %v591 = vadd.f32 %v340, %v585
        %v592 = vadd.f32 %v341, %v587
        %593 = vst [vmem:[#allocation2] sm:$0xff] %v589
        %594 = vst [vmem:[#allocation2 + $0x8] sm:$0xff] %v590
        %595 = vst [vmem:[#allocation2 + $0x10] sm:$0xff] %v591
        %596 = vst [vmem:[#allocation2 + $0x18] sm:$0xff] %v592
        %p597 = scmp.eq.s32.totalorder %s18, 1
        // Predicated region
        $region91: #{net_forward.7} parent=81 // pred_check
          %p598 = pneg %p597
        $region92: #{net_forward.7} parent=81 // pred_check_branch
          %600 = sbr.rel (%p598) target = $region94
        $region93: #{net_forward.7} parent=81 // pred_region
          %v601 = vld [vmem:[#allocation2] sm:$0xff]
          %v602 = vld [vmem:[#allocation2 + $0x8] sm:$0xff]
          %v603 = vld [vmem:[#allocation2 + $0x10] sm:$0xff]
          %v604 = vld [vmem:[#allocation2 + $0x18] sm:$0xff]
          %v605 = vld [vmem:[%s2] sm:$0x3]
          %v607 = vlaneseq
          %v608 = vshrl.u32 %v607, 7
          %v609 = vsub.s32 0, %v608
          %v610 = vrot.slane %v605, %v609
          %v611 = vlaneseq
          %v612 = vshrl.u32 %v611, 7
          %v613 = vsub.s32 1, %v612
          %v614 = vrot.slane %v605, %v613
          %v617 = vadd.f32 %v601, %v610
          %v618 = vadd.f32 %v602, %v614
          %v619 = vadd.f32 %v603, %v610
          %v620 = vadd.f32 %v604, %v614
          %v621 = vmax.f32 %v617, 0.0
          %v622 = vmax.f32 %v618, 0.0
          %v623 = vmax.f32 %v619, 0.0
          %v624 = vmax.f32 %v620, 0.0
          %v625 = vpack.c.bf16 %v623, %v621
          %v626 = vpack.c.bf16 %v624, %v622
          %v627 = vld [vmem:[%s3] sm:$0xf]
          %v628 = vld [vmem:[%s3 + $0x4] sm:$0xf]
          %v629 = vld [vmem:[%s3 + $0x8] sm:$0xf]
          %v630 = vld [vmem:[%s3 + $0xc] sm:$0xf]
          %v631 = vld [vmem:[%s3 + $0x10] sm:$0xf]
          %v632 = vld [vmem:[%s3 + $0x14] sm:$0xf]
          %v633 = vld [vmem:[%s3 + $0x18] sm:$0xf]
          %v634 = vld [vmem:[%s3 + $0x1c] sm:$0xf]
          %v635 = vld [vmem:[%s3 + $0x20] sm:$0xf]
          %v636 = vld [vmem:[%s3 + $0x24] sm:$0xf]
          %v637 = vld [vmem:[%s3 + $0x28] sm:$0xf]
          %v638 = vld [vmem:[%s3 + $0x2c] sm:$0xf]
          %v639 = vld [vmem:[%s3 + $0x30] sm:$0xf]
          %v640 = vld [vmem:[%s3 + $0x34] sm:$0xf]
          %v641 = vld [vmem:[%s3 + $0x38] sm:$0xf]
          %v642 = vld [vmem:[%s3 + $0x3c] sm:$0xf]
          %v643 = vld [vmem:[%s3 + $0x40] sm:$0xf]
          %v644 = vld [vmem:[%s3 + $0x44] sm:$0xf]
          %v645 = vld [vmem:[%s3 + $0x48] sm:$0xf]
          %v646 = vld [vmem:[%s3 + $0x4c] sm:$0xf]
          %v647 = vld [vmem:[%s3 + $0x50] sm:$0xf]
          %v648 = vld [vmem:[%s3 + $0x54] sm:$0xf]
          %v649 = vld [vmem:[%s3 + $0x58] sm:$0xf]
          %v650 = vld [vmem:[%s3 + $0x5c] sm:$0xf]
          %v651 = vld [vmem:[%s3 + $0x60] sm:$0xf]
          %v652 = vld [vmem:[%s3 + $0x64] sm:$0xf]
          %v653 = vld [vmem:[%s3 + $0x68] sm:$0xf]
          %v654 = vld [vmem:[%s3 + $0x6c] sm:$0xf]
          %v655 = vld [vmem:[%s3 + $0x70] sm:$0xf]
          %v656 = vld [vmem:[%s3 + $0x74] sm:$0xf]
          %v657 = vld [vmem:[%s3 + $0x78] sm:$0xf]
          %v658 = vld [vmem:[%s3 + $0x7c] sm:$0xf]
          %v659 = vld [vmem:[%s4] sm:$0x1]
          %v661 = vlaneseq
          %v662 = vshrl.u32 %v661, 7
          %v663 = vsub.s32 0, %v662
          %v664 = vrot.slane %v659, %v663
          %v698 = vunpack.c.l.b16 %v627
          %v699 = vunpack.c.l.b16 %v628
          %v700 = vunpack.c.l.b16 %v629
          %v701 = vunpack.c.l.b16 %v630
          %v702 = vunpack.c.l.b16 %v631
          %v703 = vunpack.c.l.b16 %v632
          %v704 = vunpack.c.l.b16 %v633
          %v705 = vunpack.c.l.b16 %v634
          %v706 = vunpack.c.l.b16 %v635
          %v707 = vunpack.c.l.b16 %v636
          %v708 = vunpack.c.l.b16 %v637
          %v709 = vunpack.c.l.b16 %v638
          %v710 = vunpack.c.l.b16 %v639
          %v711 = vunpack.c.l.b16 %v640
          %v712 = vunpack.c.l.b16 %v641
          %v713 = vunpack.c.l.b16 %v642
          %v714 = vunpack.c.l.b16 %v643
          %v715 = vunpack.c.l.b16 %v644
          %v716 = vunpack.c.l.b16 %v645
          %v717 = vunpack.c.l.b16 %v646
          %v718 = vunpack.c.l.b16 %v647
          %v719 = vunpack.c.l.b16 %v648
          %v720 = vunpack.c.l.b16 %v649
          %v721 = vunpack.c.l.b16 %v650
          %v722 = vunpack.c.l.b16 %v651
          %v723 = vunpack.c.l.b16 %v652
          %v724 = vunpack.c.l.b16 %v653
          %v725 = vunpack.c.l.b16 %v654
          %v726 = vunpack.c.l.b16 %v655
          %v727 = vunpack.c.l.b16 %v656
          %v728 = vunpack.c.l.b16 %v657
          %v729 = vunpack.c.l.b16 %v658
          %v730 = vpack.c.b16 %v699, %v698
          %v731 = vpack.c.b16 %v701, %v700
          %v732 = vpack.c.b16 %v703, %v702
          %v733 = vpack.c.b16 %v705, %v704
          %v734 = vpack.c.b16 %v707, %v706
          %v735 = vpack.c.b16 %v709, %v708
          %v736 = vpack.c.b16 %v711, %v710
          %v737 = vpack.c.b16 %v713, %v712
          %v738 = vpack.c.b16 %v715, %v714
          %v739 = vpack.c.b16 %v717, %v716
          %v740 = vpack.c.b16 %v719, %v718
          %v741 = vpack.c.b16 %v721, %v720
          %v742 = vpack.c.b16 %v723, %v722
          %v743 = vpack.c.b16 %v725, %v724
          %v744 = vpack.c.b16 %v727, %v726
          %v745 = vpack.c.b16 %v729, %v728
          %762 = vmatprep.subr.bf16.mxu0 0
          %763 = vmatpush1.bf16.msra.mxu0 %v730
          %764 = vmatprep.subr.bf16.mxu0 0
          %765 = vmatpush1.bf16.msra.mxu0 %v731
          %766 = vmatprep.subr.bf16.mxu0 0
          %767 = vmatpush1.bf16.msra.mxu0 %v732
          %768 = vmatprep.subr.bf16.mxu0 0
          %769 = vmatpush1.bf16.msra.mxu0 %v733
          %770 = vmatprep.subr.bf16.mxu0 0
          %771 = vmatpush1.bf16.msra.mxu0 %v734
          %772 = vmatprep.subr.bf16.mxu0 0
          %773 = vmatpush1.bf16.msra.mxu0 %v735
          %774 = vmatprep.subr.bf16.mxu0 0
          %775 = vmatpush1.bf16.msra.mxu0 %v736
          %776 = vmatprep.subr.bf16.mxu0 0
          %777 = vmatpush1.bf16.msra.mxu0 %v737
          %778 = vmatprep.subr.bf16.mxu0 0
          %779 = vmatpush1.bf16.msra.mxu0 %v738
          %780 = vmatprep.subr.bf16.mxu0 0
          %781 = vmatpush1.bf16.msra.mxu0 %v739
          %782 = vmatprep.subr.bf16.mxu0 0
          %783 = vmatpush1.bf16.msra.mxu0 %v740
          %784 = vmatprep.subr.bf16.mxu0 0
          %785 = vmatpush1.bf16.msra.mxu0 %v741
          %786 = vmatprep.subr.bf16.mxu0 0
          %787 = vmatpush1.bf16.msra.mxu0 %v742
          %788 = vmatprep.subr.bf16.mxu0 0
          %789 = vmatpush1.bf16.msra.mxu0 %v743
          %790 = vmatprep.subr.bf16.mxu0 0
          %791 = vmatpush1.bf16.msra.mxu0 %v744
          %792 = vmatprep.subr.bf16.mxu0 0
          %793 = vmatpush1.bf16.msra.mxu0 %v745
          %794 = vmatprep.mubr.bf16.mxu0 %v626
          %795 = vmatmul.mubr.bf16.gmra.mrb[0].mxu0 %v625
          %v796 = vpop.f32.mrb[0].mxu0
          %v797 = vadd.f32 %v664, %v796
          %v798 = vpop.f32.mrb[0].mxu0
          %v799 = vpop.f32.mrb[0].mxu0
          %v800 = vadd.f32 %v664, %v799
          %v801 = vpop.f32.mrb[0].mxu0
          %802 = vdwg.mxu0
          %v803 = vmax.f32 %v797, 0.0
          %v804 = vmax.f32 %v800, 0.0
          %v805 = vpack.c.bf16 %v804, %v803
          %v806 = vld [vmem:[%s5] sm:$0xf]
          %v807 = vld [vmem:[%s5 + $0x4] sm:$0xf]
          %v808 = vld [vmem:[%s5 + $0x8] sm:$0xf]
          %v809 = vld [vmem:[%s5 + $0xc] sm:$0xf]
          %v810 = vld [vmem:[%s5 + $0x10] sm:$0xf]
          %v811 = vld [vmem:[%s5 + $0x14] sm:$0xf]
          %v812 = vld [vmem:[%s5 + $0x18] sm:$0xf]
          %v813 = vld [vmem:[%s5 + $0x1c] sm:$0xf]
          %v814 = vld [vmem:[%s5 + $0x20] sm:$0xf]
          %v815 = vld [vmem:[%s5 + $0x24] sm:$0xf]
          %v816 = vld [vmem:[%s5 + $0x28] sm:$0xf]
          %v817 = vld [vmem:[%s5 + $0x2c] sm:$0xf]
          %v818 = vld [vmem:[%s5 + $0x30] sm:$0xf]
          %v819 = vld [vmem:[%s5 + $0x34] sm:$0xf]
          %v820 = vld [vmem:[%s5 + $0x38] sm:$0xf]
          %v821 = vld [vmem:[%s5 + $0x3c] sm:$0xf]
          %v822 = vld [vmem:[%s6] sm:$0x1]
          %v824 = vlaneseq
          %v825 = vshrl.u32 %v824, 7
          %v826 = vsub.s32 0, %v825
          %v827 = vrot.slane %v822, %v826
          %v845 = vunpack.c.l.b16 %v806
          %v846 = vunpack.c.l.b16 %v807
          %v847 = vunpack.c.l.b16 %v808
          %v848 = vunpack.c.l.b16 %v809
          %v849 = vunpack.c.l.b16 %v810
          %v850 = vunpack.c.l.b16 %v811
          %v851 = vunpack.c.l.b16 %v812
          %v852 = vunpack.c.l.b16 %v813
          %v853 = vunpack.c.l.b16 %v814
          %v854 = vunpack.c.l.b16 %v815
          %v855 = vunpack.c.l.b16 %v816
          %v856 = vunpack.c.l.b16 %v817
          %v857 = vunpack.c.l.b16 %v818
          %v858 = vunpack.c.l.b16 %v819
          %v859 = vunpack.c.l.b16 %v820
          %v860 = vunpack.c.l.b16 %v821
          %v861 = vpack.c.b16 %v846, %v845
          %v862 = vpack.c.b16 %v848, %v847
          %v863 = vpack.c.b16 %v850, %v849
          %v864 = vpack.c.b16 %v852, %v851
          %v865 = vpack.c.b16 %v854, %v853
          %v866 = vpack.c.b16 %v856, %v855
          %v867 = vpack.c.b16 %v858, %v857
          %v868 = vpack.c.b16 %v860, %v859
          %877 = vmatprep.subr.bf16.mxu0 0
          %878 = vmatpush1.bf16.msra.mxu0 %v861
          %879 = vmatprep.subr.bf16.mxu0 0
          %880 = vmatpush1.bf16.msra.mxu0 %v862
          %881 = vmatprep.subr.bf16.mxu0 0
          %882 = vmatpush1.bf16.msra.mxu0 %v863
          %883 = vmatprep.subr.bf16.mxu0 0
          %884 = vmatpush1.bf16.msra.mxu0 %v864
          %885 = vmatprep.subr.bf16.mxu0 0
          %886 = vmatpush1.bf16.msra.mxu0 %v865
          %887 = vmatprep.subr.bf16.mxu0 0
          %888 = vmatpush1.bf16.msra.mxu0 %v866
          %889 = vmatprep.subr.bf16.mxu0 0
          %890 = vmatpush1.bf16.msra.mxu0 %v867
          %891 = vmatprep.subr.bf16.mxu0 0
          %892 = vmatpush1.bf16.msra.mxu0 %v868
          %893 = vmatprep.subr.bf16.mxu0 0
          %894 = vmatpush1.bf16.msra.mxu0 0
          %895 = vmatprep.subr.bf16.mxu0 0
          %896 = vmatpush1.bf16.msra.mxu0 0
          %897 = vmatprep.subr.bf16.mxu0 0
          %898 = vmatpush1.bf16.msra.mxu0 0
          %899 = vmatprep.subr.bf16.mxu0 0
          %900 = vmatpush1.bf16.msra.mxu0 0
          %901 = vmatprep.subr.bf16.mxu0 0
          %902 = vmatpush1.bf16.msra.mxu0 0
          %903 = vmatprep.subr.bf16.mxu0 0
          %904 = vmatpush1.bf16.msra.mxu0 0
          %905 = vmatprep.subr.bf16.mxu0 0
          %906 = vmatpush1.bf16.msra.mxu0 0
          %907 = vmatprep.subr.bf16.mxu0 0
          %908 = vmatpush1.bf16.msra.mxu0 0
          %909 = vmatprep.mubr.bf16.mxu0 0
          %910 = vmatmul.mubr.bf16.gmra.mrb[0].mxu0 %v805
          %v911 = vpop.f32.mrb[0].mxu0
          %v912 = vadd.f32 %v827, %v911
          %v913 = vpop.f32.mrb[0].mxu0
          %v914 = vpop.f32.mrb[0].mxu0
          %v915 = vadd.f32 %v827, %v914
          %v916 = vpop.f32.mrb[0].mxu0
          %917 = vdwg.mxu0
          %918 = vst [vmem:[%s7] sm:$0xff] %v912
          %919 = vst [vmem:[%s7 + $0x8] sm:$0xff] %v915
        $region94: #{net_forward.7} parent=81 // pred_fallthru
          _
        // Predicated region
        $region95: #{net_forward.7} parent=81 // pred_check
          %p920 = pneg %p188
        $region96: #{net_forward.7} parent=81 // pred_check_branch
          %922 = sbr.rel (%p920) target = $region98
        $region97: #{net_forward.7} parent=81 // pred_region
          _
        $region98: #{net_forward.7} parent=81 // pred_fallthru
          _
        // Predicated region
        $region99: #{net_forward.7} parent=81 // pred_check
          %p923 = pneg %p188
        $region100: #{net_forward.7} parent=81 // pred_check_branch
          %925 = sbr.rel (%p923) target = $region102
        $region101: #{net_forward.7} parent=81 // pred_region
          _
        $region102: #{net_forward.7} parent=81 // pred_fallthru
          _
      $region82: #{net_forward.7} parent=5 // pred_fallthru
        _
      %p926 = scmp.le.s32.totalorder 2, %s13
      // Predicated region
      $region103: #{net_forward.7} parent=5 // pred_check
        %p927 = pneg %p926
      $region104: #{net_forward.7} parent=5 // pred_check_branch
        %929 = sbr.rel (%p927) target = $region106
      $region105: #{net_forward.7} parent=5 // pred_region
        %s930 = ssub.s32 %s13, 2
      $region106: #{net_forward.7} parent=5 // pred_fallthru
        _
    $region6: #{net_forward.7} parent=1 // loop_footer
      %s17 = sadd.s32 1, %s13
    $region7: #{net_forward.7} parent=1 // loop_footer_branch
      %12 = sbr.rel target = $region3
    $region8: #{net_forward.7} parent=1 // loop_exit
      _

</llo_original>
